<compile_context>
chip_gen: v5e
topology: v5e:2x2
jax: 0.10.0
libtpu: 0.0.40
codegen_flags: <defaults>
</compile_context>

<pallas_src>
import functools

import jax
import jax.numpy as jnp
from jax.experimental import pallas as pl
from jax.experimental.pallas import tpu as pltpu

EPS = 1e-5
LANE = 128


# ---------------------------------------------------------------------------
# helpers (trace-time JAX glue: layout, padding, BN finalize)
# ---------------------------------------------------------------------------
def _round_up(n, m):
    return ((n + m - 1) // m) * m


def _pad_axis(x, axis, size):
    pad = size - x.shape[axis]
    if pad <= 0:
        return x
    widths = [(0, 0)] * x.ndim
    widths[axis] = (0, pad)
    return jnp.pad(x, widths)


def _w3x3_to_cat(w, cin_p, cout_p):
    # torch (Cout, Cin, 3, 3) -> (9*cin_p, cout_p) bf16; tap t=dy*3+dx occupies contraction
    # rows [t*cin_p, (t+1)*cin_p) to match the in-kernel lane-concat of the 9 shifted views.
    cout, cin = w.shape[0], w.shape[1]
    wm = jnp.transpose(w, (2, 3, 1, 0)).reshape(9, cin, cout)
    wm = _pad_axis(wm, 1, cin_p).reshape(9 * cin_p, cout)
    return _pad_axis(wm, 1, cout_p).astype(jnp.bfloat16)


def _w1x1_to_mat(w, cin_p, cout_p):
    wm = jnp.transpose(w[:, :, 0, 0], (1, 0))                       # (Cin, Cout)
    return _pad_axis(_pad_axis(wm, 0, cin_p), 1, cout_p).astype(jnp.bfloat16)


def _phase_split_flat(xp, s, Ho, Wo):
    # xp: (N, Hp, Wp, C) zero-padded bf16 input.  Returns the s*s stride phases of every
    # image in *flat spatial* form (N*s*s, M_pad, C): a strided 3x3-conv tap then becomes a
    # constant row offset in-kernel (no strided loads, no 9x im2col HBM blow-up).
    N, Hp, Wp, C = xp.shape
    Hph, Wph = -(-Hp // s), -(-Wp // s)
    phases = []
    for p in range(s):
        for q in range(s):
            t = xp[:, p::s, q::s, :]
            t = jnp.pad(t, ((0, 0), (0, Hph - t.shape[1]), (0, Wph - t.shape[2]), (0, 0)))
            phases.append(t.reshape(N, Hph * Wph, C))
    ph = jnp.stack(phases, axis=1)                                  # (N, s*s, Hph*Wph, C)
    sh_max = (2 // s) * (Wph + 1)                                   # largest tap row offset
    m_pad = _round_up(max(Hph * Wph, Ho * Wph + sh_max), 8)
    ph = _pad_axis(ph, 2, m_pad)
    return ph.reshape(N * s * s, m_pad, C), Wph


def _bn_scale_shift(partial_stats, gamma_p, beta_p, count):
    # partial_stats: (N, 2, Cp) per-image [sum, sum_sq] -> per-channel (scale, shift)
    s = jnp.sum(partial_stats, axis=0)                              # (2, Cp)
    mean = s[0] / count
    var = jnp.maximum(s[1] / count - mean * mean, 0.0)
    inv = jax.lax.rsqrt(var + EPS)
    scale = gamma_p * inv
    shift = beta_p - mean * scale
    return jnp.stack([scale, shift], axis=0).astype(jnp.float32)    # (2, Cp)


def _partial_sums(v):
    # v: (Ho, Wo, C) f32 -> ((1, C) sum, (1, C) sum-of-squares) via 2D reductions.
    s = jnp.sum(jnp.sum(v, axis=0), axis=0, keepdims=True)
    q = jnp.sum(jnp.sum(v * v, axis=0), axis=0, keepdims=True)
    return s, q


# ---------------------------------------------------------------------------
# Pallas kernels
# ---------------------------------------------------------------------------
def _make_conv1_kernel(stride, Ho, Wo, Wph, has_ds):
    """conv1 (3x3, stride) [+ fused 1x1 strided downsample conv] + partial BN stats."""
    M = Ho * Wph                       # accumulate at full phase width; crop columns once

    def body(xph_ref, w1_ref, *rest):
        if has_ds:
            wd_ref, y1_ref, id_ref, s1_ref, sd_ref = rest
        else:
            y1_ref, s1_ref = rest
        cout_p = y1_ref.shape[-1]
        x = xph_ref[...]               # (s*s, M_pad, cin_p) bf16, flat stride phases

        # 9 taps = 9 constant row offsets of one phase; lane-concat -> single deep-K matmul.
        taps = []
        for t in range(9):
            dy, dx = divmod(t, 3)
            ph = (dy % stride) * stride + (dx % stride)
            sh = (dy // stride) * Wph + (dx // stride)
            taps.append(x[ph, sh:sh + M, :])
        xcat = jnp.concatenate(taps, axis=-1)                          # (M, 9*cin_p)
        acc = jnp.dot(xcat, w1_ref[...], preferred_element_type=jnp.float32)

        valid = acc.reshape(Ho, Wph, cout_p)[:, :Wo, :]                # crop garbage cols
        s, q = _partial_sums(valid)
        s1_ref[0, 0:1, :] = s
        s1_ref[0, 1:2, :] = q
        y1_ref[0] = valid.astype(jnp.bfloat16)

        if has_ds:
            # fused 1x1 strided downsample conv (same x block -> x read once from HBM)
            phd = (1 % stride) * stride + (1 % stride)
            off = 1 // stride
            shd = off * Wph + off
            xd = x[phd, shd:shd + M, :]
            accd = jnp.dot(xd, wd_ref[...], preferred_element_type=jnp.float32)
            vd = accd.reshape(Ho, Wph, cout_p)[:, :Wo, :]
            sd_, qd = _partial_sums(vd)
            sd_ref[0, 0:1, :] = sd_
            sd_ref[0, 1:2, :] = qd
            id_ref[0] = vd.astype(jnp.bfloat16)
    return body


def _make_conv2_kernel(Ho, Wo):
    """BN1-apply + ReLU + conv2 (3x3, stride 1) + partial BN2 stats."""
    Wp2 = Wo + 2
    M = Ho * Wp2

    def body(y1_ref, ab1_ref, w2_ref, y2_ref, s2_ref):
        cout_p = y2_ref.shape[-1]
        scale = ab1_ref[0:1, :].reshape(1, 1, cout_p)
        shift = ab1_ref[1:2, :].reshape(1, 1, cout_p)
        act = jnp.maximum(y1_ref[0].astype(jnp.float32) * scale + shift, 0.0)
        act = act.astype(jnp.bfloat16)                 # single (hoisted) bf16 cast

        # 1-px zero-padded activation built as a value (no border ref-stores), then flat so
        # each tap is a constant row offset.  2 extra bottom rows keep all offsets in range.
        zc = jnp.zeros((Ho, 1, cout_p), jnp.bfloat16)
        mid = jnp.concatenate([zc, act, zc], axis=1)                   # (Ho, Wp2, C)
        ztop = jnp.zeros((1, Wp2, cout_p), jnp.bfloat16)
        zbot = jnp.zeros((2, Wp2, cout_p), jnp.bfloat16)
        flat = jnp.concatenate([ztop, mid, zbot], axis=0).reshape((Ho + 3) * Wp2, cout_p)

        taps = [flat[dy * Wp2 + dx: dy * Wp2 + dx + M, :]
                for dy in range(3) for dx in range(3)]
        xcat = jnp.concatenate(taps, axis=-1)                          # (M, 9*cout_p)
        acc = jnp.dot(xcat, w2_ref[...], preferred_element_type=jnp.float32)

        valid = acc.reshape(Ho, Wp2, cout_p)[:, :Wo, :]
        s, q = _partial_sums(valid)
        s2_ref[0, 0:1, :] = s
        s2_ref[0, 1:2, :] = q
        y2_ref[0] = valid.astype(jnp.bfloat16)
    return body


def _make_residual_kernel(bn_identity):
    """BN2-apply (+ BN_d-apply on the downsample branch) + residual add."""
    def body(y2_ref, id_ref, *rest):
        if bn_identity:
            ab2_ref, abd_ref, o_ref = rest
        else:
            ab2_ref, o_ref = rest
        cout_p = o_ref.shape[-1]
        s2 = ab2_ref[0:1, :].reshape(1, 1, cout_p)
        h2 = ab2_ref[1:2, :].reshape(1, 1, cout_p)
        main = y2_ref[0].astype(jnp.float32) * s2 + h2
        if bn_identity:
            sd = abd_ref[0:1, :].reshape(1, 1, cout_p)
            hd = abd_ref[1:2, :].reshape(1, 1, cout_p)
            ident = id_ref[0].astype(jnp.float32) * sd + hd
        else:
            ident = id_ref[0].astype(jnp.float32)
        o_ref[0] = main + ident
    return body


# ---------------------------------------------------------------------------
# BasicBlock forward
# ---------------------------------------------------------------------------
@functools.partial(jax.jit, static_argnames=("stride",))
def basic_block_forward(x_nchw, params, *, stride):
    N, Cin, H, W = x_nchw.shape
    Cout = params["w1"].shape[0]
    cin_p = _round_up(Cin, LANE)
    cout_p = _round_up(Cout, LANE)
    has_ds = (stride != 1) or (Cin != Cout)

    Ho = (H - 1) // stride + 1
    Wo = (W - 1) // stride + 1
    P = stride * stride
    count = float(N * Ho * Wo)

    # NHWC, lane-padded channels, bf16 MXU operands, conv pad, stride-phase split + flatten.
    # TODO(synk): keep this layout between blocks in a full network (one-time NCHW glue).
    x_nhwc = jnp.transpose(x_nchw, (0, 2, 3, 1)).astype(jnp.float32)
    x_lanes = _pad_axis(x_nhwc, 3, cin_p).astype(jnp.bfloat16)
    xp = jnp.pad(x_lanes, ((0, 0), (1, 1), (1, 1), (0, 0)))             # conv pad = 1
    phases, Wph = _phase_split_flat(xp, stride, Ho, Wo)                 # (N*P, M_pad, cin_p)
    M_pad = phases.shape[1]

    w1 = _w3x3_to_cat(params["w1"], cin_p, cout_p)
    w2 = _w3x3_to_cat(params["w2"], cout_p, cout_p)
    g1 = _pad_axis(params["g1"].astype(jnp.float32), 0, cout_p)
    b1 = _pad_axis(params["be1"].astype(jnp.float32), 0, cout_p)
    g2 = _pad_axis(params["g2"].astype(jnp.float32), 0, cout_p)
    b2 = _pad_axis(params["be2"].astype(jnp.float32), 0, cout_p)

    cparams = pltpu.CompilerParams(
        dimension_semantics=("parallel",),   # per-image axis -> shards across TCs
        vmem_limit_bytes=32 * 1024 * 1024,   # per-step blocks are small; fits v7x's 64 MiB
    )

    def const_spec(shape):
        zeros = (0,) * len(shape)
        return pl.BlockSpec(shape, lambda n: zeros)

    def per_image_spec(shape):
        rest = (0,) * (len(shape) - 1)
        return pl.BlockSpec((1,) + tuple(shape[1:]), lambda n: (n,) + rest)

    phases_spec = pl.BlockSpec((P, M_pad, cin_p), lambda n: (n, 0, 0))

    y_shape = (N, Ho, Wo, cout_p)
    st_shape = (N, 2, cout_p)

    # ---- kernel 1: conv1 (+ fused downsample conv) + partial BN stats --------
    if has_ds:
        wd = _w1x1_to_mat(params["wd"], cin_p, cout_p)
        y1, idp, s1, sd = pl.pallas_call(
            _make_conv1_kernel(stride, Ho, Wo, Wph, True),
            grid=(N,),
            in_specs=[phases_spec, const_spec(w1.shape), const_spec(wd.shape)],
            out_specs=(per_image_spec(y_shape), per_image_spec(y_shape),
                       per_image_spec(st_shape), per_image_spec(st_shape)),
            out_shape=(jax.ShapeDtypeStruct(y_shape, jnp.bfloat16),
                       jax.ShapeDtypeStruct(y_shape, jnp.bfloat16),
                       jax.ShapeDtypeStruct(st_shape, jnp.float32),
                       jax.ShapeDtypeStruct(st_shape, jnp.float32)),
            compiler_params=cparams,
        )(phases, w1, wd)
        gd = _pad_axis(params["gd"].astype(jnp.float32), 0, cout_p)
        bd = _pad_axis(params["bed"].astype(jnp.float32), 0, cout_p)
        ab_d = _bn_scale_shift(sd, gd, bd, count)
    else:
        y1, s1 = pl.pallas_call(
            _make_conv1_kernel(stride, Ho, Wo, Wph, False),
            grid=(N,),
            in_specs=[phases_spec, const_spec(w1.shape)],
            out_specs=(per_image_spec(y_shape), per_image_spec(st_shape)),
            out_shape=(jax.ShapeDtypeStruct(y_shape, jnp.bfloat16),
                       jax.ShapeDtypeStruct(st_shape, jnp.float32)),
            compiler_params=cparams,
        )(phases, w1)

    ab1 = _bn_scale_shift(s1, g1, b1, count)               # (2, cout_p): [scale; shift]

    # ---- kernel 2: BN1-apply + ReLU + conv2 + partial BN2 stats --------------
    y2, s2 = pl.pallas_call(
        _make_conv2_kernel(Ho, Wo),
        grid=(N,),
        in_specs=[per_image_spec(y_shape), const_spec(ab1.shape), const_spec(w2.shape)],
        out_specs=(per_image_spec(y_shape), per_image_spec(st_shape)),
        out_shape=(jax.ShapeDtypeStruct(y_shape, jnp.bfloat16),
                   jax.ShapeDtypeStruct(st_shape, jnp.float32)),
        compiler_params=cparams,
    )(y1, ab1, w2)

    ab2 = _bn_scale_shift(s2, g2, b2, count)

    # ---- kernel 3: BN2-apply (+ BN_d-apply) + residual add --------------------
    # TODO(synk): when chaining blocks, alias/fold this elementwise pass into the next
    #             block's conv1 kernel and emit bf16 to halve its HBM traffic.
    if has_ds:
        out = pl.pallas_call(
            _make_residual_kernel(True),
            grid=(N,),
            in_specs=[per_image_spec(y_shape), per_image_spec(y_shape),
                      const_spec(ab2.shape), const_spec(ab_d.shape)],
            out_specs=per_image_spec(y_shape),
            out_shape=jax.ShapeDtypeStruct(y_shape, jnp.float32),
            compiler_params=cparams,
        )(y2, idp, ab2, ab_d)
    else:
        ident = _pad_axis(x_nhwc, 3, cout_p)               # raw identity (f32), H==Ho, W==Wo
        out = pl.pallas_call(
            _make_residual_kernel(False),
            grid=(N,),
            in_specs=[per_image_spec(y_shape), per_image_spec(y_shape),
                      const_spec(ab2.shape)],
            out_specs=per_image_spec(y_shape),
            out_shape=jax.ShapeDtypeStruct(y_shape, jnp.float32),
            compiler_params=cparams,
        )(y2, ident, ab2)

    out = out[:, :, :, :Cout]
    return jnp.transpose(out, (0, 3, 1, 2))                # back to NCHW


# ---------------------------------------------------------------------------
# Reference (lax.conv; same bf16-operand / f32-accumulate precision policy)
# ---------------------------------------------------------------------------
def _ref_forward(x, p, stride):
    cb = lambda a: a.astype(jnp.bfloat16)

    def conv(inp, w, s, pad):
        return jax.lax.conv_general_dilated(
            cb(inp), cb(w), (s, s), [(pad, pad), (pad, pad)],
            dimension_numbers=("NCHW", "OIHW", "NCHW"),
            preferred_element_type=jnp.float32)

    def bn(y, g, b):
        m = jnp.mean(y, axis=(0, 2, 3), keepdims=True)
        v = jnp.mean((y - m) ** 2, axis=(0, 2, 3), keepdims=True)
        return (y - m) * jax.lax.rsqrt(v + EPS) * g.reshape(1, -1, 1, 1) + b.reshape(1, -1, 1, 1)

    cin, cout = x.shape[1], p["w1"].shape[0]
    a = jnp.maximum(bn(conv(x, p["w1"], stride, 1), p["g1"], p["be1"]), 0.0)
    y = bn(conv(a, p["w2"], 1, 1), p["g2"], p["be2"])
    if stride != 1 or cin != cout:
        ident = bn(conv(x, p["wd"], stride, 0), p["gd"], p["bed"])
    else:
        ident = x
    return y + ident


# ---------------------------------------------------------------------------
if __name__ == "__main__":
    key = jax.random.PRNGKey(0)
    ks = jax.random.split(key, 12)

    # --- Config A: stride-2, channel expansion (downsample branch active) ---
    N, Cin, H, W, Cout, stride = 2, 4, 16, 16, 8, 2
    params = {
        "w1": 0.1 * jax.random.normal(ks[0], (Cout, Cin, 3, 3), jnp.float32),
        "g1": jnp.ones((Cout,), jnp.float32),
        "be1": jnp.zeros((Cout,), jnp.float32),
        "w2": 0.1 * jax.random.normal(ks[1], (Cout, Cout, 3, 3), jnp.float32),
        "g2": 1.0 + 0.05 * jax.random.normal(ks[2], (Cout,), jnp.float32),
        "be2": 0.05 * jax.random.normal(ks[3], (Cout,), jnp.float32),
        "wd": 0.1 * jax.random.normal(ks[4], (Cout, Cin, 1, 1), jnp.float32),
        "gd": jnp.ones((Cout,), jnp.float32),
        "bed": jnp.zeros((Cout,), jnp.float32),
    }
    x = jax.random.normal(ks[5], (N, Cin, H, W), jnp.float32)

    out = jax.block_until_ready(basic_block_forward(x, params, stride=stride))
    ref = jax.block_until_ready(_ref_forward(x, params, stride))
    assert out.shape == (N, Cout, H // stride, W // stride), out.shape
    err = float(jnp.max(jnp.abs(out - ref)))
    assert jnp.allclose(out, ref, rtol=2e-2, atol=2e-2), err

    # --- Config B: stride-1, same channels (identity shortcut, no downsample) ---
    Cin2 = Cout2 = 8
    params2 = {
        "w1": 0.1 * jax.random.normal(ks[6], (Cout2, Cin2, 3, 3), jnp.float32),
        "g1": 1.0 + 0.05 * jax.random.normal(ks[7], (Cout2,), jnp.float32),
        "be1": 0.05 * jax.random.normal(ks[8], (Cout2,), jnp.float32),
        "w2": 0.1 * jax.random.normal(ks[9], (Cout2, Cout2, 3, 3), jnp.float32),
        "g2": jnp.ones((Cout2,), jnp.float32),
        "be2": jnp.zeros((Cout2,), jnp.float32),
    }
    x2 = jax.random.normal(ks[10], (N, Cin2, H, W), jnp.float32)

    out2 = jax.block_until_ready(basic_block_forward(x2, params2, stride=1))
    ref2 = jax.block_until_ready(_ref_forward(x2, params2, 1))
    assert out2.shape == (N, Cout2, H, W), out2.shape
    err2 = float(jnp.max(jnp.abs(out2 - ref2)))
    assert jnp.allclose(out2, ref2, rtol=2e-2, atol=2e-2), err2

    print("KERNEL_OK")
</pallas_src>

<mosaic_0001>
module attributes {stable_mosaic.version = 11 : i64} {
  func.func @body(%arg0: i32, %arg1: memref<4x88x128xbf16, #tpu.memory_space<vmem>>, %arg2: memref<1152x128xbf16, #tpu.memory_space<vmem>>, %arg3: memref<128x128xbf16, #tpu.memory_space<vmem>>, %arg4: memref<1x8x8x128xbf16, #tpu.memory_space<vmem>>, %arg5: memref<1x8x8x128xbf16, #tpu.memory_space<vmem>>, %arg6: memref<1x2x128xf32, #tpu.memory_space<vmem>>, %arg7: memref<1x2x128xf32, #tpu.memory_space<vmem>>) attributes {dimension_semantics = [#tpu.dimension_semantics<parallel>], iteration_bounds = array<i64: 2>, scalar_prefetch = 0 : i64, scratch_operands = 0 : i64, tpu.core_type = #tpu.core_type<tc>, window_params = [{transform_indices = @transform_0, window_bounds = array<i64: 4, 88, 128>}, {pipeline_mode = #tpu.pipeline_mode<synchronous>, transform_indices = @transform_1, window_bounds = array<i64: 1152, 128>}, {pipeline_mode = #tpu.pipeline_mode<synchronous>, transform_indices = @transform_2, window_bounds = array<i64: 128, 128>}, {transform_indices = @transform_3, window_bounds = array<i64: 1, 8, 8, 128>}, {transform_indices = @transform_4, window_bounds = array<i64: 1, 8, 8, 128>}, {transform_indices = @transform_5, window_bounds = array<i64: 1, 2, 128>}, {transform_indices = @transform_6, window_bounds = array<i64: 1, 2, 128>}]} {
    %c0 = arith.constant 0 : index
    %c0_0 = arith.constant 0 : index
    %c0_1 = arith.constant 0 : index
    %0 = vector.load %arg1[%c0, %c0_0, %c0_1] : memref<4x88x128xbf16, #tpu.memory_space<vmem>>, vector<4x88x128xbf16>
    %1 = vector.extract_strided_slice %0 {offsets = [0, 0, 0], sizes = [1, 72, 128], strides = [1, 1, 1]} : vector<4x88x128xbf16> to vector<1x72x128xbf16>
    %2 = vector.shape_cast %1 : vector<1x72x128xbf16> to vector<72x128xbf16>
    %3 = vector.extract_strided_slice %0 {offsets = [1, 0, 0], sizes = [1, 72, 128], strides = [1, 1, 1]} : vector<4x88x128xbf16> to vector<1x72x128xbf16>
    %4 = vector.shape_cast %3 : vector<1x72x128xbf16> to vector<72x128xbf16>
    %5 = vector.extract_strided_slice %0 {offsets = [0, 1, 0], sizes = [1, 72, 128], strides = [1, 1, 1]} : vector<4x88x128xbf16> to vector<1x72x128xbf16>
    %6 = vector.shape_cast %5 : vector<1x72x128xbf16> to vector<72x128xbf16>
    %7 = vector.extract_strided_slice %0 {offsets = [2, 0, 0], sizes = [1, 72, 128], strides = [1, 1, 1]} : vector<4x88x128xbf16> to vector<1x72x128xbf16>
    %8 = vector.shape_cast %7 : vector<1x72x128xbf16> to vector<72x128xbf16>
    %9 = vector.extract_strided_slice %0 {offsets = [3, 0, 0], sizes = [1, 72, 128], strides = [1, 1, 1]} : vector<4x88x128xbf16> to vector<1x72x128xbf16>
    %10 = vector.shape_cast %9 : vector<1x72x128xbf16> to vector<72x128xbf16>
    %11 = vector.extract_strided_slice %0 {offsets = [2, 1, 0], sizes = [1, 72, 128], strides = [1, 1, 1]} : vector<4x88x128xbf16> to vector<1x72x128xbf16>
    %12 = vector.shape_cast %11 : vector<1x72x128xbf16> to vector<72x128xbf16>
    %13 = vector.extract_strided_slice %0 {offsets = [0, 9, 0], sizes = [1, 72, 128], strides = [1, 1, 1]} : vector<4x88x128xbf16> to vector<1x72x128xbf16>
    %14 = vector.shape_cast %13 : vector<1x72x128xbf16> to vector<72x128xbf16>
    %15 = vector.extract_strided_slice %0 {offsets = [1, 9, 0], sizes = [1, 72, 128], strides = [1, 1, 1]} : vector<4x88x128xbf16> to vector<1x72x128xbf16>
    %16 = vector.shape_cast %15 : vector<1x72x128xbf16> to vector<72x128xbf16>
    %17 = vector.extract_strided_slice %0 {offsets = [0, 10, 0], sizes = [1, 72, 128], strides = [1, 1, 1]} : vector<4x88x128xbf16> to vector<1x72x128xbf16>
    %18 = vector.shape_cast %17 : vector<1x72x128xbf16> to vector<72x128xbf16>
    %19 = tpu.concatenate %2, %4, %6, %8, %10, %12, %14, %16, %18 in 1 : vector<72x128xbf16>, vector<72x128xbf16>, vector<72x128xbf16>, vector<72x128xbf16>, vector<72x128xbf16>, vector<72x128xbf16>, vector<72x128xbf16>, vector<72x128xbf16>, vector<72x128xbf16> -> vector<72x1152xbf16>
    %c0_2 = arith.constant 0 : index
    %c0_3 = arith.constant 0 : index
    %20 = vector.load %arg2[%c0_2, %c0_3] : memref<1152x128xbf16, #tpu.memory_space<vmem>>, vector<1152x128xbf16>
    %cst = arith.constant dense<0.000000e+00> : vector<72x128xf32>
    %21 = tpu.matmul %19, %20, %cst {dimension_numbers = #tpu.dot_dimension_numbers<[1], [0], [0], [1], [0, 0, 1, 1], [], []>} : vector<72x1152xbf16>, vector<1152x128xbf16>, vector<72x128xf32> -> vector<72x128xf32>
    %22 = vector.shape_cast %21 : vector<72x128xf32> to vector<8x9x128xf32>
    %23 = vector.extract_strided_slice %22 {offsets = [0, 0, 0], sizes = [8, 8, 128], strides = [1, 1, 1]} : vector<8x9x128xf32> to vector<8x8x128xf32>
    %cst_4 = arith.constant dense<0.000000e+00> : vector<8x128xf32>
    %24 = vector.multi_reduction <add>, %23, %cst_4 [0] : vector<8x8x128xf32> to vector<8x128xf32>
    %cst_5 = arith.constant dense<0.000000e+00> : vector<128xf32>
    %25 = vector.multi_reduction <add>, %24, %cst_5 [0] : vector<8x128xf32> to vector<128xf32>
    %26 = vector.shape_cast %25 : vector<128xf32> to vector<1x128xf32>
    %27 = arith.mulf %23, %23 : vector<8x8x128xf32>
    %cst_6 = arith.constant dense<0.000000e+00> : vector<8x128xf32>
    %28 = vector.multi_reduction <add>, %27, %cst_6 [0] : vector<8x8x128xf32> to vector<8x128xf32>
    %cst_7 = arith.constant dense<0.000000e+00> : vector<128xf32>
    %29 = vector.multi_reduction <add>, %28, %cst_7 [0] : vector<8x128xf32> to vector<128xf32>
    %30 = vector.shape_cast %29 : vector<128xf32> to vector<1x128xf32>
    %c0_8 = arith.constant 0 : index
    %c0_9 = arith.constant 0 : index
    %c0_10 = arith.constant 0 : index
    %31 = vector.load %arg6[%c0_8, %c0_9, %c0_10] : memref<1x2x128xf32, #tpu.memory_space<vmem>>, vector<1x1x128xf32>
    %32 = vector.shape_cast %31 : vector<1x1x128xf32> to vector<1x128xf32>
    %33 = vector.shape_cast %26 : vector<1x128xf32> to vector<1x1x128xf32>
    tpu.vector_store %arg6[%c0_8, %c0_9, %c0_10], %33 {strides = array<i32>} : memref<1x2x128xf32, #tpu.memory_space<vmem>>, vector<1x1x128xf32>,
    %c0_11 = arith.constant 0 : index
    %c1 = arith.constant 1 : index
    %c0_12 = arith.constant 0 : index
    %34 = vector.load %arg6[%c0_11, %c1, %c0_12] : memref<1x2x128xf32, #tpu.memory_space<vmem>>, vector<1x1x128xf32>
    %35 = vector.shape_cast %34 : vector<1x1x128xf32> to vector<1x128xf32>
    %36 = vector.shape_cast %30 : vector<1x128xf32> to vector<1x1x128xf32>
    tpu.vector_store %arg6[%c0_11, %c1, %c0_12], %36 {strides = array<i32>} : memref<1x2x128xf32, #tpu.memory_space<vmem>>, vector<1x1x128xf32>,
    %37 = arith.truncf %23 : vector<8x8x128xf32> to vector<8x8x128xbf16>
    %c0_13 = arith.constant 0 : index
    %c0_14 = arith.constant 0 : index
    %c0_15 = arith.constant 0 : index
    %c0_16 = arith.constant 0 : index
    %38 = vector.load %arg4[%c0_13, %c0_14, %c0_15, %c0_16] : memref<1x8x8x128xbf16, #tpu.memory_space<vmem>>, vector<1x8x8x128xbf16>
    %39 = vector.shape_cast %38 : vector<1x8x8x128xbf16> to vector<8x8x128xbf16>
    %40 = vector.shape_cast %37 : vector<8x8x128xbf16> to vector<1x8x8x128xbf16>
    tpu.vector_store %arg4[%c0_13, %c0_14, %c0_15, %c0_16], %40 {strides = array<i32>} : memref<1x8x8x128xbf16, #tpu.memory_space<vmem>>, vector<1x8x8x128xbf16>,
    %41 = vector.extract_strided_slice %0 {offsets = [3, 0, 0], sizes = [1, 72, 128], strides = [1, 1, 1]} : vector<4x88x128xbf16> to vector<1x72x128xbf16>
    %42 = vector.shape_cast %41 : vector<1x72x128xbf16> to vector<72x128xbf16>
    %c0_17 = arith.constant 0 : index
    %c0_18 = arith.constant 0 : index
    %43 = vector.load %arg3[%c0_17, %c0_18] : memref<128x128xbf16, #tpu.memory_space<vmem>>, vector<128x128xbf16>
    %cst_19 = arith.constant dense<0.000000e+00> : vector<72x128xf32>
    %44 = tpu.matmul %42, %43, %cst_19 {dimension_numbers = #tpu.dot_dimension_numbers<[1], [0], [0], [1], [0, 0, 1, 1], [], []>} : vector<72x128xbf16>, vector<128x128xbf16>, vector<72x128xf32> -> vector<72x128xf32>
    %45 = vector.shape_cast %44 : vector<72x128xf32> to vector<8x9x128xf32>
    %46 = vector.extract_strided_slice %45 {offsets = [0, 0, 0], sizes = [8, 8, 128], strides = [1, 1, 1]} : vector<8x9x128xf32> to vector<8x8x128xf32>
    %cst_20 = arith.constant dense<0.000000e+00> : vector<8x128xf32>
    %47 = vector.multi_reduction <add>, %46, %cst_20 [0] : vector<8x8x128xf32> to vector<8x128xf32>
    %cst_21 = arith.constant dense<0.000000e+00> : vector<128xf32>
    %48 = vector.multi_reduction <add>, %47, %cst_21 [0] : vector<8x128xf32> to vector<128xf32>
    %49 = vector.shape_cast %48 : vector<128xf32> to vector<1x128xf32>
    %50 = arith.mulf %46, %46 : vector<8x8x128xf32>
    %cst_22 = arith.constant dense<0.000000e+00> : vector<8x128xf32>
    %51 = vector.multi_reduction <add>, %50, %cst_22 [0] : vector<8x8x128xf32> to vector<8x128xf32>
    %cst_23 = arith.constant dense<0.000000e+00> : vector<128xf32>
    %52 = vector.multi_reduction <add>, %51, %cst_23 [0] : vector<8x128xf32> to vector<128xf32>
    %53 = vector.shape_cast %52 : vector<128xf32> to vector<1x128xf32>
    %c0_24 = arith.constant 0 : index
    %c0_25 = arith.constant 0 : index
    %c0_26 = arith.constant 0 : index
    %54 = vector.load %arg7[%c0_24, %c0_25, %c0_26] : memref<1x2x128xf32, #tpu.memory_space<vmem>>, vector<1x1x128xf32>
    %55 = vector.shape_cast %54 : vector<1x1x128xf32> to vector<1x128xf32>
    %56 = vector.shape_cast %49 : vector<1x128xf32> to vector<1x1x128xf32>
    tpu.vector_store %arg7[%c0_24, %c0_25, %c0_26], %56 {strides = array<i32>} : memref<1x2x128xf32, #tpu.memory_space<vmem>>, vector<1x1x128xf32>,
    %c0_27 = arith.constant 0 : index
    %c1_28 = arith.constant 1 : index
    %c0_29 = arith.constant 0 : index
    %57 = vector.load %arg7[%c0_27, %c1_28, %c0_29] : memref<1x2x128xf32, #tpu.memory_space<vmem>>, vector<1x1x128xf32>
    %58 = vector.shape_cast %57 : vector<1x1x128xf32> to vector<1x128xf32>
    %59 = vector.shape_cast %53 : vector<1x128xf32> to vector<1x1x128xf32>
    tpu.vector_store %arg7[%c0_27, %c1_28, %c0_29], %59 {strides = array<i32>} : memref<1x2x128xf32, #tpu.memory_space<vmem>>, vector<1x1x128xf32>,
    %60 = arith.truncf %46 : vector<8x8x128xf32> to vector<8x8x128xbf16>
    %c0_30 = arith.constant 0 : index
    %c0_31 = arith.constant 0 : index
    %c0_32 = arith.constant 0 : index
    %c0_33 = arith.constant 0 : index
    %61 = vector.load %arg5[%c0_30, %c0_31, %c0_32, %c0_33] : memref<1x8x8x128xbf16, #tpu.memory_space<vmem>>, vector<1x8x8x128xbf16>
    %62 = vector.shape_cast %61 : vector<1x8x8x128xbf16> to vector<8x8x128xbf16>
    %63 = vector.shape_cast %60 : vector<8x8x128xbf16> to vector<1x8x8x128xbf16>
    tpu.vector_store %arg5[%c0_30, %c0_31, %c0_32, %c0_33], %63 {strides = array<i32>} : memref<1x8x8x128xbf16, #tpu.memory_space<vmem>>, vector<1x8x8x128xbf16>,
    return
  }
  func.func @transform_0(%arg0: i32) -> (i32, i32, i32) {
    %c0_i32 = arith.constant 0 : i32
    %c0_i32_0 = arith.constant 0 : i32
    %c0_i32_1 = arith.constant 0 : i32
    return %arg0, %c0_i32, %c0_i32_0 : i32, i32, i32
  }
  func.func @transform_1(%arg0: i32) -> (i32, i32) {
    %c0_i32 = arith.constant 0 : i32
    %c0_i32_0 = arith.constant 0 : i32
    %c0_i32_1 = arith.constant 0 : i32
    return %c0_i32, %c0_i32_0 : i32, i32
  }
  func.func @transform_2(%arg0: i32) -> (i32, i32) {
    %c0_i32 = arith.constant 0 : i32
    %c0_i32_0 = arith.constant 0 : i32
    %c0_i32_1 = arith.constant 0 : i32
    return %c0_i32, %c0_i32_0 : i32, i32
  }
  func.func @transform_3(%arg0: i32) -> (i32, i32, i32, i32) {
    %c0_i32 = arith.constant 0 : i32
    %c0_i32_0 = arith.constant 0 : i32
    %c0_i32_1 = arith.constant 0 : i32
    %c0_i32_2 = arith.constant 0 : i32
    return %arg0, %c0_i32, %c0_i32_0, %c0_i32_1 : i32, i32, i32, i32
  }
  func.func @transform_4(%arg0: i32) -> (i32, i32, i32, i32) {
    %c0_i32 = arith.constant 0 : i32
    %c0_i32_0 = arith.constant 0 : i32
    %c0_i32_1 = arith.constant 0 : i32
    %c0_i32_2 = arith.constant 0 : i32
    return %arg0, %c0_i32, %c0_i32_0, %c0_i32_1 : i32, i32, i32, i32
  }
  func.func @transform_5(%arg0: i32) -> (i32, i32, i32) {
    %c0_i32 = arith.constant 0 : i32
    %c0_i32_0 = arith.constant 0 : i32
    %c0_i32_1 = arith.constant 0 : i32
    return %arg0, %c0_i32, %c0_i32_0 : i32, i32, i32
  }
  func.func @transform_6(%arg0: i32) -> (i32, i32, i32) {
    %c0_i32 = arith.constant 0 : i32
    %c0_i32_0 = arith.constant 0 : i32
    %c0_i32_1 = arith.constant 0 : i32
    return %arg0, %c0_i32, %c0_i32_0 : i32, i32, i32
  }
}

module attributes {stable_mosaic.version = 11 : i64} {
  func.func @body(%arg0: i32, %arg1: memref<1x8x8x128xbf16, #tpu.memory_space<vmem>>, %arg2: memref<2x128xf32, #tpu.memory_space<vmem>>, %arg3: memref<1152x128xbf16, #tpu.memory_space<vmem>>, %arg4: memref<1x8x8x128xbf16, #tpu.memory_space<vmem>>, %arg5: memref<1x2x128xf32, #tpu.memory_space<vmem>>) attributes {dimension_semantics = [#tpu.dimension_semantics<parallel>], iteration_bounds = array<i64: 2>, scalar_prefetch = 0 : i64, scratch_operands = 0 : i64, tpu.core_type = #tpu.core_type<tc>, window_params = [{transform_indices = @transform_0, window_bounds = array<i64: 1, 8, 8, 128>}, {pipeline_mode = #tpu.pipeline_mode<synchronous>, transform_indices = @transform_1, window_bounds = array<i64: 2, 128>}, {pipeline_mode = #tpu.pipeline_mode<synchronous>, transform_indices = @transform_2, window_bounds = array<i64: 1152, 128>}, {transform_indices = @transform_3, window_bounds = array<i64: 1, 8, 8, 128>}, {transform_indices = @transform_4, window_bounds = array<i64: 1, 2, 128>}]} {
    %c0 = arith.constant 0 : index
    %c0_0 = arith.constant 0 : index
    %0 = vector.load %arg2[%c0, %c0_0] : memref<2x128xf32, #tpu.memory_space<vmem>>, vector<1x128xf32>
    %1 = vector.shape_cast %0 : vector<1x128xf32> to vector<1x1x128xf32>
    %c1 = arith.constant 1 : index
    %c0_1 = arith.constant 0 : index
    %2 = vector.load %arg2[%c1, %c0_1] : memref<2x128xf32, #tpu.memory_space<vmem>>, vector<1x128xf32>
    %3 = vector.shape_cast %2 : vector<1x128xf32> to vector<1x1x128xf32>
    %c0_2 = arith.constant 0 : index
    %c0_3 = arith.constant 0 : index
    %c0_4 = arith.constant 0 : index
    %c0_5 = arith.constant 0 : index
    %4 = vector.load %arg1[%c0_2, %c0_3, %c0_4, %c0_5] : memref<1x8x8x128xbf16, #tpu.memory_space<vmem>>, vector<1x8x8x128xbf16>
    %5 = vector.shape_cast %4 : vector<1x8x8x128xbf16> to vector<8x8x128xbf16>
    %6 = arith.extf %5 : vector<8x8x128xbf16> to vector<8x8x128xf32>
    %7 = vector.broadcast %1 : vector<1x1x128xf32> to vector<8x8x128xf32>
    %8 = arith.mulf %6, %7 : vector<8x8x128xf32>
    %9 = vector.broadcast %3 : vector<1x1x128xf32> to vector<8x8x128xf32>
    %10 = arith.addf %8, %9 : vector<8x8x128xf32>
    %cst = arith.constant 0.000000e+00 : f32
    %11 = vector.broadcast %cst : f32 to vector<8x8x128xf32>
    %12 = arith.maximumf %10, %11 : vector<8x8x128xf32>
    %13 = arith.truncf %12 : vector<8x8x128xf32> to vector<8x8x128xbf16>
    %cst_6 = arith.constant 0.000000e+00 : bf16
    %14 = vector.broadcast %cst_6 : bf16 to vector<8x1x128xbf16>
    %15 = tpu.concatenate %14, %13, %14 in 1 : vector<8x1x128xbf16>, vector<8x8x128xbf16>, vector<8x1x128xbf16> -> vector<8x10x128xbf16>
    %cst_7 = arith.constant 0.000000e+00 : bf16
    %16 = vector.broadcast %cst_7 : bf16 to vector<1x10x128xbf16>
    %cst_8 = arith.constant 0.000000e+00 : bf16
    %17 = vector.broadcast %cst_8 : bf16 to vector<2x10x128xbf16>
    %18 = tpu.concatenate %16, %15, %17 in 0 : vector<1x10x128xbf16>, vector<8x10x128xbf16>, vector<2x10x128xbf16> -> vector<11x10x128xbf16>
    %19 = vector.shape_cast %18 : vector<11x10x128xbf16> to vector<110x128xbf16>
    %20 = vector.extract_strided_slice %19 {offsets = [0, 0], sizes = [80, 128], strides = [1, 1]} : vector<110x128xbf16> to vector<80x128xbf16>
    %21 = vector.extract_strided_slice %19 {offsets = [1, 0], sizes = [80, 128], strides = [1, 1]} : vector<110x128xbf16> to vector<80x128xbf16>
    %22 = vector.extract_strided_slice %19 {offsets = [2, 0], sizes = [80, 128], strides = [1, 1]} : vector<110x128xbf16> to vector<80x128xbf16>
    %23 = vector.extract_strided_slice %19 {offsets = [10, 0], sizes = [80, 128], strides = [1, 1]} : vector<110x128xbf16> to vector<80x128xbf16>
    %24 = vector.extract_strided_slice %19 {offsets = [11, 0], sizes = [80, 128], strides = [1, 1]} : vector<110x128xbf16> to vector<80x128xbf16>
    %25 = vector.extract_strided_slice %19 {offsets = [12, 0], sizes = [80, 128], strides = [1, 1]} : vector<110x128xbf16> to vector<80x128xbf16>
    %26 = vector.extract_strided_slice %19 {offsets = [20, 0], sizes = [80, 128], strides = [1, 1]} : vector<110x128xbf16> to vector<80x128xbf16>
    %27 = vector.extract_strided_slice %19 {offsets = [21, 0], sizes = [80, 128], strides = [1, 1]} : vector<110x128xbf16> to vector<80x128xbf16>
    %28 = vector.extract_strided_slice %19 {offsets = [22, 0], sizes = [80, 128], strides = [1, 1]} : vector<110x128xbf16> to vector<80x128xbf16>
    %29 = tpu.concatenate %20, %21, %22, %23, %24, %25, %26, %27, %28 in 1 : vector<80x128xbf16>, vector<80x128xbf16>, vector<80x128xbf16>, vector<80x128xbf16>, vector<80x128xbf16>, vector<80x128xbf16>, vector<80x128xbf16>, vector<80x128xbf16>, vector<80x128xbf16> -> vector<80x1152xbf16>
    %c0_9 = arith.constant 0 : index
    %c0_10 = arith.constant 0 : index
    %30 = vector.load %arg3[%c0_9, %c0_10] : memref<1152x128xbf16, #tpu.memory_space<vmem>>, vector<1152x128xbf16>
    %cst_11 = arith.constant dense<0.000000e+00> : vector<80x128xf32>
    %31 = tpu.matmul %29, %30, %cst_11 {dimension_numbers = #tpu.dot_dimension_numbers<[1], [0], [0], [1], [0, 0, 1, 1], [], []>} : vector<80x1152xbf16>, vector<1152x128xbf16>, vector<80x128xf32> -> vector<80x128xf32>
    %32 = vector.shape_cast %31 : vector<80x128xf32> to vector<8x10x128xf32>
    %33 = vector.extract_strided_slice %32 {offsets = [0, 0, 0], sizes = [8, 8, 128], strides = [1, 1, 1]} : vector<8x10x128xf32> to vector<8x8x128xf32>
    %cst_12 = arith.constant dense<0.000000e+00> : vector<8x128xf32>
    %34 = vector.multi_reduction <add>, %33, %cst_12 [0] : vector<8x8x128xf32> to vector<8x128xf32>
    %cst_13 = arith.constant dense<0.000000e+00> : vector<128xf32>
    %35 = vector.multi_reduction <add>, %34, %cst_13 [0] : vector<8x128xf32> to vector<128xf32>
    %36 = vector.shape_cast %35 : vector<128xf32> to vector<1x128xf32>
    %37 = arith.mulf %33, %33 : vector<8x8x128xf32>
    %cst_14 = arith.constant dense<0.000000e+00> : vector<8x128xf32>
    %38 = vector.multi_reduction <add>, %37, %cst_14 [0] : vector<8x8x128xf32> to vector<8x128xf32>
    %cst_15 = arith.constant dense<0.000000e+00> : vector<128xf32>
    %39 = vector.multi_reduction <add>, %38, %cst_15 [0] : vector<8x128xf32> to vector<128xf32>
    %40 = vector.shape_cast %39 : vector<128xf32> to vector<1x128xf32>
    %c0_16 = arith.constant 0 : index
    %c0_17 = arith.constant 0 : index
    %c0_18 = arith.constant 0 : index
    %41 = vector.load %arg5[%c0_16, %c0_17, %c0_18] : memref<1x2x128xf32, #tpu.memory_space<vmem>>, vector<1x1x128xf32>
    %42 = vector.shape_cast %41 : vector<1x1x128xf32> to vector<1x128xf32>
    %43 = vector.shape_cast %36 : vector<1x128xf32> to vector<1x1x128xf32>
    tpu.vector_store %arg5[%c0_16, %c0_17, %c0_18], %43 {strides = array<i32>} : memref<1x2x128xf32, #tpu.memory_space<vmem>>, vector<1x1x128xf32>,
    %c0_19 = arith.constant 0 : index
    %c1_20 = arith.constant 1 : index
    %c0_21 = arith.constant 0 : index
    %44 = vector.load %arg5[%c0_19, %c1_20, %c0_21] : memref<1x2x128xf32, #tpu.memory_space<vmem>>, vector<1x1x128xf32>
    %45 = vector.shape_cast %44 : vector<1x1x128xf32> to vector<1x128xf32>
    %46 = vector.shape_cast %40 : vector<1x128xf32> to vector<1x1x128xf32>
    tpu.vector_store %arg5[%c0_19, %c1_20, %c0_21], %46 {strides = array<i32>} : memref<1x2x128xf32, #tpu.memory_space<vmem>>, vector<1x1x128xf32>,
    %47 = arith.truncf %33 : vector<8x8x128xf32> to vector<8x8x128xbf16>
    %c0_22 = arith.constant 0 : index
    %c0_23 = arith.constant 0 : index
    %c0_24 = arith.constant 0 : index
    %c0_25 = arith.constant 0 : index
    %48 = vector.load %arg4[%c0_22, %c0_23, %c0_24, %c0_25] : memref<1x8x8x128xbf16, #tpu.memory_space<vmem>>, vector<1x8x8x128xbf16>
    %49 = vector.shape_cast %48 : vector<1x8x8x128xbf16> to vector<8x8x128xbf16>
    %50 = vector.shape_cast %47 : vector<8x8x128xbf16> to vector<1x8x8x128xbf16>
    tpu.vector_store %arg4[%c0_22, %c0_23, %c0_24, %c0_25], %50 {strides = array<i32>} : memref<1x8x8x128xbf16, #tpu.memory_space<vmem>>, vector<1x8x8x128xbf16>,
    return
  }
  func.func @transform_0(%arg0: i32) -> (i32, i32, i32, i32) {
    %c0_i32 = arith.constant 0 : i32
    %c0_i32_0 = arith.constant 0 : i32
    %c0_i32_1 = arith.constant 0 : i32
    %c0_i32_2 = arith.constant 0 : i32
    return %arg0, %c0_i32, %c0_i32_0, %c0_i32_1 : i32, i32, i32, i32
  }
  func.func @transform_1(%arg0: i32) -> (i32, i32) {
    %c0_i32 = arith.constant 0 : i32
    %c0_i32_0 = arith.constant 0 : i32
    %c0_i32_1 = arith.constant 0 : i32
    return %c0_i32, %c0_i32_0 : i32, i32
  }
  func.func @transform_2(%arg0: i32) -> (i32, i32) {
    %c0_i32 = arith.constant 0 : i32
    %c0_i32_0 = arith.constant 0 : i32
    %c0_i32_1 = arith.constant 0 : i32
    return %c0_i32, %c0_i32_0 : i32, i32
  }
  func.func @transform_3(%arg0: i32) -> (i32, i32, i32, i32) {
    %c0_i32 = arith.constant 0 : i32
    %c0_i32_0 = arith.constant 0 : i32
    %c0_i32_1 = arith.constant 0 : i32
    %c0_i32_2 = arith.constant 0 : i32
    return %arg0, %c0_i32, %c0_i32_0, %c0_i32_1 : i32, i32, i32, i32
  }
  func.func @transform_4(%arg0: i32) -> (i32, i32, i32) {
    %c0_i32 = arith.constant 0 : i32
    %c0_i32_0 = arith.constant 0 : i32
    %c0_i32_1 = arith.constant 0 : i32
    return %arg0, %c0_i32, %c0_i32_0 : i32, i32, i32
  }
}

module attributes {stable_mosaic.version = 11 : i64} {
  func.func @body(%arg0: i32, %arg1: memref<1x8x8x128xbf16, #tpu.memory_space<vmem>>, %arg2: memref<1x8x8x128xbf16, #tpu.memory_space<vmem>>, %arg3: memref<2x128xf32, #tpu.memory_space<vmem>>, %arg4: memref<2x128xf32, #tpu.memory_space<vmem>>, %arg5: memref<1x8x8x128xf32, #tpu.memory_space<vmem>>) attributes {dimension_semantics = [#tpu.dimension_semantics<parallel>], iteration_bounds = array<i64: 2>, scalar_prefetch = 0 : i64, scratch_operands = 0 : i64, tpu.core_type = #tpu.core_type<tc>, window_params = [{transform_indices = @transform_0, window_bounds = array<i64: 1, 8, 8, 128>}, {transform_indices = @transform_1, window_bounds = array<i64: 1, 8, 8, 128>}, {pipeline_mode = #tpu.pipeline_mode<synchronous>, transform_indices = @transform_2, window_bounds = array<i64: 2, 128>}, {pipeline_mode = #tpu.pipeline_mode<synchronous>, transform_indices = @transform_3, window_bounds = array<i64: 2, 128>}, {transform_indices = @transform_4, window_bounds = array<i64: 1, 8, 8, 128>}]} {
    %c0 = arith.constant 0 : index
    %c0_0 = arith.constant 0 : index
    %0 = vector.load %arg3[%c0, %c0_0] : memref<2x128xf32, #tpu.memory_space<vmem>>, vector<1x128xf32>
    %1 = vector.shape_cast %0 : vector<1x128xf32> to vector<1x1x128xf32>
    %c1 = arith.constant 1 : index
    %c0_1 = arith.constant 0 : index
    %2 = vector.load %arg3[%c1, %c0_1] : memref<2x128xf32, #tpu.memory_space<vmem>>, vector<1x128xf32>
    %3 = vector.shape_cast %2 : vector<1x128xf32> to vector<1x1x128xf32>
    %c0_2 = arith.constant 0 : index
    %c0_3 = arith.constant 0 : index
    %c0_4 = arith.constant 0 : index
    %c0_5 = arith.constant 0 : index
    %4 = vector.load %arg1[%c0_2, %c0_3, %c0_4, %c0_5] : memref<1x8x8x128xbf16, #tpu.memory_space<vmem>>, vector<1x8x8x128xbf16>
    %5 = vector.shape_cast %4 : vector<1x8x8x128xbf16> to vector<8x8x128xbf16>
    %6 = arith.extf %5 : vector<8x8x128xbf16> to vector<8x8x128xf32>
    %7 = vector.broadcast %1 : vector<1x1x128xf32> to vector<8x8x128xf32>
    %8 = arith.mulf %6, %7 : vector<8x8x128xf32>
    %9 = vector.broadcast %3 : vector<1x1x128xf32> to vector<8x8x128xf32>
    %10 = arith.addf %8, %9 : vector<8x8x128xf32>
    %c0_6 = arith.constant 0 : index
    %c0_7 = arith.constant 0 : index
    %11 = vector.load %arg4[%c0_6, %c0_7] : memref<2x128xf32, #tpu.memory_space<vmem>>, vector<1x128xf32>
    %12 = vector.shape_cast %11 : vector<1x128xf32> to vector<1x1x128xf32>
    %c1_8 = arith.constant 1 : index
    %c0_9 = arith.constant 0 : index
    %13 = vector.load %arg4[%c1_8, %c0_9] : memref<2x128xf32, #tpu.memory_space<vmem>>, vector<1x128xf32>
    %14 = vector.shape_cast %13 : vector<1x128xf32> to vector<1x1x128xf32>
    %c0_10 = arith.constant 0 : index
    %c0_11 = arith.constant 0 : index
    %c0_12 = arith.constant 0 : index
    %c0_13 = arith.constant 0 : index
    %15 = vector.load %arg2[%c0_10, %c0_11, %c0_12, %c0_13] : memref<1x8x8x128xbf16, #tpu.memory_space<vmem>>, vector<1x8x8x128xbf16>
    %16 = vector.shape_cast %15 : vector<1x8x8x128xbf16> to vector<8x8x128xbf16>
    %17 = arith.extf %16 : vector<8x8x128xbf16> to vector<8x8x128xf32>
    %18 = vector.broadcast %12 : vector<1x1x128xf32> to vector<8x8x128xf32>
    %19 = arith.mulf %17, %18 : vector<8x8x128xf32>
    %20 = vector.broadcast %14 : vector<1x1x128xf32> to vector<8x8x128xf32>
    %21 = arith.addf %19, %20 : vector<8x8x128xf32>
    %22 = arith.addf %10, %21 : vector<8x8x128xf32>
    %c0_14 = arith.constant 0 : index
    %c0_15 = arith.constant 0 : index
    %c0_16 = arith.constant 0 : index
    %c0_17 = arith.constant 0 : index
    %23 = vector.load %arg5[%c0_14, %c0_15, %c0_16, %c0_17] : memref<1x8x8x128xf32, #tpu.memory_space<vmem>>, vector<1x8x8x128xf32>
    %24 = vector.shape_cast %23 : vector<1x8x8x128xf32> to vector<8x8x128xf32>
    %25 = vector.shape_cast %22 : vector<8x8x128xf32> to vector<1x8x8x128xf32>
    tpu.vector_store %arg5[%c0_14, %c0_15, %c0_16, %c0_17], %25 {strides = array<i32>} : memref<1x8x8x128xf32, #tpu.memory_space<vmem>>, vector<1x8x8x128xf32>,
    return
  }
  func.func @transform_0(%arg0: i32) -> (i32, i32, i32, i32) {
    %c0_i32 = arith.constant 0 : i32
    %c0_i32_0 = arith.constant 0 : i32
    %c0_i32_1 = arith.constant 0 : i32
    %c0_i32_2 = arith.constant 0 : i32
    return %arg0, %c0_i32, %c0_i32_0, %c0_i32_1 : i32, i32, i32, i32
  }
  func.func @transform_1(%arg0: i32) -> (i32, i32, i32, i32) {
    %c0_i32 = arith.constant 0 : i32
    %c0_i32_0 = arith.constant 0 : i32
    %c0_i32_1 = arith.constant 0 : i32
    %c0_i32_2 = arith.constant 0 : i32
    return %arg0, %c0_i32, %c0_i32_0, %c0_i32_1 : i32, i32, i32, i32
  }
  func.func @transform_2(%arg0: i32) -> (i32, i32) {
    %c0_i32 = arith.constant 0 : i32
    %c0_i32_0 = arith.constant 0 : i32
    %c0_i32_1 = arith.constant 0 : i32
    return %c0_i32, %c0_i32_0 : i32, i32
  }
  func.func @transform_3(%arg0: i32) -> (i32, i32) {
    %c0_i32 = arith.constant 0 : i32
    %c0_i32_0 = arith.constant 0 : i32
    %c0_i32_1 = arith.constant 0 : i32
    return %c0_i32, %c0_i32_0 : i32, i32
  }
  func.func @transform_4(%arg0: i32) -> (i32, i32, i32, i32) {
    %c0_i32 = arith.constant 0 : i32
    %c0_i32_0 = arith.constant 0 : i32
    %c0_i32_1 = arith.constant 0 : i32
    %c0_i32_2 = arith.constant 0 : i32
    return %arg0, %c0_i32, %c0_i32_0, %c0_i32_1 : i32, i32, i32, i32
  }
}

</mosaic_0001>

<llo_original>
// kernel: basic_block_forward.5
$region0: #{basic_block_forward.5}
  #allocation0 [shape = 'u32[]', space=smem, size = 0x4, offset = 0x4, fixed_abs, tag = 'smem constant byte address 0x4 - core index']
  #allocation1 [shape = 'u32[72,128]{1,0:T(1,128)}', space=vmem, size = 0x9000, scoped, tag = 'internal scratch']
  %s0 = inlined_call_operand.vmem [shape: bf16[2,8,8,128], index: 0, kind: input, shape index: {}]
  %s1 = inlined_call_operand.vmem [shape: bf16[2,8,8,128], index: 1, kind: input, shape index: {}]
  %s2 = inlined_call_operand.vmem [shape: f32[2,128], index: 2, kind: input, shape index: {}]
  %s3 = inlined_call_operand.vmem [shape: f32[2,128], index: 3, kind: input, shape index: {}]
  %s4 = inlined_call_operand.vmem [shape: f32[2,8,8,128], index: 4, kind: output, shape index: {}]
  %s5 = sld [smem:[#allocation0]]
  $region49: #{basic_block_forward.5} parent=0
    _
  %s7 = ssub.s32 1, %s5
  %s8 = scalar_select 0, %s7, %s5
  loop: start=0, step=1, limit=4
  $region2: #{basic_block_forward.5} parent=0 // loop_pre_header
    _
  $region3: #{basic_block_forward.5} parent=0 // loop_header
    %s10 = sphi 0, %s14
    %p11 = scmp.ge.s32.totalorder %s10, 4
    %s20 = sphi 0, %s22
    %s23 = sphi 0, %s20
    %s24 = sphi 0, %s23
    %s40 = sphi 0, %s24
    %s46 = sphi 0, %s48
    %s49 = sphi 0, %s46
    %s50 = sphi 0, %s49
    %s66 = sphi 0, %s50
    %s70 = sphi 0, %s70
    %s72 = sphi 0, %s70
    %s73 = sphi 0, %s72
    %s87 = sphi 0, %s73
    %s91 = sphi 0, %s91
    %s93 = sphi 0, %s91
    %s94 = sphi 0, %s93
    %s108 = sphi 0, %s94
    %s114 = sphi 0, %s116
    %s117 = sphi 0, %s114
    %s118 = sphi 0, %s117
    %s134 = sphi 0, %s118
  $region4: #{basic_block_forward.5} parent=0 // loop_header_branch
    %13 = sbr.rel (%p11) target = $region8
  $region5: #{basic_block_forward.5} parent=0 // loop_body
    %s15 = ssub.s32 %s10, 1
    %s16 = ssub.s32 %s10, 2
    %s17 = sadd.s32 %s10, 1
    %s18 = ssub.s32 %s10, %s17
    %p19 = scmp.eq.s32.totalorder %s18, 0
    %s21 = sadd.s32 %s20, 1
    %s22 = scalar_select %p19, %s20, %s21
    %p25 = pneg %p19
    %p26 = scmp.eq.s32.totalorder %s10, 1
    %p27 = por %p25, %p26
    %p28 = scmp.ne.s32.totalorder %s20, %s23
    %p29 = scmp.eq.s32.totalorder %s10, 0
    %p30 = por %p28, %p29
    %p31 = scmp.ne.s32.totalorder %s20, %s23
    %p32 = scmp.eq.s32.totalorder %s15, 1
    %p33 = por %p31, %p32
    %p34 = scmp.ne.s32.totalorder %s23, %s24
    %p35 = scmp.eq.s32.totalorder %s15, 0
    %p36 = por %p34, %p35
    %p37 = scmp.ne.s32.totalorder %s23, %s24
    %p38 = scmp.eq.s32.totalorder %s16, 1
    %p39 = por %p37, %p38
    %p41 = scmp.ne.s32.totalorder %s24, %s40
    %p42 = scmp.eq.s32.totalorder %s16, 0
    %p43 = por %p41, %p42
    %s44 = ssub.s32 %s10, %s17
    %p45 = scmp.eq.s32.totalorder %s44, 0
    %s47 = sadd.s32 %s46, 1
    %s48 = scalar_select %p45, %s46, %s47
    %p51 = pneg %p45
    %p52 = scmp.eq.s32.totalorder %s10, 1
    %p53 = por %p51, %p52
    %p54 = scmp.ne.s32.totalorder %s46, %s49
    %p55 = scmp.eq.s32.totalorder %s10, 0
    %p56 = por %p54, %p55
    %p57 = scmp.ne.s32.totalorder %s46, %s49
    %p58 = scmp.eq.s32.totalorder %s15, 1
    %p59 = por %p57, %p58
    %p60 = scmp.ne.s32.totalorder %s49, %s50
    %p61 = scmp.eq.s32.totalorder %s15, 0
    %p62 = por %p60, %p61
    %p63 = scmp.ne.s32.totalorder %s49, %s50
    %p64 = scmp.eq.s32.totalorder %s16, 1
    %p65 = por %p63, %p64
    %p67 = scmp.ne.s32.totalorder %s50, %s66
    %p68 = scmp.eq.s32.totalorder %s16, 0
    %p69 = por %p67, %p68
    %s71 = sadd.s32 %s70, 1
    %p74 = scmp.eq.s32.totalorder %s10, 1
    %p75 = scmp.ne.s32.totalorder %s70, %s72
    %p76 = scmp.eq.s32.totalorder %s10, 0
    %p77 = por %p75, %p76
    %p78 = scmp.ne.s32.totalorder %s70, %s72
    %p79 = scmp.eq.s32.totalorder %s15, 1
    %p80 = por %p78, %p79
    %p81 = scmp.ne.s32.totalorder %s72, %s73
    %p82 = scmp.eq.s32.totalorder %s15, 0
    %p83 = por %p81, %p82
    %p84 = scmp.ne.s32.totalorder %s72, %s73
    %p85 = scmp.eq.s32.totalorder %s16, 1
    %p86 = por %p84, %p85
    %p88 = scmp.ne.s32.totalorder %s73, %s87
    %p89 = scmp.eq.s32.totalorder %s16, 0
    %p90 = por %p88, %p89
    %s92 = sadd.s32 %s91, 1
    %p95 = scmp.eq.s32.totalorder %s10, 1
    %p96 = scmp.ne.s32.totalorder %s91, %s93
    %p97 = scmp.eq.s32.totalorder %s10, 0
    %p98 = por %p96, %p97
    %p99 = scmp.ne.s32.totalorder %s91, %s93
    %p100 = scmp.eq.s32.totalorder %s15, 1
    %p101 = por %p99, %p100
    %p102 = scmp.ne.s32.totalorder %s93, %s94
    %p103 = scmp.eq.s32.totalorder %s15, 0
    %p104 = por %p102, %p103
    %p105 = scmp.ne.s32.totalorder %s93, %s94
    %p106 = scmp.eq.s32.totalorder %s16, 1
    %p107 = por %p105, %p106
    %p109 = scmp.ne.s32.totalorder %s94, %s108
    %p110 = scmp.eq.s32.totalorder %s16, 0
    %p111 = por %p109, %p110
    %s112 = ssub.s32 %s10, %s17
    %p113 = scmp.eq.s32.totalorder %s112, 0
    %s115 = sadd.s32 %s114, 1
    %s116 = scalar_select %p113, %s114, %s115
    %p119 = pneg %p113
    %p120 = scmp.eq.s32.totalorder %s10, 1
    %p121 = por %p119, %p120
    %p122 = scmp.ne.s32.totalorder %s114, %s117
    %p123 = scmp.eq.s32.totalorder %s10, 0
    %p124 = por %p122, %p123
    %p125 = scmp.ne.s32.totalorder %s114, %s117
    %p126 = scmp.eq.s32.totalorder %s15, 1
    %p127 = por %p125, %p126
    %p128 = scmp.ne.s32.totalorder %s117, %s118
    %p129 = scmp.eq.s32.totalorder %s15, 0
    %p130 = por %p128, %p129
    %p131 = scmp.ne.s32.totalorder %s117, %s118
    %p132 = scmp.eq.s32.totalorder %s16, 1
    %p133 = por %p131, %p132
    %p135 = scmp.ne.s32.totalorder %s118, %s134
    %p136 = scmp.eq.s32.totalorder %s16, 0
    %p137 = por %p135, %p136
    %p138 = scmp.le.s32.totalorder 1, %s10
    %p139 = scmp.lt.s32.totalorder %s10, 3
    %p140 = pnand %p138, %p139
    %p141 = pneg %p140
    // Predicated region
    $region9: #{basic_block_forward.5} parent=5 // pred_check
      _
    $region10: #{basic_block_forward.5} parent=5 // pred_check_branch
      %143 = sbr.rel (%p140) target = $region12
    $region11: #{basic_block_forward.5} parent=5 // pred_region
      %s144 = ssub.s32 %s10, 1
      // Predicated region
      $region13: #{basic_block_forward.5} parent=11 // pred_check
        %p145 = pneg %p83
      $region14: #{basic_block_forward.5} parent=11 // pred_check_branch
        %147 = sbr.rel (%p145) target = $region16
      $region15: #{basic_block_forward.5} parent=11 // pred_region
        _
      $region16: #{basic_block_forward.5} parent=11 // pred_fallthru
        _
      // Predicated region
      $region17: #{basic_block_forward.5} parent=11 // pred_check
        %p148 = pneg %p104
      $region18: #{basic_block_forward.5} parent=11 // pred_check_branch
        %150 = sbr.rel (%p148) target = $region20
      $region19: #{basic_block_forward.5} parent=11 // pred_region
        _
      $region20: #{basic_block_forward.5} parent=11 // pred_fallthru
        _
    $region12: #{basic_block_forward.5} parent=5 // pred_fallthru
      _
    %p151 = scmp.lt.s32.totalorder %s10, 2
    // Predicated region
    $region21: #{basic_block_forward.5} parent=5 // pred_check
      %p152 = pneg %p151
    $region22: #{basic_block_forward.5} parent=5 // pred_check_branch
      %154 = sbr.rel (%p152) target = $region24
    $region23: #{basic_block_forward.5} parent=5 // pred_region
      // Predicated region
      $region25: #{basic_block_forward.5} parent=23 // pred_check
        %p155 = pneg %p30
      $region26: #{basic_block_forward.5} parent=23 // pred_check_branch
        %157 = sbr.rel (%p155) target = $region28
      $region27: #{basic_block_forward.5} parent=23 // pred_region
        %p158 = scmp.lt.s32.totalorder %s10, 1
        %s159 = scalar_select %p158, %s10, 1
        %s160 = smul.addr %s159, 8
        %s161 = smul.addr %s160, 4
        %s162 = scalar_lea.vmem %s0, %s161
      $region28: #{basic_block_forward.5} parent=23 // pred_fallthru
        _
      // Predicated region
      $region29: #{basic_block_forward.5} parent=23 // pred_check
        %p163 = pneg %p56
      $region30: #{basic_block_forward.5} parent=23 // pred_check_branch
        %165 = sbr.rel (%p163) target = $region32
      $region31: #{basic_block_forward.5} parent=23 // pred_region
        %p166 = scmp.lt.s32.totalorder %s10, 1
        %s167 = scalar_select %p166, %s10, 1
        %s168 = smul.addr %s167, 8
        %s169 = smul.addr %s168, 4
        %s170 = scalar_lea.vmem %s1, %s169
      $region32: #{basic_block_forward.5} parent=23 // pred_fallthru
        _
    $region24: #{basic_block_forward.5} parent=5 // pred_fallthru
      _
    %p171 = scmp.le.s32.totalorder 1, %s10
    %p172 = scmp.lt.s32.totalorder %s10, 3
    %p173 = pnand %p171, %p172
    %p174 = pneg %p173
    // Predicated region
    $region33: #{basic_block_forward.5} parent=5 // pred_check
      _
    $region34: #{basic_block_forward.5} parent=5 // pred_check_branch
      %176 = sbr.rel (%p173) target = $region36
    $region35: #{basic_block_forward.5} parent=5 // pred_region
      %s177 = ssub.s32 %s10, 1
      %p178 = scmp.lt.s32.totalorder %s15, 1
      %s179 = scalar_select %p178, %s15, 1
      %s180 = smul.addr %s179, 8
      %s181 = smul.addr %s180, 4
      %s182 = scalar_lea.vmem %s0, %s181
      %p183 = pneg %p36
      %p184 = pneg %p33
      %p185 = scmp.lt.s32.totalorder %s15, 1
      %s186 = scalar_select %p185, %s15, 1
      %s187 = smul.addr %s186, 8
      %s188 = smul.addr %s187, 4
      %s189 = scalar_lea.vmem %s1, %s188
      %p190 = pneg %p62
      %p191 = pneg %p59
      %p192 = pneg %p83
      %p193 = pneg %p80
      %p194 = pneg %p104
      %p195 = pneg %p101
      %p196 = pneg %p130
      %p197 = pneg %p127
      %p198 = scmp.lt.s32.totalorder %s15, 1
      %s199 = scalar_select %p198, %s15, 1
      %s200 = smul.addr %s199, 8
      %s201 = smul.addr %s200, 8
      %s202 = scalar_lea.vmem %s4, %s201
      %p203 = scmp.lt.s32.totalorder %s15, 1
      %s204 = scalar_select %p203, %s15, 1
      %s205 = smul.addr %s204, 8
      %s206 = smul.addr %s205, 4
      %s207 = scalar_lea.vmem %s0, %s206
      %p208 = scmp.lt.s32.totalorder %s15, 1
      %s209 = scalar_select %p208, %s15, 1
      %s210 = smul.addr %s209, 8
      %s211 = smul.addr %s210, 4
      %s212 = scalar_lea.vmem %s1, %s211
      %p213 = scmp.lt.s32.totalorder %s15, 1
      %s214 = scalar_select %p213, %s15, 1
      %s215 = smul.addr %s214, 8
      %s216 = smul.addr %s215, 8
      %s217 = scalar_lea.vmem %s4, %s216
      %v218 = vld [vmem:[%s2] sm:$0x1]
      %v219 = vld [vmem:[%s2 + $0x1] sm:$0x1]
      %v220 = vld [vmem:[%s207] sm:$0xf]
      %v221 = vld [vmem:[%s207 + $0x4] sm:$0xf]
      %v222 = vld [vmem:[%s207 + $0x8] sm:$0xf]
      %v223 = vld [vmem:[%s207 + $0xc] sm:$0xf]
      %v224 = vld [vmem:[%s207 + $0x10] sm:$0xf]
      %v225 = vld [vmem:[%s207 + $0x14] sm:$0xf]
      %v226 = vld [vmem:[%s207 + $0x18] sm:$0xf]
      %v227 = vld [vmem:[%s207 + $0x1c] sm:$0xf]
      %v228 = vunpack.c.l.bf16 %v220
      %v229 = vunpack.c.l.bf16 %v221
      %v230 = vunpack.c.l.bf16 %v222
      %v231 = vunpack.c.l.bf16 %v223
      %v232 = vunpack.c.l.bf16 %v224
      %v233 = vunpack.c.l.bf16 %v225
      %v234 = vunpack.c.l.bf16 %v226
      %v235 = vunpack.c.l.bf16 %v227
      %v236 = vperm.slane %v218, 0
      %v237 = vmul.f32 %v228, %v236
      %v238 = vmul.f32 %v229, %v236
      %v239 = vmul.f32 %v230, %v236
      %v240 = vmul.f32 %v231, %v236
      %v241 = vmul.f32 %v232, %v236
      %v242 = vmul.f32 %v233, %v236
      %v243 = vmul.f32 %v234, %v236
      %v244 = vmul.f32 %v235, %v236
      %v245 = vperm.slane %v219, 0
      %v246 = vadd.f32 %v237, %v245
      %v247 = vadd.f32 %v238, %v245
      %v248 = vadd.f32 %v239, %v245
      %v249 = vadd.f32 %v240, %v245
      %v250 = vadd.f32 %v241, %v245
      %v251 = vadd.f32 %v242, %v245
      %v252 = vadd.f32 %v243, %v245
      %v253 = vadd.f32 %v244, %v245
      %v254 = vld [vmem:[%s3] sm:$0x1]
      %v255 = vld [vmem:[%s3 + $0x1] sm:$0x1]
      %v256 = vld [vmem:[%s212] sm:$0xf]
      %v257 = vld [vmem:[%s212 + $0x4] sm:$0xf]
      %v258 = vld [vmem:[%s212 + $0x8] sm:$0xf]
      %v259 = vld [vmem:[%s212 + $0xc] sm:$0xf]
      %v260 = vld [vmem:[%s212 + $0x10] sm:$0xf]
      %v261 = vld [vmem:[%s212 + $0x14] sm:$0xf]
      %v262 = vld [vmem:[%s212 + $0x18] sm:$0xf]
      %v263 = vld [vmem:[%s212 + $0x1c] sm:$0xf]
      %v264 = vunpack.c.l.bf16 %v256
      %v265 = vunpack.c.l.bf16 %v257
      %v266 = vunpack.c.l.bf16 %v258
      %v267 = vunpack.c.l.bf16 %v259
      %v268 = vunpack.c.l.bf16 %v260
      %v269 = vunpack.c.l.bf16 %v261
      %v270 = vunpack.c.l.bf16 %v262
      %v271 = vunpack.c.l.bf16 %v263
      %v272 = vperm.slane %v254, 0
      %v273 = vmul.f32 %v264, %v272
      %v274 = vmul.f32 %v265, %v272
      %v275 = vmul.f32 %v266, %v272
      %v276 = vmul.f32 %v267, %v272
      %v277 = vmul.f32 %v268, %v272
      %v278 = vmul.f32 %v269, %v272
      %v279 = vmul.f32 %v270, %v272
      %v280 = vmul.f32 %v271, %v272
      %v281 = vperm.slane %v255, 0
      %v282 = vadd.f32 %v273, %v281
      %v283 = vadd.f32 %v274, %v281
      %v284 = vadd.f32 %v275, %v281
      %v285 = vadd.f32 %v276, %v281
      %v286 = vadd.f32 %v277, %v281
      %v287 = vadd.f32 %v278, %v281
      %v288 = vadd.f32 %v279, %v281
      %v289 = vadd.f32 %v280, %v281
      %v290 = vadd.f32 %v246, %v282
      %v291 = vadd.f32 %v247, %v283
      %v292 = vadd.f32 %v248, %v284
      %v293 = vadd.f32 %v249, %v285
      %v294 = vadd.f32 %v250, %v286
      %v295 = vadd.f32 %v251, %v287
      %v296 = vadd.f32 %v252, %v288
      %v297 = vadd.f32 %v253, %v289
      %298 = vst [vmem:[%s217] sm:$0xff] %v290
      %299 = vst [vmem:[%s217 + $0x8] sm:$0xff] %v291
      %300 = vst [vmem:[%s217 + $0x10] sm:$0xff] %v292
      %301 = vst [vmem:[%s217 + $0x18] sm:$0xff] %v293
      %302 = vst [vmem:[%s217 + $0x20] sm:$0xff] %v294
      %303 = vst [vmem:[%s217 + $0x28] sm:$0xff] %v295
      %304 = vst [vmem:[%s217 + $0x30] sm:$0xff] %v296
      %305 = vst [vmem:[%s217 + $0x38] sm:$0xff] %v297
      %p306 = scmp.lt.s32.totalorder %s15, 1
      %s307 = scalar_select %p306, %s15, 1
      %s308 = smul.addr %s307, 8
      %s309 = smul.addr %s308, 8
      %s310 = scalar_lea.vmem %s4, %s309
      // Predicated region
      $region37: #{basic_block_forward.5} parent=35 // pred_check
        %p311 = pneg %p127
      $region38: #{basic_block_forward.5} parent=35 // pred_check_branch
        %313 = sbr.rel (%p311) target = $region40
      $region39: #{basic_block_forward.5} parent=35 // pred_region
        _
      $region40: #{basic_block_forward.5} parent=35 // pred_fallthru
        _
    $region36: #{basic_block_forward.5} parent=5 // pred_fallthru
      _
    %p314 = scmp.le.s32.totalorder 2, %s10
    // Predicated region
    $region41: #{basic_block_forward.5} parent=5 // pred_check
      %p315 = pneg %p314
    $region42: #{basic_block_forward.5} parent=5 // pred_check_branch
      %317 = sbr.rel (%p315) target = $region44
    $region43: #{basic_block_forward.5} parent=5 // pred_region
      %s318 = ssub.s32 %s10, 2
      // Predicated region
      $region45: #{basic_block_forward.5} parent=43 // pred_check
        %p319 = pneg %p133
      $region46: #{basic_block_forward.5} parent=43 // pred_check_branch
        %321 = sbr.rel (%p319) target = $region48
      $region47: #{basic_block_forward.5} parent=43 // pred_region
        %p322 = scmp.lt.s32.totalorder %s16, 1
        %s323 = scalar_select %p322, %s16, 1
        %s324 = smul.addr %s323, 8
        %s325 = smul.addr %s324, 8
        %s326 = scalar_lea.vmem %s4, %s325
      $region48: #{basic_block_forward.5} parent=43 // pred_fallthru
        _
    $region44: #{basic_block_forward.5} parent=5 // pred_fallthru
      _
  $region6: #{basic_block_forward.5} parent=0 // loop_footer
    %s14 = sadd.s32 1, %s10
  $region7: #{basic_block_forward.5} parent=0 // loop_footer_branch
    %9 = sbr.rel target = $region3
  $region8: #{basic_block_forward.5} parent=0 // loop_exit
    _

// kernel: basic_block_forward.4
$region0: #{basic_block_forward.4}
  #allocation0 [shape = 'u32[]', space=smem, size = 0x4, offset = 0x4, fixed_abs, tag = 'smem constant byte address 0x4 - core index']
  #allocation1 [shape = 'u32[72,128]{1,0:T(1,128)}', space=vmem, size = 0x9000, scoped, tag = 'internal scratch']
  %s0 = inlined_call_operand.vmem [shape: bf16[2,8,8,128], index: 0, kind: input, shape index: {}]
  %s1 = inlined_call_operand.vmem [shape: f32[2,128], index: 1, kind: input, shape index: {}]
  %s2 = inlined_call_operand.vmem [shape: bf16[1152,128], index: 2, kind: input, shape index: {}]
  %s3 = inlined_call_operand.vmem [shape: bf16[2,8,8,128], index: 3, kind: output, shape index: {0}]
  %s4 = inlined_call_operand.vmem [shape: f32[2,2,128], index: 4, kind: output, shape index: {1}]
  %5 = xla_tuple %s3, %s4
  %s6 = sld [smem:[#allocation0]]
  $region53: #{basic_block_forward.4} parent=0
    _
  %s8 = ssub.s32 1, %s6
  %s9 = scalar_select 0, %s8, %s6
  loop: start=0, step=1, limit=4
  $region2: #{basic_block_forward.4} parent=0 // loop_pre_header
    _
  $region3: #{basic_block_forward.4} parent=0 // loop_header
    %s11 = sphi 0, %s15
    %p12 = scmp.ge.s32.totalorder %s11, 4
    %s21 = sphi 0, %s23
    %s24 = sphi 0, %s21
    %s25 = sphi 0, %s24
    %s41 = sphi 0, %s25
    %s45 = sphi 0, %s45
    %s47 = sphi 0, %s45
    %s48 = sphi 0, %s47
    %s62 = sphi 0, %s48
    %s66 = sphi 0, %s66
    %s68 = sphi 0, %s66
    %s69 = sphi 0, %s68
    %s83 = sphi 0, %s69
    %s89 = sphi 0, %s91
    %s92 = sphi 0, %s89
    %s93 = sphi 0, %s92
    %s109 = sphi 0, %s93
    %s115 = sphi 0, %s117
    %s118 = sphi 0, %s115
    %s119 = sphi 0, %s118
    %s135 = sphi 0, %s119
  $region4: #{basic_block_forward.4} parent=0 // loop_header_branch
    %14 = sbr.rel (%p12) target = $region8
  $region5: #{basic_block_forward.4} parent=0 // loop_body
    %s16 = ssub.s32 %s11, 1
    %s17 = ssub.s32 %s11, 2
    %s18 = sadd.s32 %s11, 1
    %s19 = ssub.s32 %s11, %s18
    %p20 = scmp.eq.s32.totalorder %s19, 0
    %s22 = sadd.s32 %s21, 1
    %s23 = scalar_select %p20, %s21, %s22
    %p26 = pneg %p20
    %p27 = scmp.eq.s32.totalorder %s11, 1
    %p28 = por %p26, %p27
    %p29 = scmp.ne.s32.totalorder %s21, %s24
    %p30 = scmp.eq.s32.totalorder %s11, 0
    %p31 = por %p29, %p30
    %p32 = scmp.ne.s32.totalorder %s21, %s24
    %p33 = scmp.eq.s32.totalorder %s16, 1
    %p34 = por %p32, %p33
    %p35 = scmp.ne.s32.totalorder %s24, %s25
    %p36 = scmp.eq.s32.totalorder %s16, 0
    %p37 = por %p35, %p36
    %p38 = scmp.ne.s32.totalorder %s24, %s25
    %p39 = scmp.eq.s32.totalorder %s17, 1
    %p40 = por %p38, %p39
    %p42 = scmp.ne.s32.totalorder %s25, %s41
    %p43 = scmp.eq.s32.totalorder %s17, 0
    %p44 = por %p42, %p43
    %s46 = sadd.s32 %s45, 1
    %p49 = scmp.eq.s32.totalorder %s11, 1
    %p50 = scmp.ne.s32.totalorder %s45, %s47
    %p51 = scmp.eq.s32.totalorder %s11, 0
    %p52 = por %p50, %p51
    %p53 = scmp.ne.s32.totalorder %s45, %s47
    %p54 = scmp.eq.s32.totalorder %s16, 1
    %p55 = por %p53, %p54
    %p56 = scmp.ne.s32.totalorder %s47, %s48
    %p57 = scmp.eq.s32.totalorder %s16, 0
    %p58 = por %p56, %p57
    %p59 = scmp.ne.s32.totalorder %s47, %s48
    %p60 = scmp.eq.s32.totalorder %s17, 1
    %p61 = por %p59, %p60
    %p63 = scmp.ne.s32.totalorder %s48, %s62
    %p64 = scmp.eq.s32.totalorder %s17, 0
    %p65 = por %p63, %p64
    %s67 = sadd.s32 %s66, 1
    %p70 = scmp.eq.s32.totalorder %s11, 1
    %p71 = scmp.ne.s32.totalorder %s66, %s68
    %p72 = scmp.eq.s32.totalorder %s11, 0
    %p73 = por %p71, %p72
    %p74 = scmp.ne.s32.totalorder %s66, %s68
    %p75 = scmp.eq.s32.totalorder %s16, 1
    %p76 = por %p74, %p75
    %p77 = scmp.ne.s32.totalorder %s68, %s69
    %p78 = scmp.eq.s32.totalorder %s16, 0
    %p79 = por %p77, %p78
    %p80 = scmp.ne.s32.totalorder %s68, %s69
    %p81 = scmp.eq.s32.totalorder %s17, 1
    %p82 = por %p80, %p81
    %p84 = scmp.ne.s32.totalorder %s69, %s83
    %p85 = scmp.eq.s32.totalorder %s17, 0
    %p86 = por %p84, %p85
    %s87 = ssub.s32 %s11, %s18
    %p88 = scmp.eq.s32.totalorder %s87, 0
    %s90 = sadd.s32 %s89, 1
    %s91 = scalar_select %p88, %s89, %s90
    %p94 = pneg %p88
    %p95 = scmp.eq.s32.totalorder %s11, 1
    %p96 = por %p94, %p95
    %p97 = scmp.ne.s32.totalorder %s89, %s92
    %p98 = scmp.eq.s32.totalorder %s11, 0
    %p99 = por %p97, %p98
    %p100 = scmp.ne.s32.totalorder %s89, %s92
    %p101 = scmp.eq.s32.totalorder %s16, 1
    %p102 = por %p100, %p101
    %p103 = scmp.ne.s32.totalorder %s92, %s93
    %p104 = scmp.eq.s32.totalorder %s16, 0
    %p105 = por %p103, %p104
    %p106 = scmp.ne.s32.totalorder %s92, %s93
    %p107 = scmp.eq.s32.totalorder %s17, 1
    %p108 = por %p106, %p107
    %p110 = scmp.ne.s32.totalorder %s93, %s109
    %p111 = scmp.eq.s32.totalorder %s17, 0
    %p112 = por %p110, %p111
    %s113 = ssub.s32 %s11, %s18
    %p114 = scmp.eq.s32.totalorder %s113, 0
    %s116 = sadd.s32 %s115, 1
    %s117 = scalar_select %p114, %s115, %s116
    %p120 = pneg %p114
    %p121 = scmp.eq.s32.totalorder %s11, 1
    %p122 = por %p120, %p121
    %p123 = scmp.ne.s32.totalorder %s115, %s118
    %p124 = scmp.eq.s32.totalorder %s11, 0
    %p125 = por %p123, %p124
    %p126 = scmp.ne.s32.totalorder %s115, %s118
    %p127 = scmp.eq.s32.totalorder %s16, 1
    %p128 = por %p126, %p127
    %p129 = scmp.ne.s32.totalorder %s118, %s119
    %p130 = scmp.eq.s32.totalorder %s16, 0
    %p131 = por %p129, %p130
    %p132 = scmp.ne.s32.totalorder %s118, %s119
    %p133 = scmp.eq.s32.totalorder %s17, 1
    %p134 = por %p132, %p133
    %p136 = scmp.ne.s32.totalorder %s119, %s135
    %p137 = scmp.eq.s32.totalorder %s17, 0
    %p138 = por %p136, %p137
    %p139 = scmp.le.s32.totalorder 1, %s11
    %p140 = scmp.lt.s32.totalorder %s11, 3
    %p141 = pnand %p139, %p140
    %p142 = pneg %p141
    // Predicated region
    $region9: #{basic_block_forward.4} parent=5 // pred_check
      _
    $region10: #{basic_block_forward.4} parent=5 // pred_check_branch
      %144 = sbr.rel (%p141) target = $region12
    $region11: #{basic_block_forward.4} parent=5 // pred_region
      %s145 = ssub.s32 %s11, 1
      // Predicated region
      $region13: #{basic_block_forward.4} parent=11 // pred_check
        %p146 = pneg %p58
      $region14: #{basic_block_forward.4} parent=11 // pred_check_branch
        %148 = sbr.rel (%p146) target = $region16
      $region15: #{basic_block_forward.4} parent=11 // pred_region
        _
      $region16: #{basic_block_forward.4} parent=11 // pred_fallthru
        _
      // Predicated region
      $region17: #{basic_block_forward.4} parent=11 // pred_check
        %p149 = pneg %p79
      $region18: #{basic_block_forward.4} parent=11 // pred_check_branch
        %151 = sbr.rel (%p149) target = $region20
      $region19: #{basic_block_forward.4} parent=11 // pred_region
        _
      $region20: #{basic_block_forward.4} parent=11 // pred_fallthru
        _
    $region12: #{basic_block_forward.4} parent=5 // pred_fallthru
      _
    %p152 = scmp.lt.s32.totalorder %s11, 2
    // Predicated region
    $region21: #{basic_block_forward.4} parent=5 // pred_check
      %p153 = pneg %p152
    $region22: #{basic_block_forward.4} parent=5 // pred_check_branch
      %155 = sbr.rel (%p153) target = $region24
    $region23: #{basic_block_forward.4} parent=5 // pred_region
      // Predicated region
      $region25: #{basic_block_forward.4} parent=23 // pred_check
        %p156 = pneg %p31
      $region26: #{basic_block_forward.4} parent=23 // pred_check_branch
        %158 = sbr.rel (%p156) target = $region28
      $region27: #{basic_block_forward.4} parent=23 // pred_region
        %p159 = scmp.lt.s32.totalorder %s11, 1
        %s160 = scalar_select %p159, %s11, 1
        %s161 = smul.addr %s160, 8
        %s162 = smul.addr %s161, 4
        %s163 = scalar_lea.vmem %s0, %s162
      $region28: #{basic_block_forward.4} parent=23 // pred_fallthru
        _
    $region24: #{basic_block_forward.4} parent=5 // pred_fallthru
      _
    %p164 = scmp.le.s32.totalorder 1, %s11
    %p165 = scmp.lt.s32.totalorder %s11, 3
    %p166 = pnand %p164, %p165
    %p167 = pneg %p166
    // Predicated region
    $region29: #{basic_block_forward.4} parent=5 // pred_check
      _
    $region30: #{basic_block_forward.4} parent=5 // pred_check_branch
      %169 = sbr.rel (%p166) target = $region32
    $region31: #{basic_block_forward.4} parent=5 // pred_region
      %s170 = ssub.s32 %s11, 1
      %p171 = scmp.lt.s32.totalorder %s16, 1
      %s172 = scalar_select %p171, %s16, 1
      %s173 = smul.addr %s172, 8
      %s174 = smul.addr %s173, 4
      %s175 = scalar_lea.vmem %s0, %s174
      %p176 = pneg %p37
      %p177 = pneg %p34
      %p178 = pneg %p58
      %p179 = pneg %p55
      %p180 = pneg %p79
      %p181 = pneg %p76
      %p182 = pneg %p105
      %p183 = pneg %p102
      %p184 = scmp.lt.s32.totalorder %s16, 1
      %s185 = scalar_select %p184, %s16, 1
      %s186 = smul.addr %s185, 8
      %s187 = smul.addr %s186, 4
      %s188 = scalar_lea.vmem %s3, %s187
      %p189 = pneg %p131
      %p190 = pneg %p128
      %p191 = scmp.lt.s32.totalorder %s16, 1
      %s192 = scalar_select %p191, %s16, 1
      %s193 = smul.addr %s192, 2
      %s194 = scalar_lea.vmem %s4, %s193
      %p195 = scmp.lt.s32.totalorder %s16, 1
      %s196 = scalar_select %p195, %s16, 1
      %s197 = smul.addr %s196, 8
      %s198 = smul.addr %s197, 4
      %s199 = scalar_lea.vmem %s0, %s198
      %p200 = scmp.lt.s32.totalorder %s16, 1
      %s201 = scalar_select %p200, %s16, 1
      %s202 = smul.addr %s201, 8
      %s203 = smul.addr %s202, 4
      %s204 = scalar_lea.vmem %s3, %s203
      %p205 = scmp.lt.s32.totalorder %s16, 1
      %s206 = scalar_select %p205, %s16, 1
      %s207 = smul.addr %s206, 2
      %s208 = scalar_lea.vmem %s4, %s207
      %v210 = vld [vmem:[%s1] sm:$0x1]
      %v211 = vld [vmem:[%s1 + $0x1] sm:$0x1]
      %v212 = vld [vmem:[%s199] sm:$0xf]
      %v213 = vld [vmem:[%s199 + $0x4] sm:$0xf]
      %v214 = vld [vmem:[%s199 + $0x8] sm:$0xf]
      %v215 = vld [vmem:[%s199 + $0xc] sm:$0xf]
      %v216 = vld [vmem:[%s199 + $0x10] sm:$0xf]
      %v217 = vld [vmem:[%s199 + $0x14] sm:$0xf]
      %v218 = vld [vmem:[%s199 + $0x18] sm:$0xf]
      %v219 = vld [vmem:[%s199 + $0x1c] sm:$0xf]
      %v220 = vunpack.c.l.bf16 %v212
      %v221 = vunpack.c.l.bf16 %v213
      %v222 = vunpack.c.l.bf16 %v214
      %v223 = vunpack.c.l.bf16 %v215
      %v224 = vunpack.c.l.bf16 %v216
      %v225 = vunpack.c.l.bf16 %v217
      %v226 = vunpack.c.l.bf16 %v218
      %v227 = vunpack.c.l.bf16 %v219
      %v228 = vperm.slane %v210, 0
      %v229 = vmul.f32 %v220, %v228
      %v230 = vmul.f32 %v221, %v228
      %v231 = vmul.f32 %v222, %v228
      %v232 = vmul.f32 %v223, %v228
      %v233 = vmul.f32 %v224, %v228
      %v234 = vmul.f32 %v225, %v228
      %v235 = vmul.f32 %v226, %v228
      %v236 = vmul.f32 %v227, %v228
      %v237 = vperm.slane %v211, 0
      %v238 = vadd.f32 %v229, %v237
      %v239 = vadd.f32 %v230, %v237
      %v240 = vadd.f32 %v231, %v237
      %v241 = vadd.f32 %v232, %v237
      %v242 = vadd.f32 %v233, %v237
      %v243 = vadd.f32 %v234, %v237
      %v244 = vadd.f32 %v235, %v237
      %v245 = vadd.f32 %v236, %v237
      %v246 = vmax.f32 %v238, 0.0
      %v247 = vmax.f32 %v239, 0.0
      %v248 = vmax.f32 %v240, 0.0
      %v249 = vmax.f32 %v241, 0.0
      %v250 = vmax.f32 %v242, 0.0
      %v251 = vmax.f32 %v243, 0.0
      %v252 = vmax.f32 %v244, 0.0
      %v253 = vmax.f32 %v245, 0.0
      %v254 = vpack.c.bf16 %v246, %v246
      %v255 = vpack.c.bf16 %v247, %v247
      %v256 = vpack.c.bf16 %v248, %v248
      %v257 = vpack.c.bf16 %v249, %v249
      %v258 = vpack.c.bf16 %v250, %v250
      %v259 = vpack.c.bf16 %v251, %v251
      %v260 = vpack.c.bf16 %v252, %v252
      %v261 = vpack.c.bf16 %v253, %v253
      %v270 = vunpack.c.l.b16 %v254
      %v271 = vunpack.c.l.b16 %v255
      %v272 = vunpack.c.l.b16 %v256
      %v273 = vunpack.c.l.b16 %v257
      %v274 = vunpack.c.l.b16 %v258
      %v275 = vunpack.c.l.b16 %v259
      %v276 = vunpack.c.l.b16 %v260
      %v277 = vunpack.c.l.b16 %v261
      %v278 = vpack.c.b16 %v270, %v270
      %v279 = vpack.c.b16 %v271, %v271
      %v280 = vpack.c.b16 %v272, %v272
      %v281 = vpack.c.b16 %v273, %v273
      %v282 = vpack.c.b16 %v274, %v274
      %v283 = vpack.c.b16 %v275, %v275
      %v284 = vpack.c.b16 %v276, %v276
      %v285 = vpack.c.b16 %v277, %v277
      %v287 = vshrl.u32 %v278, 16
      %v289 = vrot.slane %v287, 7
      %v290 = vshll.u32 %v278, 16
      %v292 = vor.u32 %v289, %v290
      %v294 = vshrl.u32 %v279, 16
      %v296 = vrot.slane %v294, 7
      %v297 = vshll.u32 %v279, 16
      %v299 = vor.u32 %v296, %v297
      %v301 = vshrl.u32 %v280, 16
      %v303 = vrot.slane %v301, 7
      %v304 = vshll.u32 %v280, 16
      %v306 = vor.u32 %v303, %v304
      %v308 = vshrl.u32 %v281, 16
      %v310 = vrot.slane %v308, 7
      %v311 = vshll.u32 %v281, 16
      %v313 = vor.u32 %v310, %v311
      %v315 = vshrl.u32 %v282, 16
      %v317 = vrot.slane %v315, 7
      %v318 = vshll.u32 %v282, 16
      %v320 = vor.u32 %v317, %v318
      %v322 = vshrl.u32 %v283, 16
      %v324 = vrot.slane %v322, 7
      %v325 = vshll.u32 %v283, 16
      %v327 = vor.u32 %v324, %v325
      %v329 = vshrl.u32 %v284, 16
      %v331 = vrot.slane %v329, 7
      %v332 = vshll.u32 %v284, 16
      %v334 = vor.u32 %v331, %v332
      %v336 = vshrl.u32 %v285, 16
      %v338 = vrot.slane %v336, 7
      %v339 = vshll.u32 %v285, 16
      %v341 = vor.u32 %v338, %v339
      %vm350 = vcmask 1040384
      %vm351 = vsmask.f32 256
      %vm352 = vmand %vm350, %vm351
      %v353 = vsel %vm352, 0, %v292
      %v354 = vsel %vm352, 0, %v299
      %v355 = vsel %vm352, 0, %v306
      %v356 = vsel %vm352, 0, %v313
      %v357 = vsel %vm352, 0, %v320
      %v358 = vsel %vm352, 0, %v327
      %v359 = vsel %vm352, 0, %v334
      %v360 = vsel %vm352, 0, %v341
      %vm361 = vcmask 1044480
      %vm362 = vsmask.f32 4352
      %vm363 = vmand %vm361, %vm362
      %v364 = vsel %vm363, %v353, 0
      %v365 = vsel %vm363, %v354, 0
      %v366 = vsel %vm363, %v355, 0
      %v367 = vsel %vm363, %v356, 0
      %v368 = vsel %vm363, %v357, 0
      %v369 = vsel %vm363, %v358, 0
      %v370 = vsel %vm363, %v359, 0
      %v371 = vsel %vm363, %v360, 0
      %v381 = vrot.slane 0, 1
      %v382 = vrot.slane 0, 2
      %v383 = vrot.slane 0, 3
      %v384 = vrot.slane 0, 4
      %v385 = vrot.slane %v364, 1
      %v386 = vrot.slane %v364, 2
      %v387 = vrot.slane %v364, 3
      %v388 = vrot.slane %v364, 4
      %v389 = vrot.slane %v365, 1
      %v390 = vrot.slane %v365, 2
      %v391 = vrot.slane %v365, 3
      %v392 = vrot.slane %v365, 4
      %v393 = vrot.slane %v366, 1
      %v394 = vrot.slane %v366, 2
      %v395 = vrot.slane %v366, 3
      %v396 = vrot.slane %v366, 4
      %v397 = vrot.slane %v367, 1
      %v398 = vrot.slane %v367, 2
      %v399 = vrot.slane %v367, 3
      %v400 = vrot.slane %v367, 4
      %v401 = vrot.slane %v368, 1
      %v402 = vrot.slane %v368, 2
      %v403 = vrot.slane %v368, 3
      %v404 = vrot.slane %v368, 4
      %v405 = vrot.slane %v369, 1
      %v406 = vrot.slane %v369, 2
      %v407 = vrot.slane %v369, 3
      %v408 = vrot.slane %v369, 4
      %v409 = vrot.slane %v370, 1
      %v410 = vrot.slane %v370, 2
      %v411 = vrot.slane %v370, 3
      %v412 = vrot.slane %v370, 4
      %v413 = vrot.slane %v371, 1
      %v414 = vrot.slane %v371, 2
      %v415 = vrot.slane %v371, 3
      %v416 = vrot.slane %v371, 4
      %418 = vst [vmem:[#allocation1] ss:$9 sm:$0xff] 0
      %s420 = scalar_lea.vmem [#allocation1], 1
      %421 = vst [vmem:[%s420] ss:$9 sm:$0xff] %v381
      %s423 = scalar_lea.vmem [#allocation1], 2
      %424 = vst [vmem:[%s423] ss:$9 sm:$0xff] %v382
      %s426 = scalar_lea.vmem [#allocation1], 3
      %427 = vst [vmem:[%s426] ss:$9 sm:$0xff] %v383
      %s429 = scalar_lea.vmem [#allocation1], 4
      %430 = vst [vmem:[%s429] ss:$9 sm:$0xff] %v384
      %s432 = scalar_lea.vmem [#allocation1], 5
      %433 = vst [vmem:[%s432] ss:$9 sm:$0xff] %v364
      %s435 = scalar_lea.vmem [#allocation1], 6
      %436 = vst [vmem:[%s435] ss:$9 sm:$0xff] %v385
      %s438 = scalar_lea.vmem [#allocation1], 7
      %439 = vst [vmem:[%s438] ss:$9 sm:$0xff] %v386
      %v440 = vld [vmem:[#allocation1] sm:$0xff]
      %442 = vst [vmem:[#allocation1] ss:$9 sm:$0xff] %v387
      %444 = vst [vmem:[%s420] ss:$9 sm:$0xff] %v388
      %446 = vst [vmem:[%s423] ss:$9 sm:$0xff] %v365
      %448 = vst [vmem:[%s426] ss:$9 sm:$0xff] %v389
      %450 = vst [vmem:[%s429] ss:$9 sm:$0xff] %v390
      %452 = vst [vmem:[%s432] ss:$9 sm:$0xff] %v391
      %454 = vst [vmem:[%s435] ss:$9 sm:$0xff] %v392
      %456 = vst [vmem:[%s438] ss:$9 sm:$0xff] %v366
      %v457 = vld [vmem:[#allocation1] sm:$0xff]
      %459 = vst [vmem:[#allocation1] ss:$9 sm:$0xff] %v393
      %461 = vst [vmem:[%s420] ss:$9 sm:$0xff] %v394
      %463 = vst [vmem:[%s423] ss:$9 sm:$0xff] %v395
      %465 = vst [vmem:[%s426] ss:$9 sm:$0xff] %v396
      %467 = vst [vmem:[%s429] ss:$9 sm:$0xff] %v367
      %469 = vst [vmem:[%s432] ss:$9 sm:$0xff] %v397
      %471 = vst [vmem:[%s435] ss:$9 sm:$0xff] %v398
      %473 = vst [vmem:[%s438] ss:$9 sm:$0xff] %v399
      %v474 = vld [vmem:[#allocation1] sm:$0xff]
      %476 = vst [vmem:[#allocation1] ss:$9 sm:$0xff] %v400
      %478 = vst [vmem:[%s420] ss:$9 sm:$0xff] %v368
      %480 = vst [vmem:[%s423] ss:$9 sm:$0xff] %v401
      %482 = vst [vmem:[%s426] ss:$9 sm:$0xff] %v402
      %484 = vst [vmem:[%s429] ss:$9 sm:$0xff] %v403
      %486 = vst [vmem:[%s432] ss:$9 sm:$0xff] %v404
      %488 = vst [vmem:[%s435] ss:$9 sm:$0xff] %v369
      %490 = vst [vmem:[%s438] ss:$9 sm:$0xff] %v405
      %v491 = vld [vmem:[#allocation1] sm:$0xff]
      %493 = vst [vmem:[#allocation1] ss:$9 sm:$0xff] %v406
      %495 = vst [vmem:[%s420] ss:$9 sm:$0xff] %v407
      %497 = vst [vmem:[%s423] ss:$9 sm:$0xff] %v408
      %499 = vst [vmem:[%s426] ss:$9 sm:$0xff] %v370
      %501 = vst [vmem:[%s429] ss:$9 sm:$0xff] %v409
      %503 = vst [vmem:[%s432] ss:$9 sm:$0xff] %v410
      %505 = vst [vmem:[%s435] ss:$9 sm:$0xff] %v411
      %507 = vst [vmem:[%s438] ss:$9 sm:$0xff] %v412
      %v508 = vld [vmem:[#allocation1] sm:$0xff]
      %514 = vst [vmem:[#allocation1] ss:$9 sm:$0xff] 0
      %s515 = scalar_lea.vmem [#allocation1], 1
      %516 = vst [vmem:[%s515] ss:$9 sm:$0xff] %v381
      %s517 = scalar_lea.vmem [#allocation1], 2
      %518 = vst [vmem:[%s517] ss:$9 sm:$0xff] %v382
      %s519 = scalar_lea.vmem [#allocation1], 3
      %520 = vst [vmem:[%s519] ss:$9 sm:$0xff] %v383
      %s521 = scalar_lea.vmem [#allocation1], 4
      %522 = vst [vmem:[%s521] ss:$9 sm:$0xff] %v384
      %s523 = scalar_lea.vmem [#allocation1], 5
      %524 = vst [vmem:[%s523] ss:$9 sm:$0xff] %v364
      %s525 = scalar_lea.vmem [#allocation1], 6
      %526 = vst [vmem:[%s525] ss:$9 sm:$0xff] %v385
      %s527 = scalar_lea.vmem [#allocation1], 7
      %528 = vst [vmem:[%s527] ss:$9 sm:$0xff] %v386
      %v529 = vld [vmem:[#allocation1] sm:$0xff]
      %530 = vst [vmem:[#allocation1] ss:$9 sm:$0xff] %v387
      %531 = vst [vmem:[%s515] ss:$9 sm:$0xff] %v388
      %532 = vst [vmem:[%s517] ss:$9 sm:$0xff] %v365
      %533 = vst [vmem:[%s519] ss:$9 sm:$0xff] %v389
      %534 = vst [vmem:[%s521] ss:$9 sm:$0xff] %v390
      %535 = vst [vmem:[%s523] ss:$9 sm:$0xff] %v391
      %536 = vst [vmem:[%s525] ss:$9 sm:$0xff] %v392
      %537 = vst [vmem:[%s527] ss:$9 sm:$0xff] %v366
      %v538 = vld [vmem:[#allocation1] sm:$0xff]
      %539 = vst [vmem:[#allocation1] ss:$9 sm:$0xff] %v393
      %540 = vst [vmem:[%s515] ss:$9 sm:$0xff] %v394
      %541 = vst [vmem:[%s517] ss:$9 sm:$0xff] %v395
      %542 = vst [vmem:[%s519] ss:$9 sm:$0xff] %v396
      %543 = vst [vmem:[%s521] ss:$9 sm:$0xff] %v367
      %544 = vst [vmem:[%s523] ss:$9 sm:$0xff] %v397
      %545 = vst [vmem:[%s525] ss:$9 sm:$0xff] %v398
      %546 = vst [vmem:[%s527] ss:$9 sm:$0xff] %v399
      %v547 = vld [vmem:[#allocation1] sm:$0xff]
      %548 = vst [vmem:[#allocation1] ss:$9 sm:$0xff] %v400
      %549 = vst [vmem:[%s515] ss:$9 sm:$0xff] %v368
      %550 = vst [vmem:[%s517] ss:$9 sm:$0xff] %v401
      %551 = vst [vmem:[%s519] ss:$9 sm:$0xff] %v402
      %552 = vst [vmem:[%s521] ss:$9 sm:$0xff] %v403
      %553 = vst [vmem:[%s523] ss:$9 sm:$0xff] %v404
      %554 = vst [vmem:[%s525] ss:$9 sm:$0xff] %v369
      %555 = vst [vmem:[%s527] ss:$9 sm:$0xff] %v405
      %v556 = vld [vmem:[#allocation1] sm:$0xff]
      %557 = vst [vmem:[#allocation1] ss:$9 sm:$0xff] %v406
      %558 = vst [vmem:[%s515] ss:$9 sm:$0xff] %v407
      %559 = vst [vmem:[%s517] ss:$9 sm:$0xff] %v408
      %560 = vst [vmem:[%s519] ss:$9 sm:$0xff] %v370
      %561 = vst [vmem:[%s521] ss:$9 sm:$0xff] %v409
      %562 = vst [vmem:[%s523] ss:$9 sm:$0xff] %v410
      %563 = vst [vmem:[%s525] ss:$9 sm:$0xff] %v411
      %564 = vst [vmem:[%s527] ss:$9 sm:$0xff] %v412
      %v565 = vld [vmem:[#allocation1] sm:$0xff]
      %567 = vst [vmem:[#allocation1] ss:$9 sm:$0xff] %v371
      %v568 = vld [vmem:[#allocation1] sm:$0xff]
      %vm569 = vsmask.f32 7424
      %v570 = vshrl.u32 %v529, 16
      %v572 = vshll.u32 %v529, 16
      %v574 = vrot.slane %v572, 1
      %v575 = vor.u32 %v570, %v574
      %v576 = vshll.u32 %v538, 16
      %v578 = vrot.slane %v576, 1
      %v579 = vsel %vm569, %v575, %v578
      %v580 = vshrl.u32 %v538, 16
      %v582 = vor.u32 %v580, %v578
      %v583 = vshll.u32 %v547, 16
      %v585 = vrot.slane %v583, 1
      %v586 = vsel %vm569, %v582, %v585
      %v587 = vshrl.u32 %v547, 16
      %v589 = vor.u32 %v587, %v585
      %v590 = vshll.u32 %v556, 16
      %v592 = vrot.slane %v590, 1
      %v593 = vsel %vm569, %v589, %v592
      %v594 = vshrl.u32 %v556, 16
      %v596 = vor.u32 %v594, %v592
      %v597 = vshll.u32 %v565, 16
      %v599 = vrot.slane %v597, 1
      %v600 = vsel %vm569, %v596, %v599
      %v601 = vshrl.u32 %v565, 16
      %v603 = vor.u32 %v601, %v599
      %v604 = vshll.u32 %v568, 16
      %v606 = vrot.slane %v604, 1
      %v607 = vsel %vm569, %v603, %v606
      %613 = vst [vmem:[#allocation1] ss:$9 sm:$0xff] %v381
      %s614 = scalar_lea.vmem [#allocation1], 1
      %615 = vst [vmem:[%s614] ss:$9 sm:$0xff] %v382
      %s616 = scalar_lea.vmem [#allocation1], 2
      %617 = vst [vmem:[%s616] ss:$9 sm:$0xff] %v383
      %s618 = scalar_lea.vmem [#allocation1], 3
      %619 = vst [vmem:[%s618] ss:$9 sm:$0xff] %v384
      %s620 = scalar_lea.vmem [#allocation1], 4
      %621 = vst [vmem:[%s620] ss:$9 sm:$0xff] %v364
      %s622 = scalar_lea.vmem [#allocation1], 5
      %623 = vst [vmem:[%s622] ss:$9 sm:$0xff] %v385
      %s624 = scalar_lea.vmem [#allocation1], 6
      %625 = vst [vmem:[%s624] ss:$9 sm:$0xff] %v386
      %s626 = scalar_lea.vmem [#allocation1], 7
      %627 = vst [vmem:[%s626] ss:$9 sm:$0xff] %v387
      %v628 = vld [vmem:[#allocation1] sm:$0xff]
      %629 = vst [vmem:[#allocation1] ss:$9 sm:$0xff] %v388
      %630 = vst [vmem:[%s614] ss:$9 sm:$0xff] %v365
      %631 = vst [vmem:[%s616] ss:$9 sm:$0xff] %v389
      %632 = vst [vmem:[%s618] ss:$9 sm:$0xff] %v390
      %633 = vst [vmem:[%s620] ss:$9 sm:$0xff] %v391
      %634 = vst [vmem:[%s622] ss:$9 sm:$0xff] %v392
      %635 = vst [vmem:[%s624] ss:$9 sm:$0xff] %v366
      %636 = vst [vmem:[%s626] ss:$9 sm:$0xff] %v393
      %v637 = vld [vmem:[#allocation1] sm:$0xff]
      %638 = vst [vmem:[#allocation1] ss:$9 sm:$0xff] %v394
      %639 = vst [vmem:[%s614] ss:$9 sm:$0xff] %v395
      %640 = vst [vmem:[%s616] ss:$9 sm:$0xff] %v396
      %641 = vst [vmem:[%s618] ss:$9 sm:$0xff] %v367
      %642 = vst [vmem:[%s620] ss:$9 sm:$0xff] %v397
      %643 = vst [vmem:[%s622] ss:$9 sm:$0xff] %v398
      %644 = vst [vmem:[%s624] ss:$9 sm:$0xff] %v399
      %645 = vst [vmem:[%s626] ss:$9 sm:$0xff] %v400
      %v646 = vld [vmem:[#allocation1] sm:$0xff]
      %647 = vst [vmem:[#allocation1] ss:$9 sm:$0xff] %v368
      %648 = vst [vmem:[%s614] ss:$9 sm:$0xff] %v401
      %649 = vst [vmem:[%s616] ss:$9 sm:$0xff] %v402
      %650 = vst [vmem:[%s618] ss:$9 sm:$0xff] %v403
      %651 = vst [vmem:[%s620] ss:$9 sm:$0xff] %v404
      %652 = vst [vmem:[%s622] ss:$9 sm:$0xff] %v369
      %653 = vst [vmem:[%s624] ss:$9 sm:$0xff] %v405
      %654 = vst [vmem:[%s626] ss:$9 sm:$0xff] %v406
      %v655 = vld [vmem:[#allocation1] sm:$0xff]
      %656 = vst [vmem:[#allocation1] ss:$9 sm:$0xff] %v407
      %657 = vst [vmem:[%s614] ss:$9 sm:$0xff] %v408
      %658 = vst [vmem:[%s616] ss:$9 sm:$0xff] %v370
      %659 = vst [vmem:[%s618] ss:$9 sm:$0xff] %v409
      %660 = vst [vmem:[%s620] ss:$9 sm:$0xff] %v410
      %661 = vst [vmem:[%s622] ss:$9 sm:$0xff] %v411
      %662 = vst [vmem:[%s624] ss:$9 sm:$0xff] %v412
      %663 = vst [vmem:[%s626] ss:$9 sm:$0xff] %v371
      %v664 = vld [vmem:[#allocation1] sm:$0xff]
      %670 = vst [vmem:[#allocation1] ss:$9 sm:$0xff] %v364
      %s671 = scalar_lea.vmem [#allocation1], 1
      %672 = vst [vmem:[%s671] ss:$9 sm:$0xff] %v385
      %s673 = scalar_lea.vmem [#allocation1], 2
      %674 = vst [vmem:[%s673] ss:$9 sm:$0xff] %v386
      %s675 = scalar_lea.vmem [#allocation1], 3
      %676 = vst [vmem:[%s675] ss:$9 sm:$0xff] %v387
      %s677 = scalar_lea.vmem [#allocation1], 4
      %678 = vst [vmem:[%s677] ss:$9 sm:$0xff] %v388
      %s679 = scalar_lea.vmem [#allocation1], 5
      %680 = vst [vmem:[%s679] ss:$9 sm:$0xff] %v365
      %s681 = scalar_lea.vmem [#allocation1], 6
      %682 = vst [vmem:[%s681] ss:$9 sm:$0xff] %v389
      %s683 = scalar_lea.vmem [#allocation1], 7
      %684 = vst [vmem:[%s683] ss:$9 sm:$0xff] %v390
      %v685 = vld [vmem:[#allocation1] sm:$0xff]
      %686 = vst [vmem:[#allocation1] ss:$9 sm:$0xff] %v391
      %687 = vst [vmem:[%s671] ss:$9 sm:$0xff] %v392
      %688 = vst [vmem:[%s673] ss:$9 sm:$0xff] %v366
      %689 = vst [vmem:[%s675] ss:$9 sm:$0xff] %v393
      %690 = vst [vmem:[%s677] ss:$9 sm:$0xff] %v394
      %691 = vst [vmem:[%s679] ss:$9 sm:$0xff] %v395
      %692 = vst [vmem:[%s681] ss:$9 sm:$0xff] %v396
      %693 = vst [vmem:[%s683] ss:$9 sm:$0xff] %v367
      %v694 = vld [vmem:[#allocation1] sm:$0xff]
      %695 = vst [vmem:[#allocation1] ss:$9 sm:$0xff] %v397
      %696 = vst [vmem:[%s671] ss:$9 sm:$0xff] %v398
      %697 = vst [vmem:[%s673] ss:$9 sm:$0xff] %v399
      %698 = vst [vmem:[%s675] ss:$9 sm:$0xff] %v400
      %699 = vst [vmem:[%s677] ss:$9 sm:$0xff] %v368
      %700 = vst [vmem:[%s679] ss:$9 sm:$0xff] %v401
      %701 = vst [vmem:[%s681] ss:$9 sm:$0xff] %v402
      %702 = vst [vmem:[%s683] ss:$9 sm:$0xff] %v403
      %v703 = vld [vmem:[#allocation1] sm:$0xff]
      %704 = vst [vmem:[#allocation1] ss:$9 sm:$0xff] %v404
      %705 = vst [vmem:[%s671] ss:$9 sm:$0xff] %v369
      %706 = vst [vmem:[%s673] ss:$9 sm:$0xff] %v405
      %707 = vst [vmem:[%s675] ss:$9 sm:$0xff] %v406
      %708 = vst [vmem:[%s677] ss:$9 sm:$0xff] %v407
      %709 = vst [vmem:[%s679] ss:$9 sm:$0xff] %v408
      %710 = vst [vmem:[%s681] ss:$9 sm:$0xff] %v370
      %711 = vst [vmem:[%s683] ss:$9 sm:$0xff] %v409
      %v712 = vld [vmem:[#allocation1] sm:$0xff]
      %713 = vst [vmem:[#allocation1] ss:$9 sm:$0xff] %v410
      %714 = vst [vmem:[%s671] ss:$9 sm:$0xff] %v411
      %715 = vst [vmem:[%s673] ss:$9 sm:$0xff] %v412
      %716 = vst [vmem:[%s675] ss:$9 sm:$0xff] %v371
      %718 = vst [vmem:[%s677] ss:$9 sm:$0xff] %v413
      %720 = vst [vmem:[%s679] ss:$9 sm:$0xff] %v414
      %722 = vst [vmem:[%s681] ss:$9 sm:$0xff] %v415
      %724 = vst [vmem:[%s683] ss:$9 sm:$0xff] %v416
      %v725 = vld [vmem:[#allocation1] sm:$0xff]
      %731 = vst [vmem:[#allocation1] ss:$9 sm:$0xff] %v364
      %s732 = scalar_lea.vmem [#allocation1], 1
      %733 = vst [vmem:[%s732] ss:$9 sm:$0xff] %v385
      %s734 = scalar_lea.vmem [#allocation1], 2
      %735 = vst [vmem:[%s734] ss:$9 sm:$0xff] %v386
      %s736 = scalar_lea.vmem [#allocation1], 3
      %737 = vst [vmem:[%s736] ss:$9 sm:$0xff] %v387
      %s738 = scalar_lea.vmem [#allocation1], 4
      %739 = vst [vmem:[%s738] ss:$9 sm:$0xff] %v388
      %s740 = scalar_lea.vmem [#allocation1], 5
      %741 = vst [vmem:[%s740] ss:$9 sm:$0xff] %v365
      %s742 = scalar_lea.vmem [#allocation1], 6
      %743 = vst [vmem:[%s742] ss:$9 sm:$0xff] %v389
      %s744 = scalar_lea.vmem [#allocation1], 7
      %745 = vst [vmem:[%s744] ss:$9 sm:$0xff] %v390
      %v746 = vld [vmem:[#allocation1] sm:$0xff]
      %747 = vst [vmem:[#allocation1] ss:$9 sm:$0xff] %v391
      %748 = vst [vmem:[%s732] ss:$9 sm:$0xff] %v392
      %749 = vst [vmem:[%s734] ss:$9 sm:$0xff] %v366
      %750 = vst [vmem:[%s736] ss:$9 sm:$0xff] %v393
      %751 = vst [vmem:[%s738] ss:$9 sm:$0xff] %v394
      %752 = vst [vmem:[%s740] ss:$9 sm:$0xff] %v395
      %753 = vst [vmem:[%s742] ss:$9 sm:$0xff] %v396
      %754 = vst [vmem:[%s744] ss:$9 sm:$0xff] %v367
      %v755 = vld [vmem:[#allocation1] sm:$0xff]
      %756 = vst [vmem:[#allocation1] ss:$9 sm:$0xff] %v397
      %757 = vst [vmem:[%s732] ss:$9 sm:$0xff] %v398
      %758 = vst [vmem:[%s734] ss:$9 sm:$0xff] %v399
      %759 = vst [vmem:[%s736] ss:$9 sm:$0xff] %v400
      %760 = vst [vmem:[%s738] ss:$9 sm:$0xff] %v368
      %761 = vst [vmem:[%s740] ss:$9 sm:$0xff] %v401
      %762 = vst [vmem:[%s742] ss:$9 sm:$0xff] %v402
      %763 = vst [vmem:[%s744] ss:$9 sm:$0xff] %v403
      %v764 = vld [vmem:[#allocation1] sm:$0xff]
      %765 = vst [vmem:[#allocation1] ss:$9 sm:$0xff] %v404
      %766 = vst [vmem:[%s732] ss:$9 sm:$0xff] %v369
      %767 = vst [vmem:[%s734] ss:$9 sm:$0xff] %v405
      %768 = vst [vmem:[%s736] ss:$9 sm:$0xff] %v406
      %769 = vst [vmem:[%s738] ss:$9 sm:$0xff] %v407
      %770 = vst [vmem:[%s740] ss:$9 sm:$0xff] %v408
      %771 = vst [vmem:[%s742] ss:$9 sm:$0xff] %v370
      %772 = vst [vmem:[%s744] ss:$9 sm:$0xff] %v409
      %v773 = vld [vmem:[#allocation1] sm:$0xff]
      %774 = vst [vmem:[#allocation1] ss:$9 sm:$0xff] %v410
      %775 = vst [vmem:[%s732] ss:$9 sm:$0xff] %v411
      %776 = vst [vmem:[%s734] ss:$9 sm:$0xff] %v412
      %777 = vst [vmem:[%s736] ss:$9 sm:$0xff] %v371
      %778 = vst [vmem:[%s738] ss:$9 sm:$0xff] %v413
      %779 = vst [vmem:[%s740] ss:$9 sm:$0xff] %v414
      %780 = vst [vmem:[%s742] ss:$9 sm:$0xff] %v415
      %781 = vst [vmem:[%s744] ss:$9 sm:$0xff] %v416
      %v782 = vld [vmem:[#allocation1] sm:$0xff]
      %783 = vst [vmem:[#allocation1] ss:$9 sm:$0xff] 0
      %v784 = vld [vmem:[#allocation1] sm:$0xff]
      %v785 = vshrl.u32 %v746, 16
      %v787 = vshll.u32 %v746, 16
      %v789 = vrot.slane %v787, 1
      %v790 = vor.u32 %v785, %v789
      %v791 = vshll.u32 %v755, 16
      %v793 = vrot.slane %v791, 1
      %v794 = vsel %vm569, %v790, %v793
      %v795 = vshrl.u32 %v755, 16
      %v797 = vor.u32 %v795, %v793
      %v798 = vshll.u32 %v764, 16
      %v800 = vrot.slane %v798, 1
      %v801 = vsel %vm569, %v797, %v800
      %v802 = vshrl.u32 %v764, 16
      %v804 = vor.u32 %v802, %v800
      %v805 = vshll.u32 %v773, 16
      %v807 = vrot.slane %v805, 1
      %v808 = vsel %vm569, %v804, %v807
      %v809 = vshrl.u32 %v773, 16
      %v811 = vor.u32 %v809, %v807
      %v812 = vshll.u32 %v782, 16
      %v814 = vrot.slane %v812, 1
      %v815 = vsel %vm569, %v811, %v814
      %v816 = vshrl.u32 %v782, 16
      %v818 = vor.u32 %v816, %v814
      %v819 = vshll.u32 %v784, 16
      %v821 = vrot.slane %v819, 1
      %v822 = vsel %vm569, %v818, %v821
      %828 = vst [vmem:[#allocation1] ss:$9 sm:$0xff] %v385
      %s829 = scalar_lea.vmem [#allocation1], 1
      %830 = vst [vmem:[%s829] ss:$9 sm:$0xff] %v386
      %s831 = scalar_lea.vmem [#allocation1], 2
      %832 = vst [vmem:[%s831] ss:$9 sm:$0xff] %v387
      %s833 = scalar_lea.vmem [#allocation1], 3
      %834 = vst [vmem:[%s833] ss:$9 sm:$0xff] %v388
      %s835 = scalar_lea.vmem [#allocation1], 4
      %836 = vst [vmem:[%s835] ss:$9 sm:$0xff] %v365
      %s837 = scalar_lea.vmem [#allocation1], 5
      %838 = vst [vmem:[%s837] ss:$9 sm:$0xff] %v389
      %s839 = scalar_lea.vmem [#allocation1], 6
      %840 = vst [vmem:[%s839] ss:$9 sm:$0xff] %v390
      %s841 = scalar_lea.vmem [#allocation1], 7
      %842 = vst [vmem:[%s841] ss:$9 sm:$0xff] %v391
      %v843 = vld [vmem:[#allocation1] sm:$0xff]
      %844 = vst [vmem:[#allocation1] ss:$9 sm:$0xff] %v392
      %845 = vst [vmem:[%s829] ss:$9 sm:$0xff] %v366
      %846 = vst [vmem:[%s831] ss:$9 sm:$0xff] %v393
      %847 = vst [vmem:[%s833] ss:$9 sm:$0xff] %v394
      %848 = vst [vmem:[%s835] ss:$9 sm:$0xff] %v395
      %849 = vst [vmem:[%s837] ss:$9 sm:$0xff] %v396
      %850 = vst [vmem:[%s839] ss:$9 sm:$0xff] %v367
      %851 = vst [vmem:[%s841] ss:$9 sm:$0xff] %v397
      %v852 = vld [vmem:[#allocation1] sm:$0xff]
      %853 = vst [vmem:[#allocation1] ss:$9 sm:$0xff] %v398
      %854 = vst [vmem:[%s829] ss:$9 sm:$0xff] %v399
      %855 = vst [vmem:[%s831] ss:$9 sm:$0xff] %v400
      %856 = vst [vmem:[%s833] ss:$9 sm:$0xff] %v368
      %857 = vst [vmem:[%s835] ss:$9 sm:$0xff] %v401
      %858 = vst [vmem:[%s837] ss:$9 sm:$0xff] %v402
      %859 = vst [vmem:[%s839] ss:$9 sm:$0xff] %v403
      %860 = vst [vmem:[%s841] ss:$9 sm:$0xff] %v404
      %v861 = vld [vmem:[#allocation1] sm:$0xff]
      %862 = vst [vmem:[#allocation1] ss:$9 sm:$0xff] %v369
      %863 = vst [vmem:[%s829] ss:$9 sm:$0xff] %v405
      %864 = vst [vmem:[%s831] ss:$9 sm:$0xff] %v406
      %865 = vst [vmem:[%s833] ss:$9 sm:$0xff] %v407
      %866 = vst [vmem:[%s835] ss:$9 sm:$0xff] %v408
      %867 = vst [vmem:[%s837] ss:$9 sm:$0xff] %v370
      %868 = vst [vmem:[%s839] ss:$9 sm:$0xff] %v409
      %869 = vst [vmem:[%s841] ss:$9 sm:$0xff] %v410
      %v870 = vld [vmem:[#allocation1] sm:$0xff]
      %871 = vst [vmem:[#allocation1] ss:$9 sm:$0xff] %v411
      %872 = vst [vmem:[%s829] ss:$9 sm:$0xff] %v412
      %873 = vst [vmem:[%s831] ss:$9 sm:$0xff] %v371
      %874 = vst [vmem:[%s833] ss:$9 sm:$0xff] %v413
      %875 = vst [vmem:[%s835] ss:$9 sm:$0xff] %v414
      %876 = vst [vmem:[%s837] ss:$9 sm:$0xff] %v415
      %877 = vst [vmem:[%s839] ss:$9 sm:$0xff] %v416
      %878 = vst [vmem:[%s841] ss:$9 sm:$0xff] 0
      %v879 = vld [vmem:[#allocation1] sm:$0xff]
      %885 = vst [vmem:[#allocation1] ss:$9 sm:$0xff] %v365
      %s886 = scalar_lea.vmem [#allocation1], 1
      %887 = vst [vmem:[%s886] ss:$9 sm:$0xff] %v389
      %s888 = scalar_lea.vmem [#allocation1], 2
      %889 = vst [vmem:[%s888] ss:$9 sm:$0xff] %v390
      %s890 = scalar_lea.vmem [#allocation1], 3
      %891 = vst [vmem:[%s890] ss:$9 sm:$0xff] %v391
      %s892 = scalar_lea.vmem [#allocation1], 4
      %893 = vst [vmem:[%s892] ss:$9 sm:$0xff] %v392
      %s894 = scalar_lea.vmem [#allocation1], 5
      %895 = vst [vmem:[%s894] ss:$9 sm:$0xff] %v366
      %s896 = scalar_lea.vmem [#allocation1], 6
      %897 = vst [vmem:[%s896] ss:$9 sm:$0xff] %v393
      %s898 = scalar_lea.vmem [#allocation1], 7
      %899 = vst [vmem:[%s898] ss:$9 sm:$0xff] %v394
      %v900 = vld [vmem:[#allocation1] sm:$0xff]
      %901 = vst [vmem:[#allocation1] ss:$9 sm:$0xff] %v395
      %902 = vst [vmem:[%s886] ss:$9 sm:$0xff] %v396
      %903 = vst [vmem:[%s888] ss:$9 sm:$0xff] %v367
      %904 = vst [vmem:[%s890] ss:$9 sm:$0xff] %v397
      %905 = vst [vmem:[%s892] ss:$9 sm:$0xff] %v398
      %906 = vst [vmem:[%s894] ss:$9 sm:$0xff] %v399
      %907 = vst [vmem:[%s896] ss:$9 sm:$0xff] %v400
      %908 = vst [vmem:[%s898] ss:$9 sm:$0xff] %v368
      %v909 = vld [vmem:[#allocation1] sm:$0xff]
      %910 = vst [vmem:[#allocation1] ss:$9 sm:$0xff] %v401
      %911 = vst [vmem:[%s886] ss:$9 sm:$0xff] %v402
      %912 = vst [vmem:[%s888] ss:$9 sm:$0xff] %v403
      %913 = vst [vmem:[%s890] ss:$9 sm:$0xff] %v404
      %914 = vst [vmem:[%s892] ss:$9 sm:$0xff] %v369
      %915 = vst [vmem:[%s894] ss:$9 sm:$0xff] %v405
      %916 = vst [vmem:[%s896] ss:$9 sm:$0xff] %v406
      %917 = vst [vmem:[%s898] ss:$9 sm:$0xff] %v407
      %v918 = vld [vmem:[#allocation1] sm:$0xff]
      %919 = vst [vmem:[#allocation1] ss:$9 sm:$0xff] %v408
      %920 = vst [vmem:[%s886] ss:$9 sm:$0xff] %v370
      %921 = vst [vmem:[%s888] ss:$9 sm:$0xff] %v409
      %922 = vst [vmem:[%s890] ss:$9 sm:$0xff] %v410
      %923 = vst [vmem:[%s892] ss:$9 sm:$0xff] %v411
      %924 = vst [vmem:[%s894] ss:$9 sm:$0xff] %v412
      %925 = vst [vmem:[%s896] ss:$9 sm:$0xff] %v371
      %926 = vst [vmem:[%s898] ss:$9 sm:$0xff] %v413
      %v927 = vld [vmem:[#allocation1] sm:$0xff]
      %928 = vst [vmem:[#allocation1] ss:$9 sm:$0xff] %v414
      %929 = vst [vmem:[%s886] ss:$9 sm:$0xff] %v415
      %930 = vst [vmem:[%s888] ss:$9 sm:$0xff] %v416
      %931 = vst [vmem:[%s890] ss:$9 sm:$0xff] 0
      %932 = vst [vmem:[%s892] ss:$9 sm:$0xff] %v381
      %933 = vst [vmem:[%s894] ss:$9 sm:$0xff] %v382
      %934 = vst [vmem:[%s896] ss:$9 sm:$0xff] %v383
      %935 = vst [vmem:[%s898] ss:$9 sm:$0xff] %v384
      %v936 = vld [vmem:[#allocation1] sm:$0xff]
      %942 = vst [vmem:[#allocation1] ss:$9 sm:$0xff] %v365
      %s943 = scalar_lea.vmem [#allocation1], 1
      %944 = vst [vmem:[%s943] ss:$9 sm:$0xff] %v389
      %s945 = scalar_lea.vmem [#allocation1], 2
      %946 = vst [vmem:[%s945] ss:$9 sm:$0xff] %v390
      %s947 = scalar_lea.vmem [#allocation1], 3
      %948 = vst [vmem:[%s947] ss:$9 sm:$0xff] %v391
      %s949 = scalar_lea.vmem [#allocation1], 4
      %950 = vst [vmem:[%s949] ss:$9 sm:$0xff] %v392
      %s951 = scalar_lea.vmem [#allocation1], 5
      %952 = vst [vmem:[%s951] ss:$9 sm:$0xff] %v366
      %s953 = scalar_lea.vmem [#allocation1], 6
      %954 = vst [vmem:[%s953] ss:$9 sm:$0xff] %v393
      %s955 = scalar_lea.vmem [#allocation1], 7
      %956 = vst [vmem:[%s955] ss:$9 sm:$0xff] %v394
      %v957 = vld [vmem:[#allocation1] sm:$0xff]
      %958 = vst [vmem:[#allocation1] ss:$9 sm:$0xff] %v395
      %959 = vst [vmem:[%s943] ss:$9 sm:$0xff] %v396
      %960 = vst [vmem:[%s945] ss:$9 sm:$0xff] %v367
      %961 = vst [vmem:[%s947] ss:$9 sm:$0xff] %v397
      %962 = vst [vmem:[%s949] ss:$9 sm:$0xff] %v398
      %963 = vst [vmem:[%s951] ss:$9 sm:$0xff] %v399
      %964 = vst [vmem:[%s953] ss:$9 sm:$0xff] %v400
      %965 = vst [vmem:[%s955] ss:$9 sm:$0xff] %v368
      %v966 = vld [vmem:[#allocation1] sm:$0xff]
      %967 = vst [vmem:[#allocation1] ss:$9 sm:$0xff] %v401
      %968 = vst [vmem:[%s943] ss:$9 sm:$0xff] %v402
      %969 = vst [vmem:[%s945] ss:$9 sm:$0xff] %v403
      %970 = vst [vmem:[%s947] ss:$9 sm:$0xff] %v404
      %971 = vst [vmem:[%s949] ss:$9 sm:$0xff] %v369
      %972 = vst [vmem:[%s951] ss:$9 sm:$0xff] %v405
      %973 = vst [vmem:[%s953] ss:$9 sm:$0xff] %v406
      %974 = vst [vmem:[%s955] ss:$9 sm:$0xff] %v407
      %v975 = vld [vmem:[#allocation1] sm:$0xff]
      %976 = vst [vmem:[#allocation1] ss:$9 sm:$0xff] %v408
      %977 = vst [vmem:[%s943] ss:$9 sm:$0xff] %v370
      %978 = vst [vmem:[%s945] ss:$9 sm:$0xff] %v409
      %979 = vst [vmem:[%s947] ss:$9 sm:$0xff] %v410
      %980 = vst [vmem:[%s949] ss:$9 sm:$0xff] %v411
      %981 = vst [vmem:[%s951] ss:$9 sm:$0xff] %v412
      %982 = vst [vmem:[%s953] ss:$9 sm:$0xff] %v371
      %983 = vst [vmem:[%s955] ss:$9 sm:$0xff] %v413
      %v984 = vld [vmem:[#allocation1] sm:$0xff]
      %985 = vst [vmem:[#allocation1] ss:$9 sm:$0xff] %v414
      %986 = vst [vmem:[%s943] ss:$9 sm:$0xff] %v415
      %987 = vst [vmem:[%s945] ss:$9 sm:$0xff] %v416
      %988 = vst [vmem:[%s947] ss:$9 sm:$0xff] 0
      %989 = vst [vmem:[%s949] ss:$9 sm:$0xff] %v381
      %990 = vst [vmem:[%s951] ss:$9 sm:$0xff] %v382
      %991 = vst [vmem:[%s953] ss:$9 sm:$0xff] %v383
      %992 = vst [vmem:[%s955] ss:$9 sm:$0xff] %v384
      %v993 = vld [vmem:[#allocation1] sm:$0xff]
      %994 = vst [vmem:[#allocation1] ss:$9 sm:$0xff] 0
      %v995 = vld [vmem:[#allocation1] sm:$0xff]
      %v996 = vshrl.u32 %v957, 16
      %v998 = vshll.u32 %v957, 16
      %v1000 = vrot.slane %v998, 1
      %v1001 = vor.u32 %v996, %v1000
      %v1002 = vshll.u32 %v966, 16
      %v1004 = vrot.slane %v1002, 1
      %v1005 = vsel %vm569, %v1001, %v1004
      %v1006 = vshrl.u32 %v966, 16
      %v1008 = vor.u32 %v1006, %v1004
      %v1009 = vshll.u32 %v975, 16
      %v1011 = vrot.slane %v1009, 1
      %v1012 = vsel %vm569, %v1008, %v1011
      %v1013 = vshrl.u32 %v975, 16
      %v1015 = vor.u32 %v1013, %v1011
      %v1016 = vshll.u32 %v984, 16
      %v1018 = vrot.slane %v1016, 1
      %v1019 = vsel %vm569, %v1015, %v1018
      %v1020 = vshrl.u32 %v984, 16
      %v1022 = vor.u32 %v1020, %v1018
      %v1023 = vshll.u32 %v993, 16
      %v1025 = vrot.slane %v1023, 1
      %v1026 = vsel %vm569, %v1022, %v1025
      %v1027 = vshrl.u32 %v993, 16
      %v1029 = vor.u32 %v1027, %v1025
      %v1030 = vshll.u32 %v995, 16
      %v1032 = vrot.slane %v1030, 1
      %v1033 = vsel %vm569, %v1029, %v1032
      %1039 = vst [vmem:[#allocation1] ss:$9 sm:$0xff] %v389
      %s1040 = scalar_lea.vmem [#allocation1], 1
      %1041 = vst [vmem:[%s1040] ss:$9 sm:$0xff] %v390
      %s1042 = scalar_lea.vmem [#allocation1], 2
      %1043 = vst [vmem:[%s1042] ss:$9 sm:$0xff] %v391
      %s1044 = scalar_lea.vmem [#allocation1], 3
      %1045 = vst [vmem:[%s1044] ss:$9 sm:$0xff] %v392
      %s1046 = scalar_lea.vmem [#allocation1], 4
      %1047 = vst [vmem:[%s1046] ss:$9 sm:$0xff] %v366
      %s1048 = scalar_lea.vmem [#allocation1], 5
      %1049 = vst [vmem:[%s1048] ss:$9 sm:$0xff] %v393
      %s1050 = scalar_lea.vmem [#allocation1], 6
      %1051 = vst [vmem:[%s1050] ss:$9 sm:$0xff] %v394
      %s1052 = scalar_lea.vmem [#allocation1], 7
      %1053 = vst [vmem:[%s1052] ss:$9 sm:$0xff] %v395
      %v1054 = vld [vmem:[#allocation1] sm:$0xff]
      %1055 = vst [vmem:[#allocation1] ss:$9 sm:$0xff] %v396
      %1056 = vst [vmem:[%s1040] ss:$9 sm:$0xff] %v367
      %1057 = vst [vmem:[%s1042] ss:$9 sm:$0xff] %v397
      %1058 = vst [vmem:[%s1044] ss:$9 sm:$0xff] %v398
      %1059 = vst [vmem:[%s1046] ss:$9 sm:$0xff] %v399
      %1060 = vst [vmem:[%s1048] ss:$9 sm:$0xff] %v400
      %1061 = vst [vmem:[%s1050] ss:$9 sm:$0xff] %v368
      %1062 = vst [vmem:[%s1052] ss:$9 sm:$0xff] %v401
      %v1063 = vld [vmem:[#allocation1] sm:$0xff]
      %1064 = vst [vmem:[#allocation1] ss:$9 sm:$0xff] %v402
      %1065 = vst [vmem:[%s1040] ss:$9 sm:$0xff] %v403
      %1066 = vst [vmem:[%s1042] ss:$9 sm:$0xff] %v404
      %1067 = vst [vmem:[%s1044] ss:$9 sm:$0xff] %v369
      %1068 = vst [vmem:[%s1046] ss:$9 sm:$0xff] %v405
      %1069 = vst [vmem:[%s1048] ss:$9 sm:$0xff] %v406
      %1070 = vst [vmem:[%s1050] ss:$9 sm:$0xff] %v407
      %1071 = vst [vmem:[%s1052] ss:$9 sm:$0xff] %v408
      %v1072 = vld [vmem:[#allocation1] sm:$0xff]
      %1073 = vst [vmem:[#allocation1] ss:$9 sm:$0xff] %v370
      %1074 = vst [vmem:[%s1040] ss:$9 sm:$0xff] %v409
      %1075 = vst [vmem:[%s1042] ss:$9 sm:$0xff] %v410
      %1076 = vst [vmem:[%s1044] ss:$9 sm:$0xff] %v411
      %1077 = vst [vmem:[%s1046] ss:$9 sm:$0xff] %v412
      %1078 = vst [vmem:[%s1048] ss:$9 sm:$0xff] %v371
      %1079 = vst [vmem:[%s1050] ss:$9 sm:$0xff] %v413
      %1080 = vst [vmem:[%s1052] ss:$9 sm:$0xff] %v414
      %v1081 = vld [vmem:[#allocation1] sm:$0xff]
      %1082 = vst [vmem:[#allocation1] ss:$9 sm:$0xff] %v415
      %1083 = vst [vmem:[%s1040] ss:$9 sm:$0xff] %v416
      %1084 = vst [vmem:[%s1042] ss:$9 sm:$0xff] 0
      %1085 = vst [vmem:[%s1044] ss:$9 sm:$0xff] %v381
      %1086 = vst [vmem:[%s1046] ss:$9 sm:$0xff] %v382
      %1087 = vst [vmem:[%s1048] ss:$9 sm:$0xff] %v383
      %1088 = vst [vmem:[%s1050] ss:$9 sm:$0xff] %v384
      %1089 = vst [vmem:[%s1052] ss:$9 sm:$0xff] 0
      %v1090 = vld [vmem:[#allocation1] sm:$0xff]
      %v1096 = vld [vmem:[%s2] sm:$0xf]
      %v1097 = vld [vmem:[%s2 + $0x4] sm:$0xf]
      %v1098 = vld [vmem:[%s2 + $0x8] sm:$0xf]
      %v1099 = vld [vmem:[%s2 + $0xc] sm:$0xf]
      %v1100 = vld [vmem:[%s2 + $0x10] sm:$0xf]
      %v1101 = vld [vmem:[%s2 + $0x14] sm:$0xf]
      %v1102 = vld [vmem:[%s2 + $0x18] sm:$0xf]
      %v1103 = vld [vmem:[%s2 + $0x1c] sm:$0xf]
      %v1104 = vld [vmem:[%s2 + $0x20] sm:$0xf]
      %v1105 = vld [vmem:[%s2 + $0x24] sm:$0xf]
      %v1106 = vld [vmem:[%s2 + $0x28] sm:$0xf]
      %v1107 = vld [vmem:[%s2 + $0x2c] sm:$0xf]
      %v1108 = vld [vmem:[%s2 + $0x30] sm:$0xf]
      %v1109 = vld [vmem:[%s2 + $0x34] sm:$0xf]
      %v1110 = vld [vmem:[%s2 + $0x38] sm:$0xf]
      %v1111 = vld [vmem:[%s2 + $0x3c] sm:$0xf]
      %v1112 = vld [vmem:[%s2 + $0x40] sm:$0xf]
      %v1113 = vld [vmem:[%s2 + $0x44] sm:$0xf]
      %v1114 = vld [vmem:[%s2 + $0x48] sm:$0xf]
      %v1115 = vld [vmem:[%s2 + $0x4c] sm:$0xf]
      %v1116 = vld [vmem:[%s2 + $0x50] sm:$0xf]
      %v1117 = vld [vmem:[%s2 + $0x54] sm:$0xf]
      %v1118 = vld [vmem:[%s2 + $0x58] sm:$0xf]
      %v1119 = vld [vmem:[%s2 + $0x5c] sm:$0xf]
      %v1120 = vld [vmem:[%s2 + $0x60] sm:$0xf]
      %v1121 = vld [vmem:[%s2 + $0x64] sm:$0xf]
      %v1122 = vld [vmem:[%s2 + $0x68] sm:$0xf]
      %v1123 = vld [vmem:[%s2 + $0x6c] sm:$0xf]
      %v1124 = vld [vmem:[%s2 + $0x70] sm:$0xf]
      %v1125 = vld [vmem:[%s2 + $0x74] sm:$0xf]
      %v1126 = vld [vmem:[%s2 + $0x78] sm:$0xf]
      %v1127 = vld [vmem:[%s2 + $0x7c] sm:$0xf]
      %v1128 = vld [vmem:[%s2 + $0x80] sm:$0xf]
      %v1129 = vld [vmem:[%s2 + $0x84] sm:$0xf]
      %v1130 = vld [vmem:[%s2 + $0x88] sm:$0xf]
      %v1131 = vld [vmem:[%s2 + $0x8c] sm:$0xf]
      %v1132 = vld [vmem:[%s2 + $0x90] sm:$0xf]
      %v1133 = vld [vmem:[%s2 + $0x94] sm:$0xf]
      %v1134 = vld [vmem:[%s2 + $0x98] sm:$0xf]
      %v1135 = vld [vmem:[%s2 + $0x9c] sm:$0xf]
      %v1136 = vld [vmem:[%s2 + $0xa0] sm:$0xf]
      %v1137 = vld [vmem:[%s2 + $0xa4] sm:$0xf]
      %v1138 = vld [vmem:[%s2 + $0xa8] sm:$0xf]
      %v1139 = vld [vmem:[%s2 + $0xac] sm:$0xf]
      %v1140 = vld [vmem:[%s2 + $0xb0] sm:$0xf]
      %v1141 = vld [vmem:[%s2 + $0xb4] sm:$0xf]
      %v1142 = vld [vmem:[%s2 + $0xb8] sm:$0xf]
      %v1143 = vld [vmem:[%s2 + $0xbc] sm:$0xf]
      %v1144 = vld [vmem:[%s2 + $0xc0] sm:$0xf]
      %v1145 = vld [vmem:[%s2 + $0xc4] sm:$0xf]
      %v1146 = vld [vmem:[%s2 + $0xc8] sm:$0xf]
      %v1147 = vld [vmem:[%s2 + $0xcc] sm:$0xf]
      %v1148 = vld [vmem:[%s2 + $0xd0] sm:$0xf]
      %v1149 = vld [vmem:[%s2 + $0xd4] sm:$0xf]
      %v1150 = vld [vmem:[%s2 + $0xd8] sm:$0xf]
      %v1151 = vld [vmem:[%s2 + $0xdc] sm:$0xf]
      %v1152 = vld [vmem:[%s2 + $0xe0] sm:$0xf]
      %v1153 = vld [vmem:[%s2 + $0xe4] sm:$0xf]
      %v1154 = vld [vmem:[%s2 + $0xe8] sm:$0xf]
      %v1155 = vld [vmem:[%s2 + $0xec] sm:$0xf]
      %v1156 = vld [vmem:[%s2 + $0xf0] sm:$0xf]
      %v1157 = vld [vmem:[%s2 + $0xf4] sm:$0xf]
      %v1158 = vld [vmem:[%s2 + $0xf8] sm:$0xf]
      %v1159 = vld [vmem:[%s2 + $0xfc] sm:$0xf]
      %v1160 = vld [vmem:[%s2 + $0x100] sm:$0xf]
      %v1161 = vld [vmem:[%s2 + $0x104] sm:$0xf]
      %v1162 = vld [vmem:[%s2 + $0x108] sm:$0xf]
      %v1163 = vld [vmem:[%s2 + $0x10c] sm:$0xf]
      %v1164 = vld [vmem:[%s2 + $0x110] sm:$0xf]
      %v1165 = vld [vmem:[%s2 + $0x114] sm:$0xf]
      %v1166 = vld [vmem:[%s2 + $0x118] sm:$0xf]
      %v1167 = vld [vmem:[%s2 + $0x11c] sm:$0xf]
      %v1168 = vld [vmem:[%s2 + $0x120] sm:$0xf]
      %v1169 = vld [vmem:[%s2 + $0x124] sm:$0xf]
      %v1170 = vld [vmem:[%s2 + $0x128] sm:$0xf]
      %v1171 = vld [vmem:[%s2 + $0x12c] sm:$0xf]
      %v1172 = vld [vmem:[%s2 + $0x130] sm:$0xf]
      %v1173 = vld [vmem:[%s2 + $0x134] sm:$0xf]
      %v1174 = vld [vmem:[%s2 + $0x138] sm:$0xf]
      %v1175 = vld [vmem:[%s2 + $0x13c] sm:$0xf]
      %v1176 = vld [vmem:[%s2 + $0x140] sm:$0xf]
      %v1177 = vld [vmem:[%s2 + $0x144] sm:$0xf]
      %v1178 = vld [vmem:[%s2 + $0x148] sm:$0xf]
      %v1179 = vld [vmem:[%s2 + $0x14c] sm:$0xf]
      %v1180 = vld [vmem:[%s2 + $0x150] sm:$0xf]
      %v1181 = vld [vmem:[%s2 + $0x154] sm:$0xf]
      %v1182 = vld [vmem:[%s2 + $0x158] sm:$0xf]
      %v1183 = vld [vmem:[%s2 + $0x15c] sm:$0xf]
      %v1184 = vld [vmem:[%s2 + $0x160] sm:$0xf]
      %v1185 = vld [vmem:[%s2 + $0x164] sm:$0xf]
      %v1186 = vld [vmem:[%s2 + $0x168] sm:$0xf]
      %v1187 = vld [vmem:[%s2 + $0x16c] sm:$0xf]
      %v1188 = vld [vmem:[%s2 + $0x170] sm:$0xf]
      %v1189 = vld [vmem:[%s2 + $0x174] sm:$0xf]
      %v1190 = vld [vmem:[%s2 + $0x178] sm:$0xf]
      %v1191 = vld [vmem:[%s2 + $0x17c] sm:$0xf]
      %v1192 = vld [vmem:[%s2 + $0x180] sm:$0xf]
      %v1193 = vld [vmem:[%s2 + $0x184] sm:$0xf]
      %v1194 = vld [vmem:[%s2 + $0x188] sm:$0xf]
      %v1195 = vld [vmem:[%s2 + $0x18c] sm:$0xf]
      %v1196 = vld [vmem:[%s2 + $0x190] sm:$0xf]
      %v1197 = vld [vmem:[%s2 + $0x194] sm:$0xf]
      %v1198 = vld [vmem:[%s2 + $0x198] sm:$0xf]
      %v1199 = vld [vmem:[%s2 + $0x19c] sm:$0xf]
      %v1200 = vld [vmem:[%s2 + $0x1a0] sm:$0xf]
      %v1201 = vld [vmem:[%s2 + $0x1a4] sm:$0xf]
      %v1202 = vld [vmem:[%s2 + $0x1a8] sm:$0xf]
      %v1203 = vld [vmem:[%s2 + $0x1ac] sm:$0xf]
      %v1204 = vld [vmem:[%s2 + $0x1b0] sm:$0xf]
      %v1205 = vld [vmem:[%s2 + $0x1b4] sm:$0xf]
      %v1206 = vld [vmem:[%s2 + $0x1b8] sm:$0xf]
      %v1207 = vld [vmem:[%s2 + $0x1bc] sm:$0xf]
      %v1208 = vld [vmem:[%s2 + $0x1c0] sm:$0xf]
      %v1209 = vld [vmem:[%s2 + $0x1c4] sm:$0xf]
      %v1210 = vld [vmem:[%s2 + $0x1c8] sm:$0xf]
      %v1211 = vld [vmem:[%s2 + $0x1cc] sm:$0xf]
      %v1212 = vld [vmem:[%s2 + $0x1d0] sm:$0xf]
      %v1213 = vld [vmem:[%s2 + $0x1d4] sm:$0xf]
      %v1214 = vld [vmem:[%s2 + $0x1d8] sm:$0xf]
      %v1215 = vld [vmem:[%s2 + $0x1dc] sm:$0xf]
      %v1216 = vld [vmem:[%s2 + $0x1e0] sm:$0xf]
      %v1217 = vld [vmem:[%s2 + $0x1e4] sm:$0xf]
      %v1218 = vld [vmem:[%s2 + $0x1e8] sm:$0xf]
      %v1219 = vld [vmem:[%s2 + $0x1ec] sm:$0xf]
      %v1220 = vld [vmem:[%s2 + $0x1f0] sm:$0xf]
      %v1221 = vld [vmem:[%s2 + $0x1f4] sm:$0xf]
      %v1222 = vld [vmem:[%s2 + $0x1f8] sm:$0xf]
      %v1223 = vld [vmem:[%s2 + $0x1fc] sm:$0xf]
      %v1224 = vld [vmem:[%s2 + $0x200] sm:$0xf]
      %v1225 = vld [vmem:[%s2 + $0x204] sm:$0xf]
      %v1226 = vld [vmem:[%s2 + $0x208] sm:$0xf]
      %v1227 = vld [vmem:[%s2 + $0x20c] sm:$0xf]
      %v1228 = vld [vmem:[%s2 + $0x210] sm:$0xf]
      %v1229 = vld [vmem:[%s2 + $0x214] sm:$0xf]
      %v1230 = vld [vmem:[%s2 + $0x218] sm:$0xf]
      %v1231 = vld [vmem:[%s2 + $0x21c] sm:$0xf]
      %v1232 = vld [vmem:[%s2 + $0x220] sm:$0xf]
      %v1233 = vld [vmem:[%s2 + $0x224] sm:$0xf]
      %v1234 = vld [vmem:[%s2 + $0x228] sm:$0xf]
      %v1235 = vld [vmem:[%s2 + $0x22c] sm:$0xf]
      %v1236 = vld [vmem:[%s2 + $0x230] sm:$0xf]
      %v1237 = vld [vmem:[%s2 + $0x234] sm:$0xf]
      %v1238 = vld [vmem:[%s2 + $0x238] sm:$0xf]
      %v1239 = vld [vmem:[%s2 + $0x23c] sm:$0xf]
      %v1384 = vunpack.c.l.b16 %v1096
      %v1385 = vunpack.c.l.b16 %v1097
      %v1386 = vunpack.c.l.b16 %v1098
      %v1387 = vunpack.c.l.b16 %v1099
      %v1388 = vunpack.c.l.b16 %v1100
      %v1389 = vunpack.c.l.b16 %v1101
      %v1390 = vunpack.c.l.b16 %v1102
      %v1391 = vunpack.c.l.b16 %v1103
      %v1392 = vunpack.c.l.b16 %v1104
      %v1393 = vunpack.c.l.b16 %v1105
      %v1394 = vunpack.c.l.b16 %v1106
      %v1395 = vunpack.c.l.b16 %v1107
      %v1396 = vunpack.c.l.b16 %v1108
      %v1397 = vunpack.c.l.b16 %v1109
      %v1398 = vunpack.c.l.b16 %v1110
      %v1399 = vunpack.c.l.b16 %v1111
      %v1400 = vunpack.c.l.b16 %v1112
      %v1401 = vunpack.c.l.b16 %v1113
      %v1402 = vunpack.c.l.b16 %v1114
      %v1403 = vunpack.c.l.b16 %v1115
      %v1404 = vunpack.c.l.b16 %v1116
      %v1405 = vunpack.c.l.b16 %v1117
      %v1406 = vunpack.c.l.b16 %v1118
      %v1407 = vunpack.c.l.b16 %v1119
      %v1408 = vunpack.c.l.b16 %v1120
      %v1409 = vunpack.c.l.b16 %v1121
      %v1410 = vunpack.c.l.b16 %v1122
      %v1411 = vunpack.c.l.b16 %v1123
      %v1412 = vunpack.c.l.b16 %v1124
      %v1413 = vunpack.c.l.b16 %v1125
      %v1414 = vunpack.c.l.b16 %v1126
      %v1415 = vunpack.c.l.b16 %v1127
      %v1416 = vunpack.c.l.b16 %v1128
      %v1417 = vunpack.c.l.b16 %v1129
      %v1418 = vunpack.c.l.b16 %v1130
      %v1419 = vunpack.c.l.b16 %v1131
      %v1420 = vunpack.c.l.b16 %v1132
      %v1421 = vunpack.c.l.b16 %v1133
      %v1422 = vunpack.c.l.b16 %v1134
      %v1423 = vunpack.c.l.b16 %v1135
      %v1424 = vunpack.c.l.b16 %v1136
      %v1425 = vunpack.c.l.b16 %v1137
      %v1426 = vunpack.c.l.b16 %v1138
      %v1427 = vunpack.c.l.b16 %v1139
      %v1428 = vunpack.c.l.b16 %v1140
      %v1429 = vunpack.c.l.b16 %v1141
      %v1430 = vunpack.c.l.b16 %v1142
      %v1431 = vunpack.c.l.b16 %v1143
      %v1432 = vunpack.c.l.b16 %v1144
      %v1433 = vunpack.c.l.b16 %v1145
      %v1434 = vunpack.c.l.b16 %v1146
      %v1435 = vunpack.c.l.b16 %v1147
      %v1436 = vunpack.c.l.b16 %v1148
      %v1437 = vunpack.c.l.b16 %v1149
      %v1438 = vunpack.c.l.b16 %v1150
      %v1439 = vunpack.c.l.b16 %v1151
      %v1440 = vunpack.c.l.b16 %v1152
      %v1441 = vunpack.c.l.b16 %v1153
      %v1442 = vunpack.c.l.b16 %v1154
      %v1443 = vunpack.c.l.b16 %v1155
      %v1444 = vunpack.c.l.b16 %v1156
      %v1445 = vunpack.c.l.b16 %v1157
      %v1446 = vunpack.c.l.b16 %v1158
      %v1447 = vunpack.c.l.b16 %v1159
      %v1448 = vunpack.c.l.b16 %v1160
      %v1449 = vunpack.c.l.b16 %v1161
      %v1450 = vunpack.c.l.b16 %v1162
      %v1451 = vunpack.c.l.b16 %v1163
      %v1452 = vunpack.c.l.b16 %v1164
      %v1453 = vunpack.c.l.b16 %v1165
      %v1454 = vunpack.c.l.b16 %v1166
      %v1455 = vunpack.c.l.b16 %v1167
      %v1456 = vunpack.c.l.b16 %v1168
      %v1457 = vunpack.c.l.b16 %v1169
      %v1458 = vunpack.c.l.b16 %v1170
      %v1459 = vunpack.c.l.b16 %v1171
      %v1460 = vunpack.c.l.b16 %v1172
      %v1461 = vunpack.c.l.b16 %v1173
      %v1462 = vunpack.c.l.b16 %v1174
      %v1463 = vunpack.c.l.b16 %v1175
      %v1464 = vunpack.c.l.b16 %v1176
      %v1465 = vunpack.c.l.b16 %v1177
      %v1466 = vunpack.c.l.b16 %v1178
      %v1467 = vunpack.c.l.b16 %v1179
      %v1468 = vunpack.c.l.b16 %v1180
      %v1469 = vunpack.c.l.b16 %v1181
      %v1470 = vunpack.c.l.b16 %v1182
      %v1471 = vunpack.c.l.b16 %v1183
      %v1472 = vunpack.c.l.b16 %v1184
      %v1473 = vunpack.c.l.b16 %v1185
      %v1474 = vunpack.c.l.b16 %v1186
      %v1475 = vunpack.c.l.b16 %v1187
      %v1476 = vunpack.c.l.b16 %v1188
      %v1477 = vunpack.c.l.b16 %v1189
      %v1478 = vunpack.c.l.b16 %v1190
      %v1479 = vunpack.c.l.b16 %v1191
      %v1480 = vunpack.c.l.b16 %v1192
      %v1481 = vunpack.c.l.b16 %v1193
      %v1482 = vunpack.c.l.b16 %v1194
      %v1483 = vunpack.c.l.b16 %v1195
      %v1484 = vunpack.c.l.b16 %v1196
      %v1485 = vunpack.c.l.b16 %v1197
      %v1486 = vunpack.c.l.b16 %v1198
      %v1487 = vunpack.c.l.b16 %v1199
      %v1488 = vunpack.c.l.b16 %v1200
      %v1489 = vunpack.c.l.b16 %v1201
      %v1490 = vunpack.c.l.b16 %v1202
      %v1491 = vunpack.c.l.b16 %v1203
      %v1492 = vunpack.c.l.b16 %v1204
      %v1493 = vunpack.c.l.b16 %v1205
      %v1494 = vunpack.c.l.b16 %v1206
      %v1495 = vunpack.c.l.b16 %v1207
      %v1496 = vunpack.c.l.b16 %v1208
      %v1497 = vunpack.c.l.b16 %v1209
      %v1498 = vunpack.c.l.b16 %v1210
      %v1499 = vunpack.c.l.b16 %v1211
      %v1500 = vunpack.c.l.b16 %v1212
      %v1501 = vunpack.c.l.b16 %v1213
      %v1502 = vunpack.c.l.b16 %v1214
      %v1503 = vunpack.c.l.b16 %v1215
      %v1504 = vunpack.c.l.b16 %v1216
      %v1505 = vunpack.c.l.b16 %v1217
      %v1506 = vunpack.c.l.b16 %v1218
      %v1507 = vunpack.c.l.b16 %v1219
      %v1508 = vunpack.c.l.b16 %v1220
      %v1509 = vunpack.c.l.b16 %v1221
      %v1510 = vunpack.c.l.b16 %v1222
      %v1511 = vunpack.c.l.b16 %v1223
      %v1512 = vunpack.c.l.b16 %v1224
      %v1513 = vunpack.c.l.b16 %v1225
      %v1514 = vunpack.c.l.b16 %v1226
      %v1515 = vunpack.c.l.b16 %v1227
      %v1516 = vunpack.c.l.b16 %v1228
      %v1517 = vunpack.c.l.b16 %v1229
      %v1518 = vunpack.c.l.b16 %v1230
      %v1519 = vunpack.c.l.b16 %v1231
      %v1520 = vunpack.c.l.b16 %v1232
      %v1521 = vunpack.c.l.b16 %v1233
      %v1522 = vunpack.c.l.b16 %v1234
      %v1523 = vunpack.c.l.b16 %v1235
      %v1524 = vunpack.c.l.b16 %v1236
      %v1525 = vunpack.c.l.b16 %v1237
      %v1526 = vunpack.c.l.b16 %v1238
      %v1527 = vunpack.c.l.b16 %v1239
      %v1528 = vpack.c.b16 %v1385, %v1384
      %v1529 = vpack.c.b16 %v1387, %v1386
      %v1530 = vpack.c.b16 %v1389, %v1388
      %v1531 = vpack.c.b16 %v1391, %v1390
      %v1532 = vpack.c.b16 %v1393, %v1392
      %v1533 = vpack.c.b16 %v1395, %v1394
      %v1534 = vpack.c.b16 %v1397, %v1396
      %v1535 = vpack.c.b16 %v1399, %v1398
      %v1536 = vpack.c.b16 %v1401, %v1400
      %v1537 = vpack.c.b16 %v1403, %v1402
      %v1538 = vpack.c.b16 %v1405, %v1404
      %v1539 = vpack.c.b16 %v1407, %v1406
      %v1540 = vpack.c.b16 %v1409, %v1408
      %v1541 = vpack.c.b16 %v1411, %v1410
      %v1542 = vpack.c.b16 %v1413, %v1412
      %v1543 = vpack.c.b16 %v1415, %v1414
      %v1544 = vpack.c.b16 %v1417, %v1416
      %v1545 = vpack.c.b16 %v1419, %v1418
      %v1546 = vpack.c.b16 %v1421, %v1420
      %v1547 = vpack.c.b16 %v1423, %v1422
      %v1548 = vpack.c.b16 %v1425, %v1424
      %v1549 = vpack.c.b16 %v1427, %v1426
      %v1550 = vpack.c.b16 %v1429, %v1428
      %v1551 = vpack.c.b16 %v1431, %v1430
      %v1552 = vpack.c.b16 %v1433, %v1432
      %v1553 = vpack.c.b16 %v1435, %v1434
      %v1554 = vpack.c.b16 %v1437, %v1436
      %v1555 = vpack.c.b16 %v1439, %v1438
      %v1556 = vpack.c.b16 %v1441, %v1440
      %v1557 = vpack.c.b16 %v1443, %v1442
      %v1558 = vpack.c.b16 %v1445, %v1444
      %v1559 = vpack.c.b16 %v1447, %v1446
      %v1560 = vpack.c.b16 %v1449, %v1448
      %v1561 = vpack.c.b16 %v1451, %v1450
      %v1562 = vpack.c.b16 %v1453, %v1452
      %v1563 = vpack.c.b16 %v1455, %v1454
      %v1564 = vpack.c.b16 %v1457, %v1456
      %v1565 = vpack.c.b16 %v1459, %v1458
      %v1566 = vpack.c.b16 %v1461, %v1460
      %v1567 = vpack.c.b16 %v1463, %v1462
      %v1568 = vpack.c.b16 %v1465, %v1464
      %v1569 = vpack.c.b16 %v1467, %v1466
      %v1570 = vpack.c.b16 %v1469, %v1468
      %v1571 = vpack.c.b16 %v1471, %v1470
      %v1572 = vpack.c.b16 %v1473, %v1472
      %v1573 = vpack.c.b16 %v1475, %v1474
      %v1574 = vpack.c.b16 %v1477, %v1476
      %v1575 = vpack.c.b16 %v1479, %v1478
      %v1576 = vpack.c.b16 %v1481, %v1480
      %v1577 = vpack.c.b16 %v1483, %v1482
      %v1578 = vpack.c.b16 %v1485, %v1484
      %v1579 = vpack.c.b16 %v1487, %v1486
      %v1580 = vpack.c.b16 %v1489, %v1488
      %v1581 = vpack.c.b16 %v1491, %v1490
      %v1582 = vpack.c.b16 %v1493, %v1492
      %v1583 = vpack.c.b16 %v1495, %v1494
      %v1584 = vpack.c.b16 %v1497, %v1496
      %v1585 = vpack.c.b16 %v1499, %v1498
      %v1586 = vpack.c.b16 %v1501, %v1500
      %v1587 = vpack.c.b16 %v1503, %v1502
      %v1588 = vpack.c.b16 %v1505, %v1504
      %v1589 = vpack.c.b16 %v1507, %v1506
      %v1590 = vpack.c.b16 %v1509, %v1508
      %v1591 = vpack.c.b16 %v1511, %v1510
      %v1592 = vpack.c.b16 %v1513, %v1512
      %v1593 = vpack.c.b16 %v1515, %v1514
      %v1594 = vpack.c.b16 %v1517, %v1516
      %v1595 = vpack.c.b16 %v1519, %v1518
      %v1596 = vpack.c.b16 %v1521, %v1520
      %v1597 = vpack.c.b16 %v1523, %v1522
      %v1598 = vpack.c.b16 %v1525, %v1524
      %v1599 = vpack.c.b16 %v1527, %v1526
      %1672 = vmatpush.bf16.msra.mxu0 %v1535
      %1673 = vmatpush.bf16.msra.mxu0 %v1534
      %1674 = vmatpush.bf16.msra.mxu0 %v1533
      %1675 = vmatpush.bf16.msra.mxu0 %v1532
      %1676 = vmatpush.bf16.msra.mxu0 %v1531
      %1677 = vmatpush.bf16.msra.mxu0 %v1530
      %1678 = vmatpush.bf16.msra.mxu0 %v1529
      %1679 = vmatpush.bf16.msra.mxu0 %v1528
      %1680 = vmatmul.bf16.gmra.mxu0 %v440
      %v1681 = vpop.f32.mrf.mxu0
      %v1682 = vadd.f32 0.0, %v1681
      %v1683 = vpop.f32.mrf.mxu0
      %v1684 = vadd.f32 0.0, %v1683
      %1685 = vmatmul.bf16.gmra.mxu0 %v457
      %v1686 = vpop.f32.mrf.mxu0
      %v1687 = vadd.f32 0.0, %v1686
      %v1688 = vpop.f32.mrf.mxu0
      %v1689 = vadd.f32 0.0, %v1688
      %1690 = vmatmul.bf16.gmra.mxu0 %v474
      %v1691 = vpop.f32.mrf.mxu0
      %v1692 = vadd.f32 0.0, %v1691
      %v1693 = vpop.f32.mrf.mxu0
      %v1694 = vadd.f32 0.0, %v1693
      %1695 = vmatmul.bf16.gmra.mxu0 %v491
      %v1696 = vpop.f32.mrf.mxu0
      %v1697 = vadd.f32 0.0, %v1696
      %v1698 = vpop.f32.mrf.mxu0
      %v1699 = vadd.f32 0.0, %v1698
      %1700 = vmatmul.bf16.gmra.mxu0 %v508
      %v1701 = vpop.f32.mrf.mxu0
      %v1702 = vadd.f32 0.0, %v1701
      %v1703 = vpop.f32.mrf.mxu0
      %v1704 = vadd.f32 0.0, %v1703
      %1705 = vdwg.mxu0
      %1706 = vmatpush.bf16.msra.mxu0 %v1543
      %1707 = vmatpush.bf16.msra.mxu0 %v1542
      %1708 = vmatpush.bf16.msra.mxu0 %v1541
      %1709 = vmatpush.bf16.msra.mxu0 %v1540
      %1710 = vmatpush.bf16.msra.mxu0 %v1539
      %1711 = vmatpush.bf16.msra.mxu0 %v1538
      %1712 = vmatpush.bf16.msra.mxu0 %v1537
      %1713 = vmatpush.bf16.msra.mxu0 %v1536
      %1714 = vmatmul.bf16.gmra.mxu0 %v579
      %v1715 = vpop.f32.mrf.mxu0
      %v1716 = vadd.f32 %v1682, %v1715
      %v1717 = vpop.f32.mrf.mxu0
      %v1718 = vadd.f32 %v1684, %v1717
      %1719 = vmatmul.bf16.gmra.mxu0 %v586
      %v1720 = vpop.f32.mrf.mxu0
      %v1721 = vadd.f32 %v1687, %v1720
      %v1722 = vpop.f32.mrf.mxu0
      %v1723 = vadd.f32 %v1689, %v1722
      %1724 = vmatmul.bf16.gmra.mxu0 %v593
      %v1725 = vpop.f32.mrf.mxu0
      %v1726 = vadd.f32 %v1692, %v1725
      %v1727 = vpop.f32.mrf.mxu0
      %v1728 = vadd.f32 %v1694, %v1727
      %1729 = vmatmul.bf16.gmra.mxu0 %v600
      %v1730 = vpop.f32.mrf.mxu0
      %v1731 = vadd.f32 %v1697, %v1730
      %v1732 = vpop.f32.mrf.mxu0
      %v1733 = vadd.f32 %v1699, %v1732
      %1734 = vmatmul.bf16.gmra.mxu0 %v607
      %v1735 = vpop.f32.mrf.mxu0
      %v1736 = vadd.f32 %v1702, %v1735
      %v1737 = vpop.f32.mrf.mxu0
      %v1738 = vadd.f32 %v1704, %v1737
      %1739 = vdwg.mxu0
      %1740 = vmatpush.bf16.msra.mxu0 %v1551
      %1741 = vmatpush.bf16.msra.mxu0 %v1550
      %1742 = vmatpush.bf16.msra.mxu0 %v1549
      %1743 = vmatpush.bf16.msra.mxu0 %v1548
      %1744 = vmatpush.bf16.msra.mxu0 %v1547
      %1745 = vmatpush.bf16.msra.mxu0 %v1546
      %1746 = vmatpush.bf16.msra.mxu0 %v1545
      %1747 = vmatpush.bf16.msra.mxu0 %v1544
      %1748 = vmatmul.bf16.gmra.mxu0 %v628
      %v1749 = vpop.f32.mrf.mxu0
      %v1750 = vadd.f32 %v1716, %v1749
      %v1751 = vpop.f32.mrf.mxu0
      %v1752 = vadd.f32 %v1718, %v1751
      %1753 = vmatmul.bf16.gmra.mxu0 %v637
      %v1754 = vpop.f32.mrf.mxu0
      %v1755 = vadd.f32 %v1721, %v1754
      %v1756 = vpop.f32.mrf.mxu0
      %v1757 = vadd.f32 %v1723, %v1756
      %1758 = vmatmul.bf16.gmra.mxu0 %v646
      %v1759 = vpop.f32.mrf.mxu0
      %v1760 = vadd.f32 %v1726, %v1759
      %v1761 = vpop.f32.mrf.mxu0
      %v1762 = vadd.f32 %v1728, %v1761
      %1763 = vmatmul.bf16.gmra.mxu0 %v655
      %v1764 = vpop.f32.mrf.mxu0
      %v1765 = vadd.f32 %v1731, %v1764
      %v1766 = vpop.f32.mrf.mxu0
      %v1767 = vadd.f32 %v1733, %v1766
      %1768 = vmatmul.bf16.gmra.mxu0 %v664
      %v1769 = vpop.f32.mrf.mxu0
      %v1770 = vadd.f32 %v1736, %v1769
      %v1771 = vpop.f32.mrf.mxu0
      %v1772 = vadd.f32 %v1738, %v1771
      %1773 = vdwg.mxu0
      %1774 = vmatpush.bf16.msra.mxu0 %v1559
      %1775 = vmatpush.bf16.msra.mxu0 %v1558
      %1776 = vmatpush.bf16.msra.mxu0 %v1557
      %1777 = vmatpush.bf16.msra.mxu0 %v1556
      %1778 = vmatpush.bf16.msra.mxu0 %v1555
      %1779 = vmatpush.bf16.msra.mxu0 %v1554
      %1780 = vmatpush.bf16.msra.mxu0 %v1553
      %1781 = vmatpush.bf16.msra.mxu0 %v1552
      %1782 = vmatmul.bf16.gmra.mxu0 %v685
      %v1783 = vpop.f32.mrf.mxu0
      %v1784 = vadd.f32 %v1750, %v1783
      %v1785 = vpop.f32.mrf.mxu0
      %v1786 = vadd.f32 %v1752, %v1785
      %1787 = vmatmul.bf16.gmra.mxu0 %v694
      %v1788 = vpop.f32.mrf.mxu0
      %v1789 = vadd.f32 %v1755, %v1788
      %v1790 = vpop.f32.mrf.mxu0
      %v1791 = vadd.f32 %v1757, %v1790
      %1792 = vmatmul.bf16.gmra.mxu0 %v703
      %v1793 = vpop.f32.mrf.mxu0
      %v1794 = vadd.f32 %v1760, %v1793
      %v1795 = vpop.f32.mrf.mxu0
      %v1796 = vadd.f32 %v1762, %v1795
      %1797 = vmatmul.bf16.gmra.mxu0 %v712
      %v1798 = vpop.f32.mrf.mxu0
      %v1799 = vadd.f32 %v1765, %v1798
      %v1800 = vpop.f32.mrf.mxu0
      %v1801 = vadd.f32 %v1767, %v1800
      %1802 = vmatmul.bf16.gmra.mxu0 %v725
      %v1803 = vpop.f32.mrf.mxu0
      %v1804 = vadd.f32 %v1770, %v1803
      %v1805 = vpop.f32.mrf.mxu0
      %v1806 = vadd.f32 %v1772, %v1805
      %1807 = vdwg.mxu0
      %1808 = vmatpush.bf16.msra.mxu0 %v1567
      %1809 = vmatpush.bf16.msra.mxu0 %v1566
      %1810 = vmatpush.bf16.msra.mxu0 %v1565
      %1811 = vmatpush.bf16.msra.mxu0 %v1564
      %1812 = vmatpush.bf16.msra.mxu0 %v1563
      %1813 = vmatpush.bf16.msra.mxu0 %v1562
      %1814 = vmatpush.bf16.msra.mxu0 %v1561
      %1815 = vmatpush.bf16.msra.mxu0 %v1560
      %1816 = vmatmul.bf16.gmra.mxu0 %v794
      %v1817 = vpop.f32.mrf.mxu0
      %v1818 = vadd.f32 %v1784, %v1817
      %v1819 = vpop.f32.mrf.mxu0
      %v1820 = vadd.f32 %v1786, %v1819
      %1821 = vmatmul.bf16.gmra.mxu0 %v801
      %v1822 = vpop.f32.mrf.mxu0
      %v1823 = vadd.f32 %v1789, %v1822
      %v1824 = vpop.f32.mrf.mxu0
      %v1825 = vadd.f32 %v1791, %v1824
      %1826 = vmatmul.bf16.gmra.mxu0 %v808
      %v1827 = vpop.f32.mrf.mxu0
      %v1828 = vadd.f32 %v1794, %v1827
      %v1829 = vpop.f32.mrf.mxu0
      %v1830 = vadd.f32 %v1796, %v1829
      %1831 = vmatmul.bf16.gmra.mxu0 %v815
      %v1832 = vpop.f32.mrf.mxu0
      %v1833 = vadd.f32 %v1799, %v1832
      %v1834 = vpop.f32.mrf.mxu0
      %v1835 = vadd.f32 %v1801, %v1834
      %1836 = vmatmul.bf16.gmra.mxu0 %v822
      %v1837 = vpop.f32.mrf.mxu0
      %v1838 = vadd.f32 %v1804, %v1837
      %v1839 = vpop.f32.mrf.mxu0
      %v1840 = vadd.f32 %v1806, %v1839
      %1841 = vdwg.mxu0
      %1842 = vmatpush.bf16.msra.mxu0 %v1575
      %1843 = vmatpush.bf16.msra.mxu0 %v1574
      %1844 = vmatpush.bf16.msra.mxu0 %v1573
      %1845 = vmatpush.bf16.msra.mxu0 %v1572
      %1846 = vmatpush.bf16.msra.mxu0 %v1571
      %1847 = vmatpush.bf16.msra.mxu0 %v1570
      %1848 = vmatpush.bf16.msra.mxu0 %v1569
      %1849 = vmatpush.bf16.msra.mxu0 %v1568
      %1850 = vmatmul.bf16.gmra.mxu0 %v843
      %v1851 = vpop.f32.mrf.mxu0
      %v1852 = vadd.f32 %v1818, %v1851
      %v1853 = vpop.f32.mrf.mxu0
      %v1854 = vadd.f32 %v1820, %v1853
      %1855 = vmatmul.bf16.gmra.mxu0 %v852
      %v1856 = vpop.f32.mrf.mxu0
      %v1857 = vadd.f32 %v1823, %v1856
      %v1858 = vpop.f32.mrf.mxu0
      %v1859 = vadd.f32 %v1825, %v1858
      %1860 = vmatmul.bf16.gmra.mxu0 %v861
      %v1861 = vpop.f32.mrf.mxu0
      %v1862 = vadd.f32 %v1828, %v1861
      %v1863 = vpop.f32.mrf.mxu0
      %v1864 = vadd.f32 %v1830, %v1863
      %1865 = vmatmul.bf16.gmra.mxu0 %v870
      %v1866 = vpop.f32.mrf.mxu0
      %v1867 = vadd.f32 %v1833, %v1866
      %v1868 = vpop.f32.mrf.mxu0
      %v1869 = vadd.f32 %v1835, %v1868
      %1870 = vmatmul.bf16.gmra.mxu0 %v879
      %v1871 = vpop.f32.mrf.mxu0
      %v1872 = vadd.f32 %v1838, %v1871
      %v1873 = vpop.f32.mrf.mxu0
      %v1874 = vadd.f32 %v1840, %v1873
      %1875 = vdwg.mxu0
      %1876 = vmatpush.bf16.msra.mxu0 %v1583
      %1877 = vmatpush.bf16.msra.mxu0 %v1582
      %1878 = vmatpush.bf16.msra.mxu0 %v1581
      %1879 = vmatpush.bf16.msra.mxu0 %v1580
      %1880 = vmatpush.bf16.msra.mxu0 %v1579
      %1881 = vmatpush.bf16.msra.mxu0 %v1578
      %1882 = vmatpush.bf16.msra.mxu0 %v1577
      %1883 = vmatpush.bf16.msra.mxu0 %v1576
      %1884 = vmatmul.bf16.gmra.mxu0 %v900
      %v1885 = vpop.f32.mrf.mxu0
      %v1886 = vadd.f32 %v1852, %v1885
      %v1887 = vpop.f32.mrf.mxu0
      %v1888 = vadd.f32 %v1854, %v1887
      %1889 = vmatmul.bf16.gmra.mxu0 %v909
      %v1890 = vpop.f32.mrf.mxu0
      %v1891 = vadd.f32 %v1857, %v1890
      %v1892 = vpop.f32.mrf.mxu0
      %v1893 = vadd.f32 %v1859, %v1892
      %1894 = vmatmul.bf16.gmra.mxu0 %v918
      %v1895 = vpop.f32.mrf.mxu0
      %v1896 = vadd.f32 %v1862, %v1895
      %v1897 = vpop.f32.mrf.mxu0
      %v1898 = vadd.f32 %v1864, %v1897
      %1899 = vmatmul.bf16.gmra.mxu0 %v927
      %v1900 = vpop.f32.mrf.mxu0
      %v1901 = vadd.f32 %v1867, %v1900
      %v1902 = vpop.f32.mrf.mxu0
      %v1903 = vadd.f32 %v1869, %v1902
      %1904 = vmatmul.bf16.gmra.mxu0 %v936
      %v1905 = vpop.f32.mrf.mxu0
      %v1906 = vadd.f32 %v1872, %v1905
      %v1907 = vpop.f32.mrf.mxu0
      %v1908 = vadd.f32 %v1874, %v1907
      %1909 = vdwg.mxu0
      %1910 = vmatpush.bf16.msra.mxu0 %v1591
      %1911 = vmatpush.bf16.msra.mxu0 %v1590
      %1912 = vmatpush.bf16.msra.mxu0 %v1589
      %1913 = vmatpush.bf16.msra.mxu0 %v1588
      %1914 = vmatpush.bf16.msra.mxu0 %v1587
      %1915 = vmatpush.bf16.msra.mxu0 %v1586
      %1916 = vmatpush.bf16.msra.mxu0 %v1585
      %1917 = vmatpush.bf16.msra.mxu0 %v1584
      %1918 = vmatmul.bf16.gmra.mxu0 %v1005
      %v1919 = vpop.f32.mrf.mxu0
      %v1920 = vadd.f32 %v1886, %v1919
      %v1921 = vpop.f32.mrf.mxu0
      %v1922 = vadd.f32 %v1888, %v1921
      %1923 = vmatmul.bf16.gmra.mxu0 %v1012
      %v1924 = vpop.f32.mrf.mxu0
      %v1925 = vadd.f32 %v1891, %v1924
      %v1926 = vpop.f32.mrf.mxu0
      %v1927 = vadd.f32 %v1893, %v1926
      %1928 = vmatmul.bf16.gmra.mxu0 %v1019
      %v1929 = vpop.f32.mrf.mxu0
      %v1930 = vadd.f32 %v1896, %v1929
      %v1931 = vpop.f32.mrf.mxu0
      %v1932 = vadd.f32 %v1898, %v1931
      %1933 = vmatmul.bf16.gmra.mxu0 %v1026
      %v1934 = vpop.f32.mrf.mxu0
      %v1935 = vadd.f32 %v1901, %v1934
      %v1936 = vpop.f32.mrf.mxu0
      %v1937 = vadd.f32 %v1903, %v1936
      %1938 = vmatmul.bf16.gmra.mxu0 %v1033
      %v1939 = vpop.f32.mrf.mxu0
      %v1940 = vadd.f32 %v1906, %v1939
      %v1941 = vpop.f32.mrf.mxu0
      %v1942 = vadd.f32 %v1908, %v1941
      %1943 = vdwg.mxu0
      %1944 = vmatpush.bf16.msra.mxu0 %v1599
      %1945 = vmatpush.bf16.msra.mxu0 %v1598
      %1946 = vmatpush.bf16.msra.mxu0 %v1597
      %1947 = vmatpush.bf16.msra.mxu0 %v1596
      %1948 = vmatpush.bf16.msra.mxu0 %v1595
      %1949 = vmatpush.bf16.msra.mxu0 %v1594
      %1950 = vmatpush.bf16.msra.mxu0 %v1593
      %1951 = vmatpush.bf16.msra.mxu0 %v1592
      %1952 = vmatmul.bf16.gmra.mxu0 %v1054
      %v1953 = vpop.f32.mrf.mxu0
      %v1954 = vadd.f32 %v1920, %v1953
      %v1955 = vpop.f32.mrf.mxu0
      %v1956 = vadd.f32 %v1922, %v1955
      %1957 = vmatmul.bf16.gmra.mxu0 %v1063
      %v1958 = vpop.f32.mrf.mxu0
      %v1959 = vadd.f32 %v1925, %v1958
      %v1960 = vpop.f32.mrf.mxu0
      %v1961 = vadd.f32 %v1927, %v1960
      %1962 = vmatmul.bf16.gmra.mxu0 %v1072
      %v1963 = vpop.f32.mrf.mxu0
      %v1964 = vadd.f32 %v1930, %v1963
      %v1965 = vpop.f32.mrf.mxu0
      %v1966 = vadd.f32 %v1932, %v1965
      %1967 = vmatmul.bf16.gmra.mxu0 %v1081
      %v1968 = vpop.f32.mrf.mxu0
      %v1969 = vadd.f32 %v1935, %v1968
      %v1970 = vpop.f32.mrf.mxu0
      %v1971 = vadd.f32 %v1937, %v1970
      %1972 = vmatmul.bf16.gmra.mxu0 %v1090
      %v1973 = vpop.f32.mrf.mxu0
      %v1974 = vadd.f32 %v1940, %v1973
      %v1975 = vpop.f32.mrf.mxu0
      %v1976 = vadd.f32 %v1942, %v1975
      %1977 = vdwg.mxu0
      %v1988 = vrot.slane %v1954, 2
      %v1989 = vrot.slane %v1954, 4
      %v1990 = vrot.slane %v1954, 6
      %v1991 = vrot.slane %v1956, 2
      %v1992 = vrot.slane %v1956, 4
      %v1993 = vrot.slane %v1956, 6
      %v1994 = vrot.slane %v1959, 4
      %v1995 = vrot.slane %v1959, 6
      %v1996 = vrot.slane %v1961, 2
      %v1997 = vrot.slane %v1961, 6
      %v1998 = vrot.slane %v1964, 2
      %v1999 = vrot.slane %v1964, 4
      %v2000 = vrot.slane %v1966, 2
      %v2001 = vrot.slane %v1966, 4
      %v2002 = vrot.slane %v1966, 6
      %v2003 = vrot.slane %v1969, 2
      %v2004 = vrot.slane %v1969, 4
      %v2005 = vrot.slane %v1969, 6
      %v2006 = vrot.slane %v1971, 4
      %v2007 = vrot.slane %v1971, 6
      %v2008 = vrot.slane %v1974, 2
      %v2009 = vrot.slane %v1974, 6
      %v2010 = vrot.slane %v1976, 2
      %v2011 = vrot.slane %v1976, 4
      %2036 = vst [vmem:[#allocation1] ss:$4 sm:$0xff] %v1954
      %s2037 = scalar_lea.vmem [#allocation1], 1
      %2038 = vst [vmem:[%s2037] ss:$4 sm:$0xff] %v1988
      %s2039 = scalar_lea.vmem [#allocation1], 2
      %2040 = vst [vmem:[%s2039] ss:$4 sm:$0xff] %v1989
      %s2041 = scalar_lea.vmem [#allocation1], 3
      %2042 = vst [vmem:[%s2041] ss:$4 sm:$0xff] %v1990
      %v2043 = vld.sshfl [vmem:[#allocation1] sm:$0xff pattern:$0x73625140]
      %s2044 = scalar_lea.vmem [#allocation1], 32
      %2045 = vst [vmem:[%s2044] ss:$4 sm:$0xff] %v1991
      %s2046 = scalar_lea.vmem [#allocation1], 33
      %2047 = vst [vmem:[%s2046] ss:$4 sm:$0xff] %v1992
      %s2048 = scalar_lea.vmem [#allocation1], 34
      %2049 = vst [vmem:[%s2048] ss:$4 sm:$0xff] %v1993
      %s2050 = scalar_lea.vmem [#allocation1], 35
      %2051 = vst [vmem:[%s2050] ss:$4 sm:$0xff] %v1959
      %v2052 = vld.sshfl [vmem:[#allocation1 + $0x20] sm:$0xff pattern:$0x73625140]
      %2053 = vst [vmem:[#allocation1] ss:$4 sm:$0xff] %v1994
      %2054 = vst [vmem:[%s2037] ss:$4 sm:$0xff] %v1995
      %2055 = vst [vmem:[%s2039] ss:$4 sm:$0xff] %v1961
      %2056 = vst [vmem:[%s2041] ss:$4 sm:$0xff] %v1996
      %v2057 = vld.sshfl [vmem:[#allocation1] sm:$0xff pattern:$0x73625140]
      %2058 = vst [vmem:[%s2044] ss:$4 sm:$0xff] %v1997
      %2059 = vst [vmem:[%s2046] ss:$4 sm:$0xff] %v1964
      %2060 = vst [vmem:[%s2048] ss:$4 sm:$0xff] %v1998
      %2061 = vst [vmem:[%s2050] ss:$4 sm:$0xff] %v1999
      %v2062 = vld.sshfl [vmem:[#allocation1 + $0x20] sm:$0xff pattern:$0x73625140]
      %2063 = vst [vmem:[#allocation1] ss:$4 sm:$0xff] %v1966
      %2064 = vst [vmem:[%s2037] ss:$4 sm:$0xff] %v2000
      %2065 = vst [vmem:[%s2039] ss:$4 sm:$0xff] %v2001
      %2066 = vst [vmem:[%s2041] ss:$4 sm:$0xff] %v2002
      %v2067 = vld.sshfl [vmem:[#allocation1] sm:$0xff pattern:$0x73625140]
      %2068 = vst [vmem:[%s2044] ss:$4 sm:$0xff] %v2003
      %2069 = vst [vmem:[%s2046] ss:$4 sm:$0xff] %v2004
      %2070 = vst [vmem:[%s2048] ss:$4 sm:$0xff] %v2005
      %2071 = vst [vmem:[%s2050] ss:$4 sm:$0xff] %v1971
      %v2072 = vld.sshfl [vmem:[#allocation1 + $0x20] sm:$0xff pattern:$0x73625140]
      %2073 = vst [vmem:[#allocation1] ss:$4 sm:$0xff] %v2006
      %2074 = vst [vmem:[%s2037] ss:$4 sm:$0xff] %v2007
      %2075 = vst [vmem:[%s2039] ss:$4 sm:$0xff] %v1974
      %2076 = vst [vmem:[%s2041] ss:$4 sm:$0xff] %v2008
      %v2077 = vld.sshfl [vmem:[#allocation1] sm:$0xff pattern:$0x73625140]
      %2078 = vst [vmem:[%s2044] ss:$4 sm:$0xff] %v2009
      %2079 = vst [vmem:[%s2046] ss:$4 sm:$0xff] %v1976
      %2080 = vst [vmem:[%s2048] ss:$4 sm:$0xff] %v2010
      %2081 = vst [vmem:[%s2050] ss:$4 sm:$0xff] %v2011
      %v2082 = vld.sshfl [vmem:[#allocation1 + $0x20] sm:$0xff pattern:$0x73625140]
      %v2091 = vadd.f32 %v2043, %v2052
      %v2092 = vadd.f32 %v2091, %v2057
      %v2093 = vadd.f32 %v2092, %v2062
      %v2094 = vadd.f32 %v2093, %v2067
      %v2095 = vadd.f32 %v2094, %v2072
      %v2096 = vadd.f32 %v2095, %v2077
      %v2097 = vadd.f32 %v2096, %v2082
      %v2098 = vrot.slane %v2097, 4
      %v2099 = vadd.f32 %v2097, %v2098
      %v2100 = vrot.slane %v2099, 2
      %v2101 = vadd.f32 %v2099, %v2100
      %v2102 = vrot.slane %v2101, 1
      %v2103 = vadd.f32 %v2101, %v2102
      %v2104 = vmul.f32 %v1954, %v1954
      %v2105 = vmul.f32 %v1988, %v1988
      %v2106 = vmul.f32 %v1989, %v1989
      %v2107 = vmul.f32 %v1990, %v1990
      %v2108 = vmul.f32 %v1991, %v1991
      %v2109 = vmul.f32 %v1992, %v1992
      %v2110 = vmul.f32 %v1993, %v1993
      %v2111 = vmul.f32 %v1959, %v1959
      %v2112 = vmul.f32 %v1994, %v1994
      %v2113 = vmul.f32 %v1995, %v1995
      %v2114 = vmul.f32 %v1961, %v1961
      %v2115 = vmul.f32 %v1996, %v1996
      %v2116 = vmul.f32 %v1997, %v1997
      %v2117 = vmul.f32 %v1964, %v1964
      %v2118 = vmul.f32 %v1998, %v1998
      %v2119 = vmul.f32 %v1999, %v1999
      %v2120 = vmul.f32 %v1966, %v1966
      %v2121 = vmul.f32 %v2000, %v2000
      %v2122 = vmul.f32 %v2001, %v2001
      %v2123 = vmul.f32 %v2002, %v2002
      %v2124 = vmul.f32 %v2003, %v2003
      %v2125 = vmul.f32 %v2004, %v2004
      %v2126 = vmul.f32 %v2005, %v2005
      %v2127 = vmul.f32 %v1971, %v1971
      %v2128 = vmul.f32 %v2006, %v2006
      %v2129 = vmul.f32 %v2007, %v2007
      %v2130 = vmul.f32 %v1974, %v1974
      %v2131 = vmul.f32 %v2008, %v2008
      %v2132 = vmul.f32 %v2009, %v2009
      %v2133 = vmul.f32 %v1976, %v1976
      %v2134 = vmul.f32 %v2010, %v2010
      %v2135 = vmul.f32 %v2011, %v2011
      %2168 = vst [vmem:[#allocation1] ss:$4 sm:$0xff] %v2104
      %s2169 = scalar_lea.vmem [#allocation1], 1
      %2170 = vst [vmem:[%s2169] ss:$4 sm:$0xff] %v2105
      %s2171 = scalar_lea.vmem [#allocation1], 2
      %2172 = vst [vmem:[%s2171] ss:$4 sm:$0xff] %v2106
      %s2173 = scalar_lea.vmem [#allocation1], 3
      %2174 = vst [vmem:[%s2173] ss:$4 sm:$0xff] %v2107
      %v2175 = vld.sshfl [vmem:[#allocation1] sm:$0xff pattern:$0x73625140]
      %s2176 = scalar_lea.vmem [#allocation1], 32
      %2177 = vst [vmem:[%s2176] ss:$4 sm:$0xff] %v2108
      %s2178 = scalar_lea.vmem [#allocation1], 33
      %2179 = vst [vmem:[%s2178] ss:$4 sm:$0xff] %v2109
      %s2180 = scalar_lea.vmem [#allocation1], 34
      %2181 = vst [vmem:[%s2180] ss:$4 sm:$0xff] %v2110
      %s2182 = scalar_lea.vmem [#allocation1], 35
      %2183 = vst [vmem:[%s2182] ss:$4 sm:$0xff] %v2111
      %v2184 = vld.sshfl [vmem:[#allocation1 + $0x20] sm:$0xff pattern:$0x73625140]
      %2185 = vst [vmem:[#allocation1] ss:$4 sm:$0xff] %v2112
      %2186 = vst [vmem:[%s2169] ss:$4 sm:$0xff] %v2113
      %2187 = vst [vmem:[%s2171] ss:$4 sm:$0xff] %v2114
      %2188 = vst [vmem:[%s2173] ss:$4 sm:$0xff] %v2115
      %v2189 = vld.sshfl [vmem:[#allocation1] sm:$0xff pattern:$0x73625140]
      %2190 = vst [vmem:[%s2176] ss:$4 sm:$0xff] %v2116
      %2191 = vst [vmem:[%s2178] ss:$4 sm:$0xff] %v2117
      %2192 = vst [vmem:[%s2180] ss:$4 sm:$0xff] %v2118
      %2193 = vst [vmem:[%s2182] ss:$4 sm:$0xff] %v2119
      %v2194 = vld.sshfl [vmem:[#allocation1 + $0x20] sm:$0xff pattern:$0x73625140]
      %2195 = vst [vmem:[#allocation1] ss:$4 sm:$0xff] %v2120
      %2196 = vst [vmem:[%s2169] ss:$4 sm:$0xff] %v2121
      %2197 = vst [vmem:[%s2171] ss:$4 sm:$0xff] %v2122
      %2198 = vst [vmem:[%s2173] ss:$4 sm:$0xff] %v2123
      %v2199 = vld.sshfl [vmem:[#allocation1] sm:$0xff pattern:$0x73625140]
      %2200 = vst [vmem:[%s2176] ss:$4 sm:$0xff] %v2124
      %2201 = vst [vmem:[%s2178] ss:$4 sm:$0xff] %v2125
      %2202 = vst [vmem:[%s2180] ss:$4 sm:$0xff] %v2126
      %2203 = vst [vmem:[%s2182] ss:$4 sm:$0xff] %v2127
      %v2204 = vld.sshfl [vmem:[#allocation1 + $0x20] sm:$0xff pattern:$0x73625140]
      %2205 = vst [vmem:[#allocation1] ss:$4 sm:$0xff] %v2128
      %2206 = vst [vmem:[%s2169] ss:$4 sm:$0xff] %v2129
      %2207 = vst [vmem:[%s2171] ss:$4 sm:$0xff] %v2130
      %2208 = vst [vmem:[%s2173] ss:$4 sm:$0xff] %v2131
      %v2209 = vld.sshfl [vmem:[#allocation1] sm:$0xff pattern:$0x73625140]
      %2210 = vst [vmem:[%s2176] ss:$4 sm:$0xff] %v2132
      %2211 = vst [vmem:[%s2178] ss:$4 sm:$0xff] %v2133
      %2212 = vst [vmem:[%s2180] ss:$4 sm:$0xff] %v2134
      %2213 = vst [vmem:[%s2182] ss:$4 sm:$0xff] %v2135
      %v2214 = vld.sshfl [vmem:[#allocation1 + $0x20] sm:$0xff pattern:$0x73625140]
      %v2223 = vadd.f32 %v2175, %v2184
      %v2224 = vadd.f32 %v2223, %v2189
      %v2225 = vadd.f32 %v2224, %v2194
      %v2226 = vadd.f32 %v2225, %v2199
      %v2227 = vadd.f32 %v2226, %v2204
      %v2228 = vadd.f32 %v2227, %v2209
      %v2229 = vadd.f32 %v2228, %v2214
      %v2230 = vrot.slane %v2229, 4
      %v2231 = vadd.f32 %v2229, %v2230
      %v2232 = vrot.slane %v2231, 2
      %v2233 = vadd.f32 %v2231, %v2232
      %v2234 = vrot.slane %v2233, 1
      %v2235 = vadd.f32 %v2233, %v2234
      %2236 = vst [vmem:[%s208] sm:$0x1] %v2103
      %2237 = vst [vmem:[%s208 + $0x1] sm:$0x1] %v2235
      %2238 = vst [vmem:[#allocation1] ss:$4 sm:$0xff] %v1954
      %s2239 = scalar_lea.vmem [#allocation1], 1
      %2240 = vst [vmem:[%s2239] ss:$4 sm:$0xff] %v1988
      %s2241 = scalar_lea.vmem [#allocation1], 2
      %2242 = vst [vmem:[%s2241] ss:$4 sm:$0xff] %v1989
      %s2243 = scalar_lea.vmem [#allocation1], 3
      %2244 = vst [vmem:[%s2243] ss:$4 sm:$0xff] %v1990
      %v2245 = vld.sshfl [vmem:[#allocation1] sm:$0xff pattern:$0x73625140]
      %s2246 = scalar_lea.vmem [#allocation1], 32
      %2247 = vst [vmem:[%s2246] ss:$4 sm:$0xff] %v1991
      %s2248 = scalar_lea.vmem [#allocation1], 33
      %2249 = vst [vmem:[%s2248] ss:$4 sm:$0xff] %v1992
      %s2250 = scalar_lea.vmem [#allocation1], 34
      %2251 = vst [vmem:[%s2250] ss:$4 sm:$0xff] %v1993
      %s2252 = scalar_lea.vmem [#allocation1], 35
      %2253 = vst [vmem:[%s2252] ss:$4 sm:$0xff] %v1959
      %v2254 = vld.sshfl [vmem:[#allocation1 + $0x20] sm:$0xff pattern:$0x73625140]
      %2255 = vst [vmem:[#allocation1] ss:$4 sm:$0xff] %v1994
      %2256 = vst [vmem:[%s2239] ss:$4 sm:$0xff] %v1995
      %2257 = vst [vmem:[%s2241] ss:$4 sm:$0xff] %v1961
      %2258 = vst [vmem:[%s2243] ss:$4 sm:$0xff] %v1996
      %v2259 = vld.sshfl [vmem:[#allocation1] sm:$0xff pattern:$0x73625140]
      %2260 = vst [vmem:[%s2246] ss:$4 sm:$0xff] %v1997
      %2261 = vst [vmem:[%s2248] ss:$4 sm:$0xff] %v1964
      %2262 = vst [vmem:[%s2250] ss:$4 sm:$0xff] %v1998
      %2263 = vst [vmem:[%s2252] ss:$4 sm:$0xff] %v1999
      %v2264 = vld.sshfl [vmem:[#allocation1 + $0x20] sm:$0xff pattern:$0x73625140]
      %2265 = vst [vmem:[#allocation1] ss:$4 sm:$0xff] %v1966
      %2266 = vst [vmem:[%s2239] ss:$4 sm:$0xff] %v2000
      %2267 = vst [vmem:[%s2241] ss:$4 sm:$0xff] %v2001
      %2268 = vst [vmem:[%s2243] ss:$4 sm:$0xff] %v2002
      %v2269 = vld.sshfl [vmem:[#allocation1] sm:$0xff pattern:$0x73625140]
      %2270 = vst [vmem:[%s2246] ss:$4 sm:$0xff] %v2003
      %2271 = vst [vmem:[%s2248] ss:$4 sm:$0xff] %v2004
      %2272 = vst [vmem:[%s2250] ss:$4 sm:$0xff] %v2005
      %2273 = vst [vmem:[%s2252] ss:$4 sm:$0xff] %v1971
      %v2274 = vld.sshfl [vmem:[#allocation1 + $0x20] sm:$0xff pattern:$0x73625140]
      %2275 = vst [vmem:[#allocation1] ss:$4 sm:$0xff] %v2006
      %2276 = vst [vmem:[%s2239] ss:$4 sm:$0xff] %v2007
      %2277 = vst [vmem:[%s2241] ss:$4 sm:$0xff] %v1974
      %2278 = vst [vmem:[%s2243] ss:$4 sm:$0xff] %v2008
      %v2279 = vld.sshfl [vmem:[#allocation1] sm:$0xff pattern:$0x73625140]
      %2280 = vst [vmem:[%s2246] ss:$4 sm:$0xff] %v2009
      %2281 = vst [vmem:[%s2248] ss:$4 sm:$0xff] %v1976
      %2282 = vst [vmem:[%s2250] ss:$4 sm:$0xff] %v2010
      %2283 = vst [vmem:[%s2252] ss:$4 sm:$0xff] %v2011
      %v2284 = vld.sshfl [vmem:[#allocation1 + $0x20] sm:$0xff pattern:$0x73625140]
      %v2293 = vpack.c.bf16 %v2245, %v2245
      %v2294 = vpack.c.bf16 %v2254, %v2254
      %v2295 = vpack.c.bf16 %v2259, %v2259
      %v2296 = vpack.c.bf16 %v2264, %v2264
      %v2297 = vpack.c.bf16 %v2269, %v2269
      %v2298 = vpack.c.bf16 %v2274, %v2274
      %v2299 = vpack.c.bf16 %v2279, %v2279
      %v2300 = vpack.c.bf16 %v2284, %v2284
      %2301 = vst [vmem:[%s204] sm:$0xf] %v2293
      %2302 = vst [vmem:[%s204 + $0x4] sm:$0xf] %v2294
      %2303 = vst [vmem:[%s204 + $0x8] sm:$0xf] %v2295
      %2304 = vst [vmem:[%s204 + $0xc] sm:$0xf] %v2296
      %2305 = vst [vmem:[%s204 + $0x10] sm:$0xf] %v2297
      %2306 = vst [vmem:[%s204 + $0x14] sm:$0xf] %v2298
      %2307 = vst [vmem:[%s204 + $0x18] sm:$0xf] %v2299
      %2308 = vst [vmem:[%s204 + $0x1c] sm:$0xf] %v2300
      %p2309 = scmp.lt.s32.totalorder %s16, 1
      %s2310 = scalar_select %p2309, %s16, 1
      %s2311 = smul.addr %s2310, 8
      %s2312 = smul.addr %s2311, 4
      %s2313 = scalar_lea.vmem %s3, %s2312
      %p2314 = scmp.lt.s32.totalorder %s16, 1
      %s2315 = scalar_select %p2314, %s16, 1
      %s2316 = smul.addr %s2315, 2
      %s2317 = scalar_lea.vmem %s4, %s2316
      // Predicated region
      $region33: #{basic_block_forward.4} parent=31 // pred_check
        %p2318 = pneg %p102
      $region34: #{basic_block_forward.4} parent=31 // pred_check_branch
        %2320 = sbr.rel (%p2318) target = $region36
      $region35: #{basic_block_forward.4} parent=31 // pred_region
        _
      $region36: #{basic_block_forward.4} parent=31 // pred_fallthru
        _
      // Predicated region
      $region37: #{basic_block_forward.4} parent=31 // pred_check
        %p2321 = pneg %p128
      $region38: #{basic_block_forward.4} parent=31 // pred_check_branch
        %2323 = sbr.rel (%p2321) target = $region40
      $region39: #{basic_block_forward.4} parent=31 // pred_region
        _
      $region40: #{basic_block_forward.4} parent=31 // pred_fallthru
        _
    $region32: #{basic_block_forward.4} parent=5 // pred_fallthru
      _
    %p2324 = scmp.le.s32.totalorder 2, %s11
    // Predicated region
    $region41: #{basic_block_forward.4} parent=5 // pred_check
      %p2325 = pneg %p2324
    $region42: #{basic_block_forward.4} parent=5 // pred_check_branch
      %2327 = sbr.rel (%p2325) target = $region44
    $region43: #{basic_block_forward.4} parent=5 // pred_region
      %s2328 = ssub.s32 %s11, 2
      // Predicated region
      $region45: #{basic_block_forward.4} parent=43 // pred_check
        %p2329 = pneg %p108
      $region46: #{basic_block_forward.4} parent=43 // pred_check_branch
        %2331 = sbr.rel (%p2329) target = $region48
      $region47: #{basic_block_forward.4} parent=43 // pred_region
        %p2332 = scmp.lt.s32.totalorder %s17, 1
        %s2333 = scalar_select %p2332, %s17, 1
        %s2334 = smul.addr %s2333, 8
        %s2335 = smul.addr %s2334, 4
        %s2336 = scalar_lea.vmem %s3, %s2335
      $region48: #{basic_block_forward.4} parent=43 // pred_fallthru
        _
      // Predicated region
      $region49: #{basic_block_forward.4} parent=43 // pred_check
        %p2337 = pneg %p134
      $region50: #{basic_block_forward.4} parent=43 // pred_check_branch
        %2339 = sbr.rel (%p2337) target = $region52
      $region51: #{basic_block_forward.4} parent=43 // pred_region
        %p2340 = scmp.lt.s32.totalorder %s17, 1
        %s2341 = scalar_select %p2340, %s17, 1
        %s2342 = smul.addr %s2341, 2
        %s2343 = scalar_lea.vmem %s4, %s2342
      $region52: #{basic_block_forward.4} parent=43 // pred_fallthru
        _
    $region44: #{basic_block_forward.4} parent=5 // pred_fallthru
      _
  $region6: #{basic_block_forward.4} parent=0 // loop_footer
    %s15 = sadd.s32 1, %s11
  $region7: #{basic_block_forward.4} parent=0 // loop_footer_branch
    %10 = sbr.rel target = $region3
  $region8: #{basic_block_forward.4} parent=0 // loop_exit
    _

// kernel: basic_block_forward.3
$region0: #{basic_block_forward.3}
  #allocation0 [shape = 'u32[]', space=smem, size = 0x4, offset = 0x4, fixed_abs, tag = 'smem constant byte address 0x4 - core index']
  #allocation1 [shape = 'u32[72,128]{1,0:T(1,128)}', space=vmem, size = 0x9000, scoped, tag = 'internal scratch']
  %s0 = inlined_call_operand.vmem [shape: bf16[8,88,128], index: 0, kind: input, shape index: {}]
  %s1 = inlined_call_operand.vmem [shape: bf16[1152,128], index: 1, kind: input, shape index: {}]
  %s2 = inlined_call_operand.vmem [shape: bf16[128,128], index: 2, kind: input, shape index: {}]
  %s3 = inlined_call_operand.vmem [shape: bf16[2,8,8,128], index: 3, kind: output, shape index: {0}]
  %s4 = inlined_call_operand.vmem [shape: bf16[2,8,8,128], index: 4, kind: output, shape index: {1}]
  %s5 = inlined_call_operand.vmem [shape: f32[2,2,128], index: 5, kind: output, shape index: {2}]
  %s6 = inlined_call_operand.vmem [shape: f32[2,2,128], index: 6, kind: output, shape index: {3}]
  %7 = xla_tuple %s3, %s4, %s5, %s6
  %s8 = sld [smem:[#allocation0]]
  $region69: #{basic_block_forward.3} parent=0
    _
  %s10 = ssub.s32 1, %s8
  %s11 = scalar_select 0, %s10, %s8
  loop: start=0, step=1, limit=4
  $region2: #{basic_block_forward.3} parent=0 // loop_pre_header
    _
  $region3: #{basic_block_forward.3} parent=0 // loop_header
    %s13 = sphi 0, %s17
    %p14 = scmp.ge.s32.totalorder %s13, 4
    %s23 = sphi 0, %s25
    %s26 = sphi 0, %s23
    %s27 = sphi 0, %s26
    %s43 = sphi 0, %s27
    %s47 = sphi 0, %s47
    %s49 = sphi 0, %s47
    %s50 = sphi 0, %s49
    %s64 = sphi 0, %s50
    %s68 = sphi 0, %s68
    %s70 = sphi 0, %s68
    %s71 = sphi 0, %s70
    %s85 = sphi 0, %s71
    %s91 = sphi 0, %s93
    %s94 = sphi 0, %s91
    %s95 = sphi 0, %s94
    %s111 = sphi 0, %s95
    %s117 = sphi 0, %s119
    %s120 = sphi 0, %s117
    %s121 = sphi 0, %s120
    %s137 = sphi 0, %s121
    %s143 = sphi 0, %s145
    %s146 = sphi 0, %s143
    %s147 = sphi 0, %s146
    %s163 = sphi 0, %s147
    %s169 = sphi 0, %s171
    %s172 = sphi 0, %s169
    %s173 = sphi 0, %s172
    %s189 = sphi 0, %s173
  $region4: #{basic_block_forward.3} parent=0 // loop_header_branch
    %16 = sbr.rel (%p14) target = $region8
  $region5: #{basic_block_forward.3} parent=0 // loop_body
    %s18 = ssub.s32 %s13, 1
    %s19 = ssub.s32 %s13, 2
    %s20 = sadd.s32 %s13, 1
    %s21 = ssub.s32 %s13, %s20
    %p22 = scmp.eq.s32.totalorder %s21, 0
    %s24 = sadd.s32 %s23, 1
    %s25 = scalar_select %p22, %s23, %s24
    %p28 = pneg %p22
    %p29 = scmp.eq.s32.totalorder %s13, 1
    %p30 = por %p28, %p29
    %p31 = scmp.ne.s32.totalorder %s23, %s26
    %p32 = scmp.eq.s32.totalorder %s13, 0
    %p33 = por %p31, %p32
    %p34 = scmp.ne.s32.totalorder %s23, %s26
    %p35 = scmp.eq.s32.totalorder %s18, 1
    %p36 = por %p34, %p35
    %p37 = scmp.ne.s32.totalorder %s26, %s27
    %p38 = scmp.eq.s32.totalorder %s18, 0
    %p39 = por %p37, %p38
    %p40 = scmp.ne.s32.totalorder %s26, %s27
    %p41 = scmp.eq.s32.totalorder %s19, 1
    %p42 = por %p40, %p41
    %p44 = scmp.ne.s32.totalorder %s27, %s43
    %p45 = scmp.eq.s32.totalorder %s19, 0
    %p46 = por %p44, %p45
    %s48 = sadd.s32 %s47, 1
    %p51 = scmp.eq.s32.totalorder %s13, 1
    %p52 = scmp.ne.s32.totalorder %s47, %s49
    %p53 = scmp.eq.s32.totalorder %s13, 0
    %p54 = por %p52, %p53
    %p55 = scmp.ne.s32.totalorder %s47, %s49
    %p56 = scmp.eq.s32.totalorder %s18, 1
    %p57 = por %p55, %p56
    %p58 = scmp.ne.s32.totalorder %s49, %s50
    %p59 = scmp.eq.s32.totalorder %s18, 0
    %p60 = por %p58, %p59
    %p61 = scmp.ne.s32.totalorder %s49, %s50
    %p62 = scmp.eq.s32.totalorder %s19, 1
    %p63 = por %p61, %p62
    %p65 = scmp.ne.s32.totalorder %s50, %s64
    %p66 = scmp.eq.s32.totalorder %s19, 0
    %p67 = por %p65, %p66
    %s69 = sadd.s32 %s68, 1
    %p72 = scmp.eq.s32.totalorder %s13, 1
    %p73 = scmp.ne.s32.totalorder %s68, %s70
    %p74 = scmp.eq.s32.totalorder %s13, 0
    %p75 = por %p73, %p74
    %p76 = scmp.ne.s32.totalorder %s68, %s70
    %p77 = scmp.eq.s32.totalorder %s18, 1
    %p78 = por %p76, %p77
    %p79 = scmp.ne.s32.totalorder %s70, %s71
    %p80 = scmp.eq.s32.totalorder %s18, 0
    %p81 = por %p79, %p80
    %p82 = scmp.ne.s32.totalorder %s70, %s71
    %p83 = scmp.eq.s32.totalorder %s19, 1
    %p84 = por %p82, %p83
    %p86 = scmp.ne.s32.totalorder %s71, %s85
    %p87 = scmp.eq.s32.totalorder %s19, 0
    %p88 = por %p86, %p87
    %s89 = ssub.s32 %s13, %s20
    %p90 = scmp.eq.s32.totalorder %s89, 0
    %s92 = sadd.s32 %s91, 1
    %s93 = scalar_select %p90, %s91, %s92
    %p96 = pneg %p90
    %p97 = scmp.eq.s32.totalorder %s13, 1
    %p98 = por %p96, %p97
    %p99 = scmp.ne.s32.totalorder %s91, %s94
    %p100 = scmp.eq.s32.totalorder %s13, 0
    %p101 = por %p99, %p100
    %p102 = scmp.ne.s32.totalorder %s91, %s94
    %p103 = scmp.eq.s32.totalorder %s18, 1
    %p104 = por %p102, %p103
    %p105 = scmp.ne.s32.totalorder %s94, %s95
    %p106 = scmp.eq.s32.totalorder %s18, 0
    %p107 = por %p105, %p106
    %p108 = scmp.ne.s32.totalorder %s94, %s95
    %p109 = scmp.eq.s32.totalorder %s19, 1
    %p110 = por %p108, %p109
    %p112 = scmp.ne.s32.totalorder %s95, %s111
    %p113 = scmp.eq.s32.totalorder %s19, 0
    %p114 = por %p112, %p113
    %s115 = ssub.s32 %s13, %s20
    %p116 = scmp.eq.s32.totalorder %s115, 0
    %s118 = sadd.s32 %s117, 1
    %s119 = scalar_select %p116, %s117, %s118
    %p122 = pneg %p116
    %p123 = scmp.eq.s32.totalorder %s13, 1
    %p124 = por %p122, %p123
    %p125 = scmp.ne.s32.totalorder %s117, %s120
    %p126 = scmp.eq.s32.totalorder %s13, 0
    %p127 = por %p125, %p126
    %p128 = scmp.ne.s32.totalorder %s117, %s120
    %p129 = scmp.eq.s32.totalorder %s18, 1
    %p130 = por %p128, %p129
    %p131 = scmp.ne.s32.totalorder %s120, %s121
    %p132 = scmp.eq.s32.totalorder %s18, 0
    %p133 = por %p131, %p132
    %p134 = scmp.ne.s32.totalorder %s120, %s121
    %p135 = scmp.eq.s32.totalorder %s19, 1
    %p136 = por %p134, %p135
    %p138 = scmp.ne.s32.totalorder %s121, %s137
    %p139 = scmp.eq.s32.totalorder %s19, 0
    %p140 = por %p138, %p139
    %s141 = ssub.s32 %s13, %s20
    %p142 = scmp.eq.s32.totalorder %s141, 0
    %s144 = sadd.s32 %s143, 1
    %s145 = scalar_select %p142, %s143, %s144
    %p148 = pneg %p142
    %p149 = scmp.eq.s32.totalorder %s13, 1
    %p150 = por %p148, %p149
    %p151 = scmp.ne.s32.totalorder %s143, %s146
    %p152 = scmp.eq.s32.totalorder %s13, 0
    %p153 = por %p151, %p152
    %p154 = scmp.ne.s32.totalorder %s143, %s146
    %p155 = scmp.eq.s32.totalorder %s18, 1
    %p156 = por %p154, %p155
    %p157 = scmp.ne.s32.totalorder %s146, %s147
    %p158 = scmp.eq.s32.totalorder %s18, 0
    %p159 = por %p157, %p158
    %p160 = scmp.ne.s32.totalorder %s146, %s147
    %p161 = scmp.eq.s32.totalorder %s19, 1
    %p162 = por %p160, %p161
    %p164 = scmp.ne.s32.totalorder %s147, %s163
    %p165 = scmp.eq.s32.totalorder %s19, 0
    %p166 = por %p164, %p165
    %s167 = ssub.s32 %s13, %s20
    %p168 = scmp.eq.s32.totalorder %s167, 0
    %s170 = sadd.s32 %s169, 1
    %s171 = scalar_select %p168, %s169, %s170
    %p174 = pneg %p168
    %p175 = scmp.eq.s32.totalorder %s13, 1
    %p176 = por %p174, %p175
    %p177 = scmp.ne.s32.totalorder %s169, %s172
    %p178 = scmp.eq.s32.totalorder %s13, 0
    %p179 = por %p177, %p178
    %p180 = scmp.ne.s32.totalorder %s169, %s172
    %p181 = scmp.eq.s32.totalorder %s18, 1
    %p182 = por %p180, %p181
    %p183 = scmp.ne.s32.totalorder %s172, %s173
    %p184 = scmp.eq.s32.totalorder %s18, 0
    %p185 = por %p183, %p184
    %p186 = scmp.ne.s32.totalorder %s172, %s173
    %p187 = scmp.eq.s32.totalorder %s19, 1
    %p188 = por %p186, %p187
    %p190 = scmp.ne.s32.totalorder %s173, %s189
    %p191 = scmp.eq.s32.totalorder %s19, 0
    %p192 = por %p190, %p191
    %p193 = scmp.le.s32.totalorder 1, %s13
    %p194 = scmp.lt.s32.totalorder %s13, 3
    %p195 = pnand %p193, %p194
    %p196 = pneg %p195
    // Predicated region
    $region9: #{basic_block_forward.3} parent=5 // pred_check
      _
    $region10: #{basic_block_forward.3} parent=5 // pred_check_branch
      %198 = sbr.rel (%p195) target = $region12
    $region11: #{basic_block_forward.3} parent=5 // pred_region
      %s199 = ssub.s32 %s13, 1
      // Predicated region
      $region13: #{basic_block_forward.3} parent=11 // pred_check
        %p200 = pneg %p60
      $region14: #{basic_block_forward.3} parent=11 // pred_check_branch
        %202 = sbr.rel (%p200) target = $region16
      $region15: #{basic_block_forward.3} parent=11 // pred_region
        _
      $region16: #{basic_block_forward.3} parent=11 // pred_fallthru
        _
      // Predicated region
      $region17: #{basic_block_forward.3} parent=11 // pred_check
        %p203 = pneg %p81
      $region18: #{basic_block_forward.3} parent=11 // pred_check_branch
        %205 = sbr.rel (%p203) target = $region20
      $region19: #{basic_block_forward.3} parent=11 // pred_region
        _
      $region20: #{basic_block_forward.3} parent=11 // pred_fallthru
        _
    $region12: #{basic_block_forward.3} parent=5 // pred_fallthru
      _
    %p206 = scmp.lt.s32.totalorder %s13, 2
    // Predicated region
    $region21: #{basic_block_forward.3} parent=5 // pred_check
      %p207 = pneg %p206
    $region22: #{basic_block_forward.3} parent=5 // pred_check_branch
      %209 = sbr.rel (%p207) target = $region24
    $region23: #{basic_block_forward.3} parent=5 // pred_region
      // Predicated region
      $region25: #{basic_block_forward.3} parent=23 // pred_check
        %p210 = pneg %p33
      $region26: #{basic_block_forward.3} parent=23 // pred_check_branch
        %212 = sbr.rel (%p210) target = $region28
      $region27: #{basic_block_forward.3} parent=23 // pred_region
        %s213 = smul.u32 4, %s13
        %p214 = scmp.lt.s32.totalorder %s213, 7
        %s215 = scalar_select %p214, %s213, 7
        %s216 = smul.addr %s215, 11
        %s217 = smul.addr %s216, 4
        %s218 = scalar_lea.vmem %s0, %s217
        %s219 = smul.u32 4, %s13
      $region28: #{basic_block_forward.3} parent=23 // pred_fallthru
        _
    $region24: #{basic_block_forward.3} parent=5 // pred_fallthru
      _
    %p220 = scmp.le.s32.totalorder 1, %s13
    %p221 = scmp.lt.s32.totalorder %s13, 3
    %p222 = pnand %p220, %p221
    %p223 = pneg %p222
    // Predicated region
    $region29: #{basic_block_forward.3} parent=5 // pred_check
      _
    $region30: #{basic_block_forward.3} parent=5 // pred_check_branch
      %225 = sbr.rel (%p222) target = $region32
    $region31: #{basic_block_forward.3} parent=5 // pred_region
      %s226 = ssub.s32 %s13, 1
      %s227 = smul.u32 4, %s18
      %p228 = scmp.lt.s32.totalorder %s227, 7
      %s229 = scalar_select %p228, %s227, 7
      %s230 = smul.addr %s229, 11
      %s231 = smul.addr %s230, 4
      %s232 = scalar_lea.vmem %s0, %s231
      %p233 = pneg %p39
      %p234 = pneg %p36
      %p235 = pneg %p60
      %p236 = pneg %p57
      %p237 = pneg %p81
      %p238 = pneg %p78
      %p239 = pneg %p107
      %p240 = pneg %p104
      %p241 = scmp.lt.s32.totalorder %s18, 1
      %s242 = scalar_select %p241, %s18, 1
      %s243 = smul.addr %s242, 8
      %s244 = smul.addr %s243, 4
      %s245 = scalar_lea.vmem %s3, %s244
      %p246 = pneg %p133
      %p247 = pneg %p130
      %p248 = scmp.lt.s32.totalorder %s18, 1
      %s249 = scalar_select %p248, %s18, 1
      %s250 = smul.addr %s249, 8
      %s251 = smul.addr %s250, 4
      %s252 = scalar_lea.vmem %s4, %s251
      %p253 = pneg %p159
      %p254 = pneg %p156
      %p255 = scmp.lt.s32.totalorder %s18, 1
      %s256 = scalar_select %p255, %s18, 1
      %s257 = smul.addr %s256, 2
      %s258 = scalar_lea.vmem %s5, %s257
      %p259 = pneg %p185
      %p260 = pneg %p182
      %p261 = scmp.lt.s32.totalorder %s18, 1
      %s262 = scalar_select %p261, %s18, 1
      %s263 = smul.addr %s262, 2
      %s264 = scalar_lea.vmem %s6, %s263
      %s265 = smul.u32 4, %s18
      %p266 = scmp.lt.s32.totalorder %s265, 7
      %s267 = scalar_select %p266, %s265, 7
      %s268 = smul.addr %s267, 11
      %s269 = smul.addr %s268, 4
      %s270 = scalar_lea.vmem %s0, %s269
      %s271 = smul.u32 4, %s18
      %p272 = scmp.lt.s32.totalorder %s18, 1
      %s273 = scalar_select %p272, %s18, 1
      %s274 = smul.addr %s273, 8
      %s275 = smul.addr %s274, 4
      %s276 = scalar_lea.vmem %s3, %s275
      %p277 = scmp.lt.s32.totalorder %s18, 1
      %s278 = scalar_select %p277, %s18, 1
      %s279 = smul.addr %s278, 8
      %s280 = smul.addr %s279, 4
      %s281 = scalar_lea.vmem %s4, %s280
      %p282 = scmp.lt.s32.totalorder %s18, 1
      %s283 = scalar_select %p282, %s18, 1
      %s284 = smul.addr %s283, 2
      %s285 = scalar_lea.vmem %s5, %s284
      %p286 = scmp.lt.s32.totalorder %s18, 1
      %s287 = scalar_select %p286, %s18, 1
      %s288 = smul.addr %s287, 2
      %s289 = scalar_lea.vmem %s6, %s288
      %v290 = vld [vmem:[%s270] sm:$0xf]
      %v291 = vld [vmem:[%s270 + $0x4] sm:$0xf]
      %v292 = vld [vmem:[%s270 + $0x8] sm:$0xf]
      %v293 = vld [vmem:[%s270 + $0xc] sm:$0xf]
      %v294 = vld [vmem:[%s270 + $0x10] sm:$0xf]
      %v295 = vld [vmem:[%s270 + $0x14] sm:$0xf]
      %v296 = vld [vmem:[%s270 + $0x18] sm:$0xf]
      %v297 = vld [vmem:[%s270 + $0x1c] sm:$0xf]
      %v298 = vld [vmem:[%s270 + $0x20] sm:$0xf]
      %v299 = vld [vmem:[%s270 + $0x24] sm:$0xf]
      %v300 = vld [vmem:[%s270 + $0x28] sm:$0xf]
      %v301 = vld [vmem:[%s270 + $0x2c] sm:$0xf]
      %v302 = vld [vmem:[%s270 + $0x30] sm:$0xf]
      %v303 = vld [vmem:[%s270 + $0x34] sm:$0xf]
      %v304 = vld [vmem:[%s270 + $0x38] sm:$0xf]
      %v305 = vld [vmem:[%s270 + $0x3c] sm:$0xf]
      %v306 = vld [vmem:[%s270 + $0x40] sm:$0xf]
      %v307 = vld [vmem:[%s270 + $0x44] sm:$0xf]
      %v308 = vld [vmem:[%s270 + $0x48] sm:$0xf]
      %v309 = vld [vmem:[%s270 + $0x4c] sm:$0xf]
      %v310 = vld [vmem:[%s270 + $0x50] sm:$0xf]
      %v311 = vld [vmem:[%s270 + $0x54] sm:$0xf]
      %v312 = vld [vmem:[%s270 + $0x58] sm:$0xf]
      %v313 = vld [vmem:[%s270 + $0x5c] sm:$0xf]
      %v314 = vld [vmem:[%s270 + $0x60] sm:$0xf]
      %v315 = vld [vmem:[%s270 + $0x64] sm:$0xf]
      %v316 = vld [vmem:[%s270 + $0x68] sm:$0xf]
      %v317 = vld [vmem:[%s270 + $0x6c] sm:$0xf]
      %v318 = vld [vmem:[%s270 + $0x70] sm:$0xf]
      %v319 = vld [vmem:[%s270 + $0x74] sm:$0xf]
      %v320 = vld [vmem:[%s270 + $0x78] sm:$0xf]
      %v321 = vld [vmem:[%s270 + $0x7c] sm:$0xf]
      %v322 = vld [vmem:[%s270 + $0x84] sm:$0xf]
      %v323 = vld [vmem:[%s270 + $0x88] sm:$0xf]
      %v324 = vld [vmem:[%s270 + $0x8c] sm:$0xf]
      %v325 = vld [vmem:[%s270 + $0x90] sm:$0xf]
      %v326 = vld [vmem:[%s270 + $0x94] sm:$0xf]
      %v327 = vld [vmem:[%s270 + $0x98] sm:$0xf]
      %v328 = vld [vmem:[%s270 + $0x9c] sm:$0xf]
      %v329 = vld [vmem:[%s270 + $0xa0] sm:$0xf]
      %v330 = vld [vmem:[%s270 + $0xa4] sm:$0xf]
      %v340 = vunpack.c.l.b16 %v290
      %v341 = vunpack.c.l.b16 %v291
      %v342 = vunpack.c.l.b16 %v292
      %v343 = vunpack.c.l.b16 %v293
      %v344 = vunpack.c.l.b16 %v294
      %v345 = vunpack.c.l.b16 %v295
      %v346 = vunpack.c.l.b16 %v296
      %v347 = vunpack.c.l.b16 %v297
      %v348 = vunpack.c.l.b16 %v298
      %v349 = vpack.c.b16 %v341, %v340
      %v350 = vpack.c.b16 %v343, %v342
      %v351 = vpack.c.b16 %v345, %v344
      %v352 = vpack.c.b16 %v347, %v346
      %v353 = vpack.c.b16 %v348, %v348
      %v368 = vunpack.c.l.b16 %v301
      %v369 = vunpack.c.l.b16 %v302
      %v370 = vunpack.c.l.b16 %v303
      %v371 = vunpack.c.l.b16 %v304
      %v372 = vunpack.c.l.b16 %v305
      %v373 = vunpack.c.l.b16 %v306
      %v374 = vunpack.c.l.b16 %v307
      %v375 = vunpack.c.l.b16 %v308
      %v376 = vunpack.c.l.b16 %v309
      %v377 = vpack.c.b16 %v369, %v368
      %v378 = vpack.c.b16 %v371, %v370
      %v379 = vpack.c.b16 %v373, %v372
      %v380 = vpack.c.b16 %v375, %v374
      %v381 = vpack.c.b16 %v376, %v376
      %v388 = vunpack.c.l.b16 %v299
      %v389 = vpack.c.b16 %v388, %v348
      %vm390 = vsmask.f32 7424
      %v392 = vshrl.u32 %v349, 16
      %v394 = vshll.u32 %v349, 16
      %v396 = vrot.slane %v394, 1
      %v397 = vor.u32 %v392, %v396
      %v399 = vshll.u32 %v350, 16
      %v401 = vrot.slane %v399, 1
      %v402 = vsel %vm390, %v397, %v401
      %v403 = vshrl.u32 %v350, 16
      %v405 = vor.u32 %v403, %v401
      %v407 = vshll.u32 %v351, 16
      %v409 = vrot.slane %v407, 1
      %v410 = vsel %vm390, %v405, %v409
      %v411 = vshrl.u32 %v351, 16
      %v413 = vor.u32 %v411, %v409
      %v415 = vshll.u32 %v352, 16
      %v417 = vrot.slane %v415, 1
      %v418 = vsel %vm390, %v413, %v417
      %v419 = vshrl.u32 %v352, 16
      %v421 = vor.u32 %v419, %v417
      %v423 = vshll.u32 %v389, 16
      %v425 = vrot.slane %v423, 1
      %v426 = vsel %vm390, %v421, %v425
      %v427 = vshrl.u32 %v389, 16
      %v429 = vor.u32 %v427, %v425
      %v444 = vunpack.c.l.b16 %v312
      %v445 = vunpack.c.l.b16 %v313
      %v446 = vunpack.c.l.b16 %v314
      %v447 = vunpack.c.l.b16 %v315
      %v448 = vunpack.c.l.b16 %v316
      %v449 = vunpack.c.l.b16 %v317
      %v450 = vunpack.c.l.b16 %v318
      %v451 = vunpack.c.l.b16 %v319
      %v452 = vunpack.c.l.b16 %v320
      %v453 = vpack.c.b16 %v445, %v444
      %v454 = vpack.c.b16 %v447, %v446
      %v455 = vpack.c.b16 %v449, %v448
      %v456 = vpack.c.b16 %v451, %v450
      %v457 = vpack.c.b16 %v452, %v452
      %v472 = vunpack.c.l.b16 %v322
      %v473 = vunpack.c.l.b16 %v323
      %v474 = vunpack.c.l.b16 %v324
      %v475 = vunpack.c.l.b16 %v325
      %v476 = vunpack.c.l.b16 %v326
      %v477 = vunpack.c.l.b16 %v327
      %v478 = vunpack.c.l.b16 %v328
      %v479 = vunpack.c.l.b16 %v329
      %v480 = vunpack.c.l.b16 %v330
      %v481 = vpack.c.b16 %v473, %v472
      %v482 = vpack.c.b16 %v475, %v474
      %v483 = vpack.c.b16 %v477, %v476
      %v484 = vpack.c.b16 %v479, %v478
      %v485 = vpack.c.b16 %v480, %v480
      %v492 = vunpack.c.l.b16 %v321
      %v493 = vpack.c.b16 %v492, %v452
      %v495 = vshrl.u32 %v453, 16
      %v497 = vshll.u32 %v453, 16
      %v499 = vrot.slane %v497, 1
      %v500 = vor.u32 %v495, %v499
      %v502 = vshll.u32 %v454, 16
      %v504 = vrot.slane %v502, 1
      %v505 = vsel %vm390, %v500, %v504
      %v506 = vshrl.u32 %v454, 16
      %v508 = vor.u32 %v506, %v504
      %v510 = vshll.u32 %v455, 16
      %v512 = vrot.slane %v510, 1
      %v513 = vsel %vm390, %v508, %v512
      %v514 = vshrl.u32 %v455, 16
      %v516 = vor.u32 %v514, %v512
      %v518 = vshll.u32 %v456, 16
      %v520 = vrot.slane %v518, 1
      %v521 = vsel %vm390, %v516, %v520
      %v522 = vshrl.u32 %v456, 16
      %v524 = vor.u32 %v522, %v520
      %v526 = vshll.u32 %v493, 16
      %v528 = vrot.slane %v526, 1
      %v529 = vsel %vm390, %v524, %v528
      %v530 = vshrl.u32 %v493, 16
      %v532 = vor.u32 %v530, %v528
      %v539 = vunpack.c.l.b16 %v300
      %v540 = vpack.c.b16 %v342, %v341
      %v541 = vpack.c.b16 %v344, %v343
      %v542 = vpack.c.b16 %v346, %v345
      %v543 = vpack.c.b16 %v348, %v347
      %v544 = vpack.c.b16 %v539, %v388
      %v546 = vshrl.u32 %v540, 16
      %v548 = vshll.u32 %v540, 16
      %v550 = vrot.slane %v548, 1
      %v551 = vor.u32 %v546, %v550
      %v553 = vshll.u32 %v541, 16
      %v555 = vrot.slane %v553, 1
      %v556 = vsel %vm390, %v551, %v555
      %v557 = vshrl.u32 %v541, 16
      %v559 = vor.u32 %v557, %v555
      %v561 = vshll.u32 %v542, 16
      %v563 = vrot.slane %v561, 1
      %v564 = vsel %vm390, %v559, %v563
      %v565 = vshrl.u32 %v542, 16
      %v567 = vor.u32 %v565, %v563
      %v569 = vshll.u32 %v543, 16
      %v571 = vrot.slane %v569, 1
      %v572 = vsel %vm390, %v567, %v571
      %v573 = vshrl.u32 %v543, 16
      %v575 = vor.u32 %v573, %v571
      %v577 = vshll.u32 %v544, 16
      %v579 = vrot.slane %v577, 1
      %v580 = vsel %vm390, %v575, %v579
      %v581 = vshrl.u32 %v544, 16
      %v583 = vor.u32 %v581, %v579
      %v591 = vunpack.c.l.b16 %v310
      %v592 = vunpack.c.l.b16 %v311
      %v593 = vpack.c.b16 %v370, %v369
      %v594 = vpack.c.b16 %v372, %v371
      %v595 = vpack.c.b16 %v374, %v373
      %v596 = vpack.c.b16 %v376, %v375
      %v597 = vpack.c.b16 %v592, %v591
      %v599 = vshrl.u32 %v593, 16
      %v601 = vshll.u32 %v593, 16
      %v603 = vrot.slane %v601, 1
      %v604 = vor.u32 %v599, %v603
      %v606 = vshll.u32 %v594, 16
      %v608 = vrot.slane %v606, 1
      %v609 = vsel %vm390, %v604, %v608
      %v610 = vshrl.u32 %v594, 16
      %v612 = vor.u32 %v610, %v608
      %v614 = vshll.u32 %v595, 16
      %v616 = vrot.slane %v614, 1
      %v617 = vsel %vm390, %v612, %v616
      %v618 = vshrl.u32 %v595, 16
      %v620 = vor.u32 %v618, %v616
      %v622 = vshll.u32 %v596, 16
      %v624 = vrot.slane %v622, 1
      %v625 = vsel %vm390, %v620, %v624
      %v626 = vshrl.u32 %v596, 16
      %v628 = vor.u32 %v626, %v624
      %v630 = vshll.u32 %v597, 16
      %v632 = vrot.slane %v630, 1
      %v633 = vsel %vm390, %v628, %v632
      %v634 = vshrl.u32 %v597, 16
      %v636 = vor.u32 %v634, %v632
      %vm642 = vcmask 1046528
      %v643 = vrot.slane %v540, 1
      %v644 = vrot.slane %v541, 1
      %v645 = vsel %vm642, %v643, %v644
      %v646 = vrot.slane %v542, 1
      %v647 = vsel %vm642, %v644, %v646
      %v648 = vrot.slane %v543, 1
      %v649 = vsel %vm642, %v646, %v648
      %v650 = vrot.slane %v544, 1
      %v651 = vsel %vm642, %v648, %v650
      %v657 = vld [vmem:[%s1] sm:$0xf]
      %v658 = vld [vmem:[%s1 + $0x4] sm:$0xf]
      %v659 = vld [vmem:[%s1 + $0x8] sm:$0xf]
      %v660 = vld [vmem:[%s1 + $0xc] sm:$0xf]
      %v661 = vld [vmem:[%s1 + $0x10] sm:$0xf]
      %v662 = vld [vmem:[%s1 + $0x14] sm:$0xf]
      %v663 = vld [vmem:[%s1 + $0x18] sm:$0xf]
      %v664 = vld [vmem:[%s1 + $0x1c] sm:$0xf]
      %v665 = vld [vmem:[%s1 + $0x20] sm:$0xf]
      %v666 = vld [vmem:[%s1 + $0x24] sm:$0xf]
      %v667 = vld [vmem:[%s1 + $0x28] sm:$0xf]
      %v668 = vld [vmem:[%s1 + $0x2c] sm:$0xf]
      %v669 = vld [vmem:[%s1 + $0x30] sm:$0xf]
      %v670 = vld [vmem:[%s1 + $0x34] sm:$0xf]
      %v671 = vld [vmem:[%s1 + $0x38] sm:$0xf]
      %v672 = vld [vmem:[%s1 + $0x3c] sm:$0xf]
      %v673 = vld [vmem:[%s1 + $0x40] sm:$0xf]
      %v674 = vld [vmem:[%s1 + $0x44] sm:$0xf]
      %v675 = vld [vmem:[%s1 + $0x48] sm:$0xf]
      %v676 = vld [vmem:[%s1 + $0x4c] sm:$0xf]
      %v677 = vld [vmem:[%s1 + $0x50] sm:$0xf]
      %v678 = vld [vmem:[%s1 + $0x54] sm:$0xf]
      %v679 = vld [vmem:[%s1 + $0x58] sm:$0xf]
      %v680 = vld [vmem:[%s1 + $0x5c] sm:$0xf]
      %v681 = vld [vmem:[%s1 + $0x60] sm:$0xf]
      %v682 = vld [vmem:[%s1 + $0x64] sm:$0xf]
      %v683 = vld [vmem:[%s1 + $0x68] sm:$0xf]
      %v684 = vld [vmem:[%s1 + $0x6c] sm:$0xf]
      %v685 = vld [vmem:[%s1 + $0x70] sm:$0xf]
      %v686 = vld [vmem:[%s1 + $0x74] sm:$0xf]
      %v687 = vld [vmem:[%s1 + $0x78] sm:$0xf]
      %v688 = vld [vmem:[%s1 + $0x7c] sm:$0xf]
      %v689 = vld [vmem:[%s1 + $0x80] sm:$0xf]
      %v690 = vld [vmem:[%s1 + $0x84] sm:$0xf]
      %v691 = vld [vmem:[%s1 + $0x88] sm:$0xf]
      %v692 = vld [vmem:[%s1 + $0x8c] sm:$0xf]
      %v693 = vld [vmem:[%s1 + $0x90] sm:$0xf]
      %v694 = vld [vmem:[%s1 + $0x94] sm:$0xf]
      %v695 = vld [vmem:[%s1 + $0x98] sm:$0xf]
      %v696 = vld [vmem:[%s1 + $0x9c] sm:$0xf]
      %v697 = vld [vmem:[%s1 + $0xa0] sm:$0xf]
      %v698 = vld [vmem:[%s1 + $0xa4] sm:$0xf]
      %v699 = vld [vmem:[%s1 + $0xa8] sm:$0xf]
      %v700 = vld [vmem:[%s1 + $0xac] sm:$0xf]
      %v701 = vld [vmem:[%s1 + $0xb0] sm:$0xf]
      %v702 = vld [vmem:[%s1 + $0xb4] sm:$0xf]
      %v703 = vld [vmem:[%s1 + $0xb8] sm:$0xf]
      %v704 = vld [vmem:[%s1 + $0xbc] sm:$0xf]
      %v705 = vld [vmem:[%s1 + $0xc0] sm:$0xf]
      %v706 = vld [vmem:[%s1 + $0xc4] sm:$0xf]
      %v707 = vld [vmem:[%s1 + $0xc8] sm:$0xf]
      %v708 = vld [vmem:[%s1 + $0xcc] sm:$0xf]
      %v709 = vld [vmem:[%s1 + $0xd0] sm:$0xf]
      %v710 = vld [vmem:[%s1 + $0xd4] sm:$0xf]
      %v711 = vld [vmem:[%s1 + $0xd8] sm:$0xf]
      %v712 = vld [vmem:[%s1 + $0xdc] sm:$0xf]
      %v713 = vld [vmem:[%s1 + $0xe0] sm:$0xf]
      %v714 = vld [vmem:[%s1 + $0xe4] sm:$0xf]
      %v715 = vld [vmem:[%s1 + $0xe8] sm:$0xf]
      %v716 = vld [vmem:[%s1 + $0xec] sm:$0xf]
      %v717 = vld [vmem:[%s1 + $0xf0] sm:$0xf]
      %v718 = vld [vmem:[%s1 + $0xf4] sm:$0xf]
      %v719 = vld [vmem:[%s1 + $0xf8] sm:$0xf]
      %v720 = vld [vmem:[%s1 + $0xfc] sm:$0xf]
      %v721 = vld [vmem:[%s1 + $0x100] sm:$0xf]
      %v722 = vld [vmem:[%s1 + $0x104] sm:$0xf]
      %v723 = vld [vmem:[%s1 + $0x108] sm:$0xf]
      %v724 = vld [vmem:[%s1 + $0x10c] sm:$0xf]
      %v725 = vld [vmem:[%s1 + $0x110] sm:$0xf]
      %v726 = vld [vmem:[%s1 + $0x114] sm:$0xf]
      %v727 = vld [vmem:[%s1 + $0x118] sm:$0xf]
      %v728 = vld [vmem:[%s1 + $0x11c] sm:$0xf]
      %v729 = vld [vmem:[%s1 + $0x120] sm:$0xf]
      %v730 = vld [vmem:[%s1 + $0x124] sm:$0xf]
      %v731 = vld [vmem:[%s1 + $0x128] sm:$0xf]
      %v732 = vld [vmem:[%s1 + $0x12c] sm:$0xf]
      %v733 = vld [vmem:[%s1 + $0x130] sm:$0xf]
      %v734 = vld [vmem:[%s1 + $0x134] sm:$0xf]
      %v735 = vld [vmem:[%s1 + $0x138] sm:$0xf]
      %v736 = vld [vmem:[%s1 + $0x13c] sm:$0xf]
      %v737 = vld [vmem:[%s1 + $0x140] sm:$0xf]
      %v738 = vld [vmem:[%s1 + $0x144] sm:$0xf]
      %v739 = vld [vmem:[%s1 + $0x148] sm:$0xf]
      %v740 = vld [vmem:[%s1 + $0x14c] sm:$0xf]
      %v741 = vld [vmem:[%s1 + $0x150] sm:$0xf]
      %v742 = vld [vmem:[%s1 + $0x154] sm:$0xf]
      %v743 = vld [vmem:[%s1 + $0x158] sm:$0xf]
      %v744 = vld [vmem:[%s1 + $0x15c] sm:$0xf]
      %v745 = vld [vmem:[%s1 + $0x160] sm:$0xf]
      %v746 = vld [vmem:[%s1 + $0x164] sm:$0xf]
      %v747 = vld [vmem:[%s1 + $0x168] sm:$0xf]
      %v748 = vld [vmem:[%s1 + $0x16c] sm:$0xf]
      %v749 = vld [vmem:[%s1 + $0x170] sm:$0xf]
      %v750 = vld [vmem:[%s1 + $0x174] sm:$0xf]
      %v751 = vld [vmem:[%s1 + $0x178] sm:$0xf]
      %v752 = vld [vmem:[%s1 + $0x17c] sm:$0xf]
      %v753 = vld [vmem:[%s1 + $0x180] sm:$0xf]
      %v754 = vld [vmem:[%s1 + $0x184] sm:$0xf]
      %v755 = vld [vmem:[%s1 + $0x188] sm:$0xf]
      %v756 = vld [vmem:[%s1 + $0x18c] sm:$0xf]
      %v757 = vld [vmem:[%s1 + $0x190] sm:$0xf]
      %v758 = vld [vmem:[%s1 + $0x194] sm:$0xf]
      %v759 = vld [vmem:[%s1 + $0x198] sm:$0xf]
      %v760 = vld [vmem:[%s1 + $0x19c] sm:$0xf]
      %v761 = vld [vmem:[%s1 + $0x1a0] sm:$0xf]
      %v762 = vld [vmem:[%s1 + $0x1a4] sm:$0xf]
      %v763 = vld [vmem:[%s1 + $0x1a8] sm:$0xf]
      %v764 = vld [vmem:[%s1 + $0x1ac] sm:$0xf]
      %v765 = vld [vmem:[%s1 + $0x1b0] sm:$0xf]
      %v766 = vld [vmem:[%s1 + $0x1b4] sm:$0xf]
      %v767 = vld [vmem:[%s1 + $0x1b8] sm:$0xf]
      %v768 = vld [vmem:[%s1 + $0x1bc] sm:$0xf]
      %v769 = vld [vmem:[%s1 + $0x1c0] sm:$0xf]
      %v770 = vld [vmem:[%s1 + $0x1c4] sm:$0xf]
      %v771 = vld [vmem:[%s1 + $0x1c8] sm:$0xf]
      %v772 = vld [vmem:[%s1 + $0x1cc] sm:$0xf]
      %v773 = vld [vmem:[%s1 + $0x1d0] sm:$0xf]
      %v774 = vld [vmem:[%s1 + $0x1d4] sm:$0xf]
      %v775 = vld [vmem:[%s1 + $0x1d8] sm:$0xf]
      %v776 = vld [vmem:[%s1 + $0x1dc] sm:$0xf]
      %v777 = vld [vmem:[%s1 + $0x1e0] sm:$0xf]
      %v778 = vld [vmem:[%s1 + $0x1e4] sm:$0xf]
      %v779 = vld [vmem:[%s1 + $0x1e8] sm:$0xf]
      %v780 = vld [vmem:[%s1 + $0x1ec] sm:$0xf]
      %v781 = vld [vmem:[%s1 + $0x1f0] sm:$0xf]
      %v782 = vld [vmem:[%s1 + $0x1f4] sm:$0xf]
      %v783 = vld [vmem:[%s1 + $0x1f8] sm:$0xf]
      %v784 = vld [vmem:[%s1 + $0x1fc] sm:$0xf]
      %v785 = vld [vmem:[%s1 + $0x200] sm:$0xf]
      %v786 = vld [vmem:[%s1 + $0x204] sm:$0xf]
      %v787 = vld [vmem:[%s1 + $0x208] sm:$0xf]
      %v788 = vld [vmem:[%s1 + $0x20c] sm:$0xf]
      %v789 = vld [vmem:[%s1 + $0x210] sm:$0xf]
      %v790 = vld [vmem:[%s1 + $0x214] sm:$0xf]
      %v791 = vld [vmem:[%s1 + $0x218] sm:$0xf]
      %v792 = vld [vmem:[%s1 + $0x21c] sm:$0xf]
      %v793 = vld [vmem:[%s1 + $0x220] sm:$0xf]
      %v794 = vld [vmem:[%s1 + $0x224] sm:$0xf]
      %v795 = vld [vmem:[%s1 + $0x228] sm:$0xf]
      %v796 = vld [vmem:[%s1 + $0x22c] sm:$0xf]
      %v797 = vld [vmem:[%s1 + $0x230] sm:$0xf]
      %v798 = vld [vmem:[%s1 + $0x234] sm:$0xf]
      %v799 = vld [vmem:[%s1 + $0x238] sm:$0xf]
      %v800 = vld [vmem:[%s1 + $0x23c] sm:$0xf]
      %v945 = vunpack.c.l.b16 %v657
      %v946 = vunpack.c.l.b16 %v658
      %v947 = vunpack.c.l.b16 %v659
      %v948 = vunpack.c.l.b16 %v660
      %v949 = vunpack.c.l.b16 %v661
      %v950 = vunpack.c.l.b16 %v662
      %v951 = vunpack.c.l.b16 %v663
      %v952 = vunpack.c.l.b16 %v664
      %v953 = vunpack.c.l.b16 %v665
      %v954 = vunpack.c.l.b16 %v666
      %v955 = vunpack.c.l.b16 %v667
      %v956 = vunpack.c.l.b16 %v668
      %v957 = vunpack.c.l.b16 %v669
      %v958 = vunpack.c.l.b16 %v670
      %v959 = vunpack.c.l.b16 %v671
      %v960 = vunpack.c.l.b16 %v672
      %v961 = vunpack.c.l.b16 %v673
      %v962 = vunpack.c.l.b16 %v674
      %v963 = vunpack.c.l.b16 %v675
      %v964 = vunpack.c.l.b16 %v676
      %v965 = vunpack.c.l.b16 %v677
      %v966 = vunpack.c.l.b16 %v678
      %v967 = vunpack.c.l.b16 %v679
      %v968 = vunpack.c.l.b16 %v680
      %v969 = vunpack.c.l.b16 %v681
      %v970 = vunpack.c.l.b16 %v682
      %v971 = vunpack.c.l.b16 %v683
      %v972 = vunpack.c.l.b16 %v684
      %v973 = vunpack.c.l.b16 %v685
      %v974 = vunpack.c.l.b16 %v686
      %v975 = vunpack.c.l.b16 %v687
      %v976 = vunpack.c.l.b16 %v688
      %v977 = vunpack.c.l.b16 %v689
      %v978 = vunpack.c.l.b16 %v690
      %v979 = vunpack.c.l.b16 %v691
      %v980 = vunpack.c.l.b16 %v692
      %v981 = vunpack.c.l.b16 %v693
      %v982 = vunpack.c.l.b16 %v694
      %v983 = vunpack.c.l.b16 %v695
      %v984 = vunpack.c.l.b16 %v696
      %v985 = vunpack.c.l.b16 %v697
      %v986 = vunpack.c.l.b16 %v698
      %v987 = vunpack.c.l.b16 %v699
      %v988 = vunpack.c.l.b16 %v700
      %v989 = vunpack.c.l.b16 %v701
      %v990 = vunpack.c.l.b16 %v702
      %v991 = vunpack.c.l.b16 %v703
      %v992 = vunpack.c.l.b16 %v704
      %v993 = vunpack.c.l.b16 %v705
      %v994 = vunpack.c.l.b16 %v706
      %v995 = vunpack.c.l.b16 %v707
      %v996 = vunpack.c.l.b16 %v708
      %v997 = vunpack.c.l.b16 %v709
      %v998 = vunpack.c.l.b16 %v710
      %v999 = vunpack.c.l.b16 %v711
      %v1000 = vunpack.c.l.b16 %v712
      %v1001 = vunpack.c.l.b16 %v713
      %v1002 = vunpack.c.l.b16 %v714
      %v1003 = vunpack.c.l.b16 %v715
      %v1004 = vunpack.c.l.b16 %v716
      %v1005 = vunpack.c.l.b16 %v717
      %v1006 = vunpack.c.l.b16 %v718
      %v1007 = vunpack.c.l.b16 %v719
      %v1008 = vunpack.c.l.b16 %v720
      %v1009 = vunpack.c.l.b16 %v721
      %v1010 = vunpack.c.l.b16 %v722
      %v1011 = vunpack.c.l.b16 %v723
      %v1012 = vunpack.c.l.b16 %v724
      %v1013 = vunpack.c.l.b16 %v725
      %v1014 = vunpack.c.l.b16 %v726
      %v1015 = vunpack.c.l.b16 %v727
      %v1016 = vunpack.c.l.b16 %v728
      %v1017 = vunpack.c.l.b16 %v729
      %v1018 = vunpack.c.l.b16 %v730
      %v1019 = vunpack.c.l.b16 %v731
      %v1020 = vunpack.c.l.b16 %v732
      %v1021 = vunpack.c.l.b16 %v733
      %v1022 = vunpack.c.l.b16 %v734
      %v1023 = vunpack.c.l.b16 %v735
      %v1024 = vunpack.c.l.b16 %v736
      %v1025 = vunpack.c.l.b16 %v737
      %v1026 = vunpack.c.l.b16 %v738
      %v1027 = vunpack.c.l.b16 %v739
      %v1028 = vunpack.c.l.b16 %v740
      %v1029 = vunpack.c.l.b16 %v741
      %v1030 = vunpack.c.l.b16 %v742
      %v1031 = vunpack.c.l.b16 %v743
      %v1032 = vunpack.c.l.b16 %v744
      %v1033 = vunpack.c.l.b16 %v745
      %v1034 = vunpack.c.l.b16 %v746
      %v1035 = vunpack.c.l.b16 %v747
      %v1036 = vunpack.c.l.b16 %v748
      %v1037 = vunpack.c.l.b16 %v749
      %v1038 = vunpack.c.l.b16 %v750
      %v1039 = vunpack.c.l.b16 %v751
      %v1040 = vunpack.c.l.b16 %v752
      %v1041 = vunpack.c.l.b16 %v753
      %v1042 = vunpack.c.l.b16 %v754
      %v1043 = vunpack.c.l.b16 %v755
      %v1044 = vunpack.c.l.b16 %v756
      %v1045 = vunpack.c.l.b16 %v757
      %v1046 = vunpack.c.l.b16 %v758
      %v1047 = vunpack.c.l.b16 %v759
      %v1048 = vunpack.c.l.b16 %v760
      %v1049 = vunpack.c.l.b16 %v761
      %v1050 = vunpack.c.l.b16 %v762
      %v1051 = vunpack.c.l.b16 %v763
      %v1052 = vunpack.c.l.b16 %v764
      %v1053 = vunpack.c.l.b16 %v765
      %v1054 = vunpack.c.l.b16 %v766
      %v1055 = vunpack.c.l.b16 %v767
      %v1056 = vunpack.c.l.b16 %v768
      %v1057 = vunpack.c.l.b16 %v769
      %v1058 = vunpack.c.l.b16 %v770
      %v1059 = vunpack.c.l.b16 %v771
      %v1060 = vunpack.c.l.b16 %v772
      %v1061 = vunpack.c.l.b16 %v773
      %v1062 = vunpack.c.l.b16 %v774
      %v1063 = vunpack.c.l.b16 %v775
      %v1064 = vunpack.c.l.b16 %v776
      %v1065 = vunpack.c.l.b16 %v777
      %v1066 = vunpack.c.l.b16 %v778
      %v1067 = vunpack.c.l.b16 %v779
      %v1068 = vunpack.c.l.b16 %v780
      %v1069 = vunpack.c.l.b16 %v781
      %v1070 = vunpack.c.l.b16 %v782
      %v1071 = vunpack.c.l.b16 %v783
      %v1072 = vunpack.c.l.b16 %v784
      %v1073 = vunpack.c.l.b16 %v785
      %v1074 = vunpack.c.l.b16 %v786
      %v1075 = vunpack.c.l.b16 %v787
      %v1076 = vunpack.c.l.b16 %v788
      %v1077 = vunpack.c.l.b16 %v789
      %v1078 = vunpack.c.l.b16 %v790
      %v1079 = vunpack.c.l.b16 %v791
      %v1080 = vunpack.c.l.b16 %v792
      %v1081 = vunpack.c.l.b16 %v793
      %v1082 = vunpack.c.l.b16 %v794
      %v1083 = vunpack.c.l.b16 %v795
      %v1084 = vunpack.c.l.b16 %v796
      %v1085 = vunpack.c.l.b16 %v797
      %v1086 = vunpack.c.l.b16 %v798
      %v1087 = vunpack.c.l.b16 %v799
      %v1088 = vunpack.c.l.b16 %v800
      %v1089 = vpack.c.b16 %v946, %v945
      %v1090 = vpack.c.b16 %v948, %v947
      %v1091 = vpack.c.b16 %v950, %v949
      %v1092 = vpack.c.b16 %v952, %v951
      %v1093 = vpack.c.b16 %v954, %v953
      %v1094 = vpack.c.b16 %v956, %v955
      %v1095 = vpack.c.b16 %v958, %v957
      %v1096 = vpack.c.b16 %v960, %v959
      %v1097 = vpack.c.b16 %v962, %v961
      %v1098 = vpack.c.b16 %v964, %v963
      %v1099 = vpack.c.b16 %v966, %v965
      %v1100 = vpack.c.b16 %v968, %v967
      %v1101 = vpack.c.b16 %v970, %v969
      %v1102 = vpack.c.b16 %v972, %v971
      %v1103 = vpack.c.b16 %v974, %v973
      %v1104 = vpack.c.b16 %v976, %v975
      %v1105 = vpack.c.b16 %v978, %v977
      %v1106 = vpack.c.b16 %v980, %v979
      %v1107 = vpack.c.b16 %v982, %v981
      %v1108 = vpack.c.b16 %v984, %v983
      %v1109 = vpack.c.b16 %v986, %v985
      %v1110 = vpack.c.b16 %v988, %v987
      %v1111 = vpack.c.b16 %v990, %v989
      %v1112 = vpack.c.b16 %v992, %v991
      %v1113 = vpack.c.b16 %v994, %v993
      %v1114 = vpack.c.b16 %v996, %v995
      %v1115 = vpack.c.b16 %v998, %v997
      %v1116 = vpack.c.b16 %v1000, %v999
      %v1117 = vpack.c.b16 %v1002, %v1001
      %v1118 = vpack.c.b16 %v1004, %v1003
      %v1119 = vpack.c.b16 %v1006, %v1005
      %v1120 = vpack.c.b16 %v1008, %v1007
      %v1121 = vpack.c.b16 %v1010, %v1009
      %v1122 = vpack.c.b16 %v1012, %v1011
      %v1123 = vpack.c.b16 %v1014, %v1013
      %v1124 = vpack.c.b16 %v1016, %v1015
      %v1125 = vpack.c.b16 %v1018, %v1017
      %v1126 = vpack.c.b16 %v1020, %v1019
      %v1127 = vpack.c.b16 %v1022, %v1021
      %v1128 = vpack.c.b16 %v1024, %v1023
      %v1129 = vpack.c.b16 %v1026, %v1025
      %v1130 = vpack.c.b16 %v1028, %v1027
      %v1131 = vpack.c.b16 %v1030, %v1029
      %v1132 = vpack.c.b16 %v1032, %v1031
      %v1133 = vpack.c.b16 %v1034, %v1033
      %v1134 = vpack.c.b16 %v1036, %v1035
      %v1135 = vpack.c.b16 %v1038, %v1037
      %v1136 = vpack.c.b16 %v1040, %v1039
      %v1137 = vpack.c.b16 %v1042, %v1041
      %v1138 = vpack.c.b16 %v1044, %v1043
      %v1139 = vpack.c.b16 %v1046, %v1045
      %v1140 = vpack.c.b16 %v1048, %v1047
      %v1141 = vpack.c.b16 %v1050, %v1049
      %v1142 = vpack.c.b16 %v1052, %v1051
      %v1143 = vpack.c.b16 %v1054, %v1053
      %v1144 = vpack.c.b16 %v1056, %v1055
      %v1145 = vpack.c.b16 %v1058, %v1057
      %v1146 = vpack.c.b16 %v1060, %v1059
      %v1147 = vpack.c.b16 %v1062, %v1061
      %v1148 = vpack.c.b16 %v1064, %v1063
      %v1149 = vpack.c.b16 %v1066, %v1065
      %v1150 = vpack.c.b16 %v1068, %v1067
      %v1151 = vpack.c.b16 %v1070, %v1069
      %v1152 = vpack.c.b16 %v1072, %v1071
      %v1153 = vpack.c.b16 %v1074, %v1073
      %v1154 = vpack.c.b16 %v1076, %v1075
      %v1155 = vpack.c.b16 %v1078, %v1077
      %v1156 = vpack.c.b16 %v1080, %v1079
      %v1157 = vpack.c.b16 %v1082, %v1081
      %v1158 = vpack.c.b16 %v1084, %v1083
      %v1159 = vpack.c.b16 %v1086, %v1085
      %v1160 = vpack.c.b16 %v1088, %v1087
      %1233 = vmatpush.bf16.msra.mxu0 %v1096
      %1234 = vmatpush.bf16.msra.mxu0 %v1095
      %1235 = vmatpush.bf16.msra.mxu0 %v1094
      %1236 = vmatpush.bf16.msra.mxu0 %v1093
      %1237 = vmatpush.bf16.msra.mxu0 %v1092
      %1238 = vmatpush.bf16.msra.mxu0 %v1091
      %1239 = vmatpush.bf16.msra.mxu0 %v1090
      %1240 = vmatpush.bf16.msra.mxu0 %v1089
      %1241 = vmatmul.bf16.gmra.mxu0 %v349
      %v1242 = vpop.f32.mrf.mxu0
      %v1243 = vadd.f32 0.0, %v1242
      %v1244 = vpop.f32.mrf.mxu0
      %v1245 = vadd.f32 0.0, %v1244
      %1246 = vmatmul.bf16.gmra.mxu0 %v350
      %v1247 = vpop.f32.mrf.mxu0
      %v1248 = vadd.f32 0.0, %v1247
      %v1249 = vpop.f32.mrf.mxu0
      %v1250 = vadd.f32 0.0, %v1249
      %1251 = vmatmul.bf16.gmra.mxu0 %v351
      %v1252 = vpop.f32.mrf.mxu0
      %v1253 = vadd.f32 0.0, %v1252
      %v1254 = vpop.f32.mrf.mxu0
      %v1255 = vadd.f32 0.0, %v1254
      %1256 = vmatmul.bf16.gmra.mxu0 %v352
      %v1257 = vpop.f32.mrf.mxu0
      %v1258 = vadd.f32 0.0, %v1257
      %v1259 = vpop.f32.mrf.mxu0
      %v1260 = vadd.f32 0.0, %v1259
      %1261 = vmatmul.bf16.gmra.mxu0 %v353
      %v1262 = vpop.f32.mrf.mxu0
      %v1263 = vadd.f32 0.0, %v1262
      %v1264 = vpop.f32.mrf.mxu0
      %1265 = vdwg.mxu0
      %1266 = vmatpush.bf16.msra.mxu0 %v1104
      %1267 = vmatpush.bf16.msra.mxu0 %v1103
      %1268 = vmatpush.bf16.msra.mxu0 %v1102
      %1269 = vmatpush.bf16.msra.mxu0 %v1101
      %1270 = vmatpush.bf16.msra.mxu0 %v1100
      %1271 = vmatpush.bf16.msra.mxu0 %v1099
      %1272 = vmatpush.bf16.msra.mxu0 %v1098
      %1273 = vmatpush.bf16.msra.mxu0 %v1097
      %1274 = vmatmul.bf16.gmra.mxu0 %v377
      %v1275 = vpop.f32.mrf.mxu0
      %v1276 = vadd.f32 %v1243, %v1275
      %v1277 = vpop.f32.mrf.mxu0
      %v1278 = vadd.f32 %v1245, %v1277
      %1279 = vmatmul.bf16.gmra.mxu0 %v378
      %v1280 = vpop.f32.mrf.mxu0
      %v1281 = vadd.f32 %v1248, %v1280
      %v1282 = vpop.f32.mrf.mxu0
      %v1283 = vadd.f32 %v1250, %v1282
      %1284 = vmatmul.bf16.gmra.mxu0 %v379
      %v1285 = vpop.f32.mrf.mxu0
      %v1286 = vadd.f32 %v1253, %v1285
      %v1287 = vpop.f32.mrf.mxu0
      %v1288 = vadd.f32 %v1255, %v1287
      %1289 = vmatmul.bf16.gmra.mxu0 %v380
      %v1290 = vpop.f32.mrf.mxu0
      %v1291 = vadd.f32 %v1258, %v1290
      %v1292 = vpop.f32.mrf.mxu0
      %v1293 = vadd.f32 %v1260, %v1292
      %1294 = vmatmul.bf16.gmra.mxu0 %v381
      %v1295 = vpop.f32.mrf.mxu0
      %v1296 = vadd.f32 %v1263, %v1295
      %v1297 = vpop.f32.mrf.mxu0
      %1298 = vdwg.mxu0
      %1299 = vmatpush.bf16.msra.mxu0 %v1112
      %1300 = vmatpush.bf16.msra.mxu0 %v1111
      %1301 = vmatpush.bf16.msra.mxu0 %v1110
      %1302 = vmatpush.bf16.msra.mxu0 %v1109
      %1303 = vmatpush.bf16.msra.mxu0 %v1108
      %1304 = vmatpush.bf16.msra.mxu0 %v1107
      %1305 = vmatpush.bf16.msra.mxu0 %v1106
      %1306 = vmatpush.bf16.msra.mxu0 %v1105
      %1307 = vmatmul.bf16.gmra.mxu0 %v402
      %v1308 = vpop.f32.mrf.mxu0
      %v1309 = vadd.f32 %v1276, %v1308
      %v1310 = vpop.f32.mrf.mxu0
      %v1311 = vadd.f32 %v1278, %v1310
      %1312 = vmatmul.bf16.gmra.mxu0 %v410
      %v1313 = vpop.f32.mrf.mxu0
      %v1314 = vadd.f32 %v1281, %v1313
      %v1315 = vpop.f32.mrf.mxu0
      %v1316 = vadd.f32 %v1283, %v1315
      %1317 = vmatmul.bf16.gmra.mxu0 %v418
      %v1318 = vpop.f32.mrf.mxu0
      %v1319 = vadd.f32 %v1286, %v1318
      %v1320 = vpop.f32.mrf.mxu0
      %v1321 = vadd.f32 %v1288, %v1320
      %1322 = vmatmul.bf16.gmra.mxu0 %v426
      %v1323 = vpop.f32.mrf.mxu0
      %v1324 = vadd.f32 %v1291, %v1323
      %v1325 = vpop.f32.mrf.mxu0
      %v1326 = vadd.f32 %v1293, %v1325
      %1327 = vmatmul.bf16.gmra.mxu0 %v429
      %v1328 = vpop.f32.mrf.mxu0
      %v1329 = vadd.f32 %v1296, %v1328
      %v1330 = vpop.f32.mrf.mxu0
      %1331 = vdwg.mxu0
      %1332 = vmatpush.bf16.msra.mxu0 %v1120
      %1333 = vmatpush.bf16.msra.mxu0 %v1119
      %1334 = vmatpush.bf16.msra.mxu0 %v1118
      %1335 = vmatpush.bf16.msra.mxu0 %v1117
      %1336 = vmatpush.bf16.msra.mxu0 %v1116
      %1337 = vmatpush.bf16.msra.mxu0 %v1115
      %1338 = vmatpush.bf16.msra.mxu0 %v1114
      %1339 = vmatpush.bf16.msra.mxu0 %v1113
      %1340 = vmatmul.bf16.gmra.mxu0 %v453
      %v1341 = vpop.f32.mrf.mxu0
      %v1342 = vadd.f32 %v1309, %v1341
      %v1343 = vpop.f32.mrf.mxu0
      %v1344 = vadd.f32 %v1311, %v1343
      %1345 = vmatmul.bf16.gmra.mxu0 %v454
      %v1346 = vpop.f32.mrf.mxu0
      %v1347 = vadd.f32 %v1314, %v1346
      %v1348 = vpop.f32.mrf.mxu0
      %v1349 = vadd.f32 %v1316, %v1348
      %1350 = vmatmul.bf16.gmra.mxu0 %v455
      %v1351 = vpop.f32.mrf.mxu0
      %v1352 = vadd.f32 %v1319, %v1351
      %v1353 = vpop.f32.mrf.mxu0
      %v1354 = vadd.f32 %v1321, %v1353
      %1355 = vmatmul.bf16.gmra.mxu0 %v456
      %v1356 = vpop.f32.mrf.mxu0
      %v1357 = vadd.f32 %v1324, %v1356
      %v1358 = vpop.f32.mrf.mxu0
      %v1359 = vadd.f32 %v1326, %v1358
      %1360 = vmatmul.bf16.gmra.mxu0 %v457
      %v1361 = vpop.f32.mrf.mxu0
      %v1362 = vadd.f32 %v1329, %v1361
      %v1363 = vpop.f32.mrf.mxu0
      %1364 = vdwg.mxu0
      %1365 = vmatpush.bf16.msra.mxu0 %v1128
      %1366 = vmatpush.bf16.msra.mxu0 %v1127
      %1367 = vmatpush.bf16.msra.mxu0 %v1126
      %1368 = vmatpush.bf16.msra.mxu0 %v1125
      %1369 = vmatpush.bf16.msra.mxu0 %v1124
      %1370 = vmatpush.bf16.msra.mxu0 %v1123
      %1371 = vmatpush.bf16.msra.mxu0 %v1122
      %1372 = vmatpush.bf16.msra.mxu0 %v1121
      %1373 = vmatmul.bf16.gmra.mxu0 %v481
      %v1374 = vpop.f32.mrf.mxu0
      %v1375 = vadd.f32 %v1342, %v1374
      %v1376 = vpop.f32.mrf.mxu0
      %v1377 = vadd.f32 %v1344, %v1376
      %1378 = vmatmul.bf16.gmra.mxu0 %v482
      %v1379 = vpop.f32.mrf.mxu0
      %v1380 = vadd.f32 %v1347, %v1379
      %v1381 = vpop.f32.mrf.mxu0
      %v1382 = vadd.f32 %v1349, %v1381
      %1383 = vmatmul.bf16.gmra.mxu0 %v483
      %v1384 = vpop.f32.mrf.mxu0
      %v1385 = vadd.f32 %v1352, %v1384
      %v1386 = vpop.f32.mrf.mxu0
      %v1387 = vadd.f32 %v1354, %v1386
      %1388 = vmatmul.bf16.gmra.mxu0 %v484
      %v1389 = vpop.f32.mrf.mxu0
      %v1390 = vadd.f32 %v1357, %v1389
      %v1391 = vpop.f32.mrf.mxu0
      %v1392 = vadd.f32 %v1359, %v1391
      %1393 = vmatmul.bf16.gmra.mxu0 %v485
      %v1394 = vpop.f32.mrf.mxu0
      %v1395 = vadd.f32 %v1362, %v1394
      %v1396 = vpop.f32.mrf.mxu0
      %1397 = vdwg.mxu0
      %1398 = vmatpush.bf16.msra.mxu0 %v1136
      %1399 = vmatpush.bf16.msra.mxu0 %v1135
      %1400 = vmatpush.bf16.msra.mxu0 %v1134
      %1401 = vmatpush.bf16.msra.mxu0 %v1133
      %1402 = vmatpush.bf16.msra.mxu0 %v1132
      %1403 = vmatpush.bf16.msra.mxu0 %v1131
      %1404 = vmatpush.bf16.msra.mxu0 %v1130
      %1405 = vmatpush.bf16.msra.mxu0 %v1129
      %1406 = vmatmul.bf16.gmra.mxu0 %v505
      %v1407 = vpop.f32.mrf.mxu0
      %v1408 = vadd.f32 %v1375, %v1407
      %v1409 = vpop.f32.mrf.mxu0
      %v1410 = vadd.f32 %v1377, %v1409
      %1411 = vmatmul.bf16.gmra.mxu0 %v513
      %v1412 = vpop.f32.mrf.mxu0
      %v1413 = vadd.f32 %v1380, %v1412
      %v1414 = vpop.f32.mrf.mxu0
      %v1415 = vadd.f32 %v1382, %v1414
      %1416 = vmatmul.bf16.gmra.mxu0 %v521
      %v1417 = vpop.f32.mrf.mxu0
      %v1418 = vadd.f32 %v1385, %v1417
      %v1419 = vpop.f32.mrf.mxu0
      %v1420 = vadd.f32 %v1387, %v1419
      %1421 = vmatmul.bf16.gmra.mxu0 %v529
      %v1422 = vpop.f32.mrf.mxu0
      %v1423 = vadd.f32 %v1390, %v1422
      %v1424 = vpop.f32.mrf.mxu0
      %v1425 = vadd.f32 %v1392, %v1424
      %1426 = vmatmul.bf16.gmra.mxu0 %v532
      %v1427 = vpop.f32.mrf.mxu0
      %v1428 = vadd.f32 %v1395, %v1427
      %v1429 = vpop.f32.mrf.mxu0
      %1430 = vdwg.mxu0
      %1431 = vmatpush.bf16.msra.mxu0 %v1144
      %1432 = vmatpush.bf16.msra.mxu0 %v1143
      %1433 = vmatpush.bf16.msra.mxu0 %v1142
      %1434 = vmatpush.bf16.msra.mxu0 %v1141
      %1435 = vmatpush.bf16.msra.mxu0 %v1140
      %1436 = vmatpush.bf16.msra.mxu0 %v1139
      %1437 = vmatpush.bf16.msra.mxu0 %v1138
      %1438 = vmatpush.bf16.msra.mxu0 %v1137
      %1439 = vmatmul.bf16.gmra.mxu0 %v556
      %v1440 = vpop.f32.mrf.mxu0
      %v1441 = vadd.f32 %v1408, %v1440
      %v1442 = vpop.f32.mrf.mxu0
      %v1443 = vadd.f32 %v1410, %v1442
      %1444 = vmatmul.bf16.gmra.mxu0 %v564
      %v1445 = vpop.f32.mrf.mxu0
      %v1446 = vadd.f32 %v1413, %v1445
      %v1447 = vpop.f32.mrf.mxu0
      %v1448 = vadd.f32 %v1415, %v1447
      %1449 = vmatmul.bf16.gmra.mxu0 %v572
      %v1450 = vpop.f32.mrf.mxu0
      %v1451 = vadd.f32 %v1418, %v1450
      %v1452 = vpop.f32.mrf.mxu0
      %v1453 = vadd.f32 %v1420, %v1452
      %1454 = vmatmul.bf16.gmra.mxu0 %v580
      %v1455 = vpop.f32.mrf.mxu0
      %v1456 = vadd.f32 %v1423, %v1455
      %v1457 = vpop.f32.mrf.mxu0
      %v1458 = vadd.f32 %v1425, %v1457
      %1459 = vmatmul.bf16.gmra.mxu0 %v583
      %v1460 = vpop.f32.mrf.mxu0
      %v1461 = vadd.f32 %v1428, %v1460
      %v1462 = vpop.f32.mrf.mxu0
      %1463 = vdwg.mxu0
      %1464 = vmatpush.bf16.msra.mxu0 %v1152
      %1465 = vmatpush.bf16.msra.mxu0 %v1151
      %1466 = vmatpush.bf16.msra.mxu0 %v1150
      %1467 = vmatpush.bf16.msra.mxu0 %v1149
      %1468 = vmatpush.bf16.msra.mxu0 %v1148
      %1469 = vmatpush.bf16.msra.mxu0 %v1147
      %1470 = vmatpush.bf16.msra.mxu0 %v1146
      %1471 = vmatpush.bf16.msra.mxu0 %v1145
      %1472 = vmatmul.bf16.gmra.mxu0 %v609
      %v1473 = vpop.f32.mrf.mxu0
      %v1474 = vadd.f32 %v1441, %v1473
      %v1475 = vpop.f32.mrf.mxu0
      %v1476 = vadd.f32 %v1443, %v1475
      %1477 = vmatmul.bf16.gmra.mxu0 %v617
      %v1478 = vpop.f32.mrf.mxu0
      %v1479 = vadd.f32 %v1446, %v1478
      %v1480 = vpop.f32.mrf.mxu0
      %v1481 = vadd.f32 %v1448, %v1480
      %1482 = vmatmul.bf16.gmra.mxu0 %v625
      %v1483 = vpop.f32.mrf.mxu0
      %v1484 = vadd.f32 %v1451, %v1483
      %v1485 = vpop.f32.mrf.mxu0
      %v1486 = vadd.f32 %v1453, %v1485
      %1487 = vmatmul.bf16.gmra.mxu0 %v633
      %v1488 = vpop.f32.mrf.mxu0
      %v1489 = vadd.f32 %v1456, %v1488
      %v1490 = vpop.f32.mrf.mxu0
      %v1491 = vadd.f32 %v1458, %v1490
      %1492 = vmatmul.bf16.gmra.mxu0 %v636
      %v1493 = vpop.f32.mrf.mxu0
      %v1494 = vadd.f32 %v1461, %v1493
      %v1495 = vpop.f32.mrf.mxu0
      %1496 = vdwg.mxu0
      %1497 = vmatpush.bf16.msra.mxu0 %v1160
      %1498 = vmatpush.bf16.msra.mxu0 %v1159
      %1499 = vmatpush.bf16.msra.mxu0 %v1158
      %1500 = vmatpush.bf16.msra.mxu0 %v1157
      %1501 = vmatpush.bf16.msra.mxu0 %v1156
      %1502 = vmatpush.bf16.msra.mxu0 %v1155
      %1503 = vmatpush.bf16.msra.mxu0 %v1154
      %1504 = vmatpush.bf16.msra.mxu0 %v1153
      %1505 = vmatmul.bf16.gmra.mxu0 %v645
      %v1506 = vpop.f32.mrf.mxu0
      %v1507 = vadd.f32 %v1474, %v1506
      %v1508 = vpop.f32.mrf.mxu0
      %v1509 = vadd.f32 %v1476, %v1508
      %1510 = vmatmul.bf16.gmra.mxu0 %v647
      %v1511 = vpop.f32.mrf.mxu0
      %v1512 = vadd.f32 %v1479, %v1511
      %v1513 = vpop.f32.mrf.mxu0
      %v1514 = vadd.f32 %v1481, %v1513
      %1515 = vmatmul.bf16.gmra.mxu0 %v649
      %v1516 = vpop.f32.mrf.mxu0
      %v1517 = vadd.f32 %v1484, %v1516
      %v1518 = vpop.f32.mrf.mxu0
      %v1519 = vadd.f32 %v1486, %v1518
      %1520 = vmatmul.bf16.gmra.mxu0 %v651
      %v1521 = vpop.f32.mrf.mxu0
      %v1522 = vadd.f32 %v1489, %v1521
      %v1523 = vpop.f32.mrf.mxu0
      %v1524 = vadd.f32 %v1491, %v1523
      %1525 = vmatmul.bf16.gmra.mxu0 %v650
      %v1526 = vpop.f32.mrf.mxu0
      %v1527 = vadd.f32 %v1494, %v1526
      %v1528 = vpop.f32.mrf.mxu0
      %1529 = vdwg.mxu0
      %v1539 = vrot.slane %v1507, 1
      %v1540 = vrot.slane %v1507, 2
      %v1541 = vrot.slane %v1507, 3
      %v1542 = vrot.slane %v1507, 4
      %v1543 = vrot.slane %v1507, 5
      %v1544 = vrot.slane %v1507, 6
      %v1545 = vrot.slane %v1507, 7
      %v1546 = vrot.slane %v1509, 1
      %v1547 = vrot.slane %v1509, 2
      %v1548 = vrot.slane %v1509, 3
      %v1549 = vrot.slane %v1509, 4
      %v1550 = vrot.slane %v1509, 5
      %v1551 = vrot.slane %v1509, 6
      %v1552 = vrot.slane %v1509, 7
      %v1553 = vrot.slane %v1512, 2
      %v1554 = vrot.slane %v1512, 3
      %v1555 = vrot.slane %v1512, 4
      %v1556 = vrot.slane %v1512, 5
      %v1557 = vrot.slane %v1512, 6
      %v1558 = vrot.slane %v1512, 7
      %v1559 = vrot.slane %v1514, 1
      %v1560 = vrot.slane %v1514, 3
      %v1561 = vrot.slane %v1514, 4
      %v1562 = vrot.slane %v1514, 5
      %v1563 = vrot.slane %v1514, 6
      %v1564 = vrot.slane %v1514, 7
      %v1565 = vrot.slane %v1517, 1
      %v1566 = vrot.slane %v1517, 2
      %v1567 = vrot.slane %v1517, 4
      %v1568 = vrot.slane %v1517, 5
      %v1569 = vrot.slane %v1517, 6
      %v1570 = vrot.slane %v1517, 7
      %v1571 = vrot.slane %v1519, 1
      %v1572 = vrot.slane %v1519, 2
      %v1573 = vrot.slane %v1519, 3
      %v1574 = vrot.slane %v1519, 5
      %v1575 = vrot.slane %v1519, 6
      %v1576 = vrot.slane %v1519, 7
      %v1577 = vrot.slane %v1522, 1
      %v1578 = vrot.slane %v1522, 2
      %v1579 = vrot.slane %v1522, 3
      %v1580 = vrot.slane %v1522, 4
      %v1581 = vrot.slane %v1522, 6
      %v1582 = vrot.slane %v1522, 7
      %v1583 = vrot.slane %v1524, 1
      %v1584 = vrot.slane %v1524, 2
      %v1585 = vrot.slane %v1524, 3
      %v1586 = vrot.slane %v1524, 4
      %v1587 = vrot.slane %v1524, 5
      %v1588 = vrot.slane %v1524, 7
      %v1589 = vrot.slane %v1527, 1
      %v1590 = vrot.slane %v1527, 2
      %v1591 = vrot.slane %v1527, 3
      %v1592 = vrot.slane %v1527, 4
      %v1593 = vrot.slane %v1527, 5
      %v1594 = vrot.slane %v1527, 6
      %1651 = vst [vmem:[#allocation1] ss:$9 sm:$0xff] %v1507
      %s1652 = scalar_lea.vmem [#allocation1], 1
      %1653 = vst [vmem:[%s1652] ss:$9 sm:$0xff] %v1539
      %s1654 = scalar_lea.vmem [#allocation1], 2
      %1655 = vst [vmem:[%s1654] ss:$9 sm:$0xff] %v1540
      %s1656 = scalar_lea.vmem [#allocation1], 3
      %1657 = vst [vmem:[%s1656] ss:$9 sm:$0xff] %v1541
      %s1658 = scalar_lea.vmem [#allocation1], 4
      %1659 = vst [vmem:[%s1658] ss:$9 sm:$0xff] %v1542
      %s1660 = scalar_lea.vmem [#allocation1], 5
      %1661 = vst [vmem:[%s1660] ss:$9 sm:$0xff] %v1543
      %s1662 = scalar_lea.vmem [#allocation1], 6
      %1663 = vst [vmem:[%s1662] ss:$9 sm:$0xff] %v1544
      %s1664 = scalar_lea.vmem [#allocation1], 7
      %1665 = vst [vmem:[%s1664] ss:$9 sm:$0xff] %v1545
      %v1666 = vld [vmem:[#allocation1] sm:$0xff]
      %1667 = vst [vmem:[#allocation1] ss:$9 sm:$0xff] %v1546
      %1668 = vst [vmem:[%s1652] ss:$9 sm:$0xff] %v1547
      %1669 = vst [vmem:[%s1654] ss:$9 sm:$0xff] %v1548
      %1670 = vst [vmem:[%s1656] ss:$9 sm:$0xff] %v1549
      %1671 = vst [vmem:[%s1658] ss:$9 sm:$0xff] %v1550
      %1672 = vst [vmem:[%s1660] ss:$9 sm:$0xff] %v1551
      %1673 = vst [vmem:[%s1662] ss:$9 sm:$0xff] %v1552
      %1674 = vst [vmem:[%s1664] ss:$9 sm:$0xff] %v1512
      %v1675 = vld [vmem:[#allocation1] sm:$0xff]
      %1676 = vst [vmem:[#allocation1] ss:$9 sm:$0xff] %v1553
      %1677 = vst [vmem:[%s1652] ss:$9 sm:$0xff] %v1554
      %1678 = vst [vmem:[%s1654] ss:$9 sm:$0xff] %v1555
      %1679 = vst [vmem:[%s1656] ss:$9 sm:$0xff] %v1556
      %1680 = vst [vmem:[%s1658] ss:$9 sm:$0xff] %v1557
      %1681 = vst [vmem:[%s1660] ss:$9 sm:$0xff] %v1558
      %1682 = vst [vmem:[%s1662] ss:$9 sm:$0xff] %v1514
      %1683 = vst [vmem:[%s1664] ss:$9 sm:$0xff] %v1559
      %v1684 = vld [vmem:[#allocation1] sm:$0xff]
      %1685 = vst [vmem:[#allocation1] ss:$9 sm:$0xff] %v1560
      %1686 = vst [vmem:[%s1652] ss:$9 sm:$0xff] %v1561
      %1687 = vst [vmem:[%s1654] ss:$9 sm:$0xff] %v1562
      %1688 = vst [vmem:[%s1656] ss:$9 sm:$0xff] %v1563
      %1689 = vst [vmem:[%s1658] ss:$9 sm:$0xff] %v1564
      %1690 = vst [vmem:[%s1660] ss:$9 sm:$0xff] %v1517
      %1691 = vst [vmem:[%s1662] ss:$9 sm:$0xff] %v1565
      %1692 = vst [vmem:[%s1664] ss:$9 sm:$0xff] %v1566
      %v1693 = vld [vmem:[#allocation1] sm:$0xff]
      %1694 = vst [vmem:[#allocation1] ss:$9 sm:$0xff] %v1567
      %1695 = vst [vmem:[%s1652] ss:$9 sm:$0xff] %v1568
      %1696 = vst [vmem:[%s1654] ss:$9 sm:$0xff] %v1569
      %1697 = vst [vmem:[%s1656] ss:$9 sm:$0xff] %v1570
      %1698 = vst [vmem:[%s1658] ss:$9 sm:$0xff] %v1519
      %1699 = vst [vmem:[%s1660] ss:$9 sm:$0xff] %v1571
      %1700 = vst [vmem:[%s1662] ss:$9 sm:$0xff] %v1572
      %1701 = vst [vmem:[%s1664] ss:$9 sm:$0xff] %v1573
      %v1702 = vld [vmem:[#allocation1] sm:$0xff]
      %1703 = vst [vmem:[#allocation1] ss:$9 sm:$0xff] %v1574
      %1704 = vst [vmem:[%s1652] ss:$9 sm:$0xff] %v1575
      %1705 = vst [vmem:[%s1654] ss:$9 sm:$0xff] %v1576
      %1706 = vst [vmem:[%s1656] ss:$9 sm:$0xff] %v1522
      %1707 = vst [vmem:[%s1658] ss:$9 sm:$0xff] %v1577
      %1708 = vst [vmem:[%s1660] ss:$9 sm:$0xff] %v1578
      %1709 = vst [vmem:[%s1662] ss:$9 sm:$0xff] %v1579
      %1710 = vst [vmem:[%s1664] ss:$9 sm:$0xff] %v1580
      %v1711 = vld [vmem:[#allocation1] sm:$0xff]
      %1712 = vst [vmem:[#allocation1] ss:$9 sm:$0xff] %v1581
      %1713 = vst [vmem:[%s1652] ss:$9 sm:$0xff] %v1582
      %1714 = vst [vmem:[%s1654] ss:$9 sm:$0xff] %v1524
      %1715 = vst [vmem:[%s1656] ss:$9 sm:$0xff] %v1583
      %1716 = vst [vmem:[%s1658] ss:$9 sm:$0xff] %v1584
      %1717 = vst [vmem:[%s1660] ss:$9 sm:$0xff] %v1585
      %1718 = vst [vmem:[%s1662] ss:$9 sm:$0xff] %v1586
      %1719 = vst [vmem:[%s1664] ss:$9 sm:$0xff] %v1587
      %v1720 = vld [vmem:[#allocation1] sm:$0xff]
      %1721 = vst [vmem:[#allocation1] ss:$9 sm:$0xff] %v1588
      %1722 = vst [vmem:[%s1652] ss:$9 sm:$0xff] %v1527
      %1723 = vst [vmem:[%s1654] ss:$9 sm:$0xff] %v1589
      %1724 = vst [vmem:[%s1656] ss:$9 sm:$0xff] %v1590
      %1725 = vst [vmem:[%s1658] ss:$9 sm:$0xff] %v1591
      %1726 = vst [vmem:[%s1660] ss:$9 sm:$0xff] %v1592
      %1727 = vst [vmem:[%s1662] ss:$9 sm:$0xff] %v1593
      %1728 = vst [vmem:[%s1664] ss:$9 sm:$0xff] %v1594
      %v1729 = vld [vmem:[#allocation1] sm:$0xff]
      %v1738 = vadd.f32 %v1666, %v1675
      %v1739 = vadd.f32 %v1738, %v1684
      %v1740 = vadd.f32 %v1739, %v1693
      %v1741 = vadd.f32 %v1740, %v1702
      %v1742 = vadd.f32 %v1741, %v1711
      %v1743 = vadd.f32 %v1742, %v1720
      %v1744 = vadd.f32 %v1743, %v1729
      %v1745 = vrot.slane %v1744, 4
      %v1746 = vadd.f32 %v1744, %v1745
      %v1747 = vrot.slane %v1746, 2
      %v1748 = vadd.f32 %v1746, %v1747
      %v1749 = vrot.slane %v1748, 1
      %v1750 = vadd.f32 %v1748, %v1749
      %v1751 = vmul.f32 %v1507, %v1507
      %v1752 = vmul.f32 %v1539, %v1539
      %v1753 = vmul.f32 %v1540, %v1540
      %v1754 = vmul.f32 %v1541, %v1541
      %v1755 = vmul.f32 %v1542, %v1542
      %v1756 = vmul.f32 %v1543, %v1543
      %v1757 = vmul.f32 %v1544, %v1544
      %v1758 = vmul.f32 %v1545, %v1545
      %v1759 = vmul.f32 %v1546, %v1546
      %v1760 = vmul.f32 %v1547, %v1547
      %v1761 = vmul.f32 %v1548, %v1548
      %v1762 = vmul.f32 %v1549, %v1549
      %v1763 = vmul.f32 %v1550, %v1550
      %v1764 = vmul.f32 %v1551, %v1551
      %v1765 = vmul.f32 %v1552, %v1552
      %v1766 = vmul.f32 %v1512, %v1512
      %v1767 = vmul.f32 %v1553, %v1553
      %v1768 = vmul.f32 %v1554, %v1554
      %v1769 = vmul.f32 %v1555, %v1555
      %v1770 = vmul.f32 %v1556, %v1556
      %v1771 = vmul.f32 %v1557, %v1557
      %v1772 = vmul.f32 %v1558, %v1558
      %v1773 = vmul.f32 %v1514, %v1514
      %v1774 = vmul.f32 %v1559, %v1559
      %v1775 = vmul.f32 %v1560, %v1560
      %v1776 = vmul.f32 %v1561, %v1561
      %v1777 = vmul.f32 %v1562, %v1562
      %v1778 = vmul.f32 %v1563, %v1563
      %v1779 = vmul.f32 %v1564, %v1564
      %v1780 = vmul.f32 %v1517, %v1517
      %v1781 = vmul.f32 %v1565, %v1565
      %v1782 = vmul.f32 %v1566, %v1566
      %v1783 = vmul.f32 %v1567, %v1567
      %v1784 = vmul.f32 %v1568, %v1568
      %v1785 = vmul.f32 %v1569, %v1569
      %v1786 = vmul.f32 %v1570, %v1570
      %v1787 = vmul.f32 %v1519, %v1519
      %v1788 = vmul.f32 %v1571, %v1571
      %v1789 = vmul.f32 %v1572, %v1572
      %v1790 = vmul.f32 %v1573, %v1573
      %v1791 = vmul.f32 %v1574, %v1574
      %v1792 = vmul.f32 %v1575, %v1575
      %v1793 = vmul.f32 %v1576, %v1576
      %v1794 = vmul.f32 %v1522, %v1522
      %v1795 = vmul.f32 %v1577, %v1577
      %v1796 = vmul.f32 %v1578, %v1578
      %v1797 = vmul.f32 %v1579, %v1579
      %v1798 = vmul.f32 %v1580, %v1580
      %v1799 = vmul.f32 %v1581, %v1581
      %v1800 = vmul.f32 %v1582, %v1582
      %v1801 = vmul.f32 %v1524, %v1524
      %v1802 = vmul.f32 %v1583, %v1583
      %v1803 = vmul.f32 %v1584, %v1584
      %v1804 = vmul.f32 %v1585, %v1585
      %v1805 = vmul.f32 %v1586, %v1586
      %v1806 = vmul.f32 %v1587, %v1587
      %v1807 = vmul.f32 %v1588, %v1588
      %v1808 = vmul.f32 %v1527, %v1527
      %v1809 = vmul.f32 %v1589, %v1589
      %v1810 = vmul.f32 %v1590, %v1590
      %v1811 = vmul.f32 %v1591, %v1591
      %v1812 = vmul.f32 %v1592, %v1592
      %v1813 = vmul.f32 %v1593, %v1593
      %v1814 = vmul.f32 %v1594, %v1594
      %1879 = vst [vmem:[#allocation1] ss:$9 sm:$0xff] %v1751
      %s1880 = scalar_lea.vmem [#allocation1], 1
      %1881 = vst [vmem:[%s1880] ss:$9 sm:$0xff] %v1752
      %s1882 = scalar_lea.vmem [#allocation1], 2
      %1883 = vst [vmem:[%s1882] ss:$9 sm:$0xff] %v1753
      %s1884 = scalar_lea.vmem [#allocation1], 3
      %1885 = vst [vmem:[%s1884] ss:$9 sm:$0xff] %v1754
      %s1886 = scalar_lea.vmem [#allocation1], 4
      %1887 = vst [vmem:[%s1886] ss:$9 sm:$0xff] %v1755
      %s1888 = scalar_lea.vmem [#allocation1], 5
      %1889 = vst [vmem:[%s1888] ss:$9 sm:$0xff] %v1756
      %s1890 = scalar_lea.vmem [#allocation1], 6
      %1891 = vst [vmem:[%s1890] ss:$9 sm:$0xff] %v1757
      %s1892 = scalar_lea.vmem [#allocation1], 7
      %1893 = vst [vmem:[%s1892] ss:$9 sm:$0xff] %v1758
      %v1894 = vld [vmem:[#allocation1] sm:$0xff]
      %1895 = vst [vmem:[#allocation1] ss:$9 sm:$0xff] %v1759
      %1896 = vst [vmem:[%s1880] ss:$9 sm:$0xff] %v1760
      %1897 = vst [vmem:[%s1882] ss:$9 sm:$0xff] %v1761
      %1898 = vst [vmem:[%s1884] ss:$9 sm:$0xff] %v1762
      %1899 = vst [vmem:[%s1886] ss:$9 sm:$0xff] %v1763
      %1900 = vst [vmem:[%s1888] ss:$9 sm:$0xff] %v1764
      %1901 = vst [vmem:[%s1890] ss:$9 sm:$0xff] %v1765
      %1902 = vst [vmem:[%s1892] ss:$9 sm:$0xff] %v1766
      %v1903 = vld [vmem:[#allocation1] sm:$0xff]
      %1904 = vst [vmem:[#allocation1] ss:$9 sm:$0xff] %v1767
      %1905 = vst [vmem:[%s1880] ss:$9 sm:$0xff] %v1768
      %1906 = vst [vmem:[%s1882] ss:$9 sm:$0xff] %v1769
      %1907 = vst [vmem:[%s1884] ss:$9 sm:$0xff] %v1770
      %1908 = vst [vmem:[%s1886] ss:$9 sm:$0xff] %v1771
      %1909 = vst [vmem:[%s1888] ss:$9 sm:$0xff] %v1772
      %1910 = vst [vmem:[%s1890] ss:$9 sm:$0xff] %v1773
      %1911 = vst [vmem:[%s1892] ss:$9 sm:$0xff] %v1774
      %v1912 = vld [vmem:[#allocation1] sm:$0xff]
      %1913 = vst [vmem:[#allocation1] ss:$9 sm:$0xff] %v1775
      %1914 = vst [vmem:[%s1880] ss:$9 sm:$0xff] %v1776
      %1915 = vst [vmem:[%s1882] ss:$9 sm:$0xff] %v1777
      %1916 = vst [vmem:[%s1884] ss:$9 sm:$0xff] %v1778
      %1917 = vst [vmem:[%s1886] ss:$9 sm:$0xff] %v1779
      %1918 = vst [vmem:[%s1888] ss:$9 sm:$0xff] %v1780
      %1919 = vst [vmem:[%s1890] ss:$9 sm:$0xff] %v1781
      %1920 = vst [vmem:[%s1892] ss:$9 sm:$0xff] %v1782
      %v1921 = vld [vmem:[#allocation1] sm:$0xff]
      %1922 = vst [vmem:[#allocation1] ss:$9 sm:$0xff] %v1783
      %1923 = vst [vmem:[%s1880] ss:$9 sm:$0xff] %v1784
      %1924 = vst [vmem:[%s1882] ss:$9 sm:$0xff] %v1785
      %1925 = vst [vmem:[%s1884] ss:$9 sm:$0xff] %v1786
      %1926 = vst [vmem:[%s1886] ss:$9 sm:$0xff] %v1787
      %1927 = vst [vmem:[%s1888] ss:$9 sm:$0xff] %v1788
      %1928 = vst [vmem:[%s1890] ss:$9 sm:$0xff] %v1789
      %1929 = vst [vmem:[%s1892] ss:$9 sm:$0xff] %v1790
      %v1930 = vld [vmem:[#allocation1] sm:$0xff]
      %1931 = vst [vmem:[#allocation1] ss:$9 sm:$0xff] %v1791
      %1932 = vst [vmem:[%s1880] ss:$9 sm:$0xff] %v1792
      %1933 = vst [vmem:[%s1882] ss:$9 sm:$0xff] %v1793
      %1934 = vst [vmem:[%s1884] ss:$9 sm:$0xff] %v1794
      %1935 = vst [vmem:[%s1886] ss:$9 sm:$0xff] %v1795
      %1936 = vst [vmem:[%s1888] ss:$9 sm:$0xff] %v1796
      %1937 = vst [vmem:[%s1890] ss:$9 sm:$0xff] %v1797
      %1938 = vst [vmem:[%s1892] ss:$9 sm:$0xff] %v1798
      %v1939 = vld [vmem:[#allocation1] sm:$0xff]
      %1940 = vst [vmem:[#allocation1] ss:$9 sm:$0xff] %v1799
      %1941 = vst [vmem:[%s1880] ss:$9 sm:$0xff] %v1800
      %1942 = vst [vmem:[%s1882] ss:$9 sm:$0xff] %v1801
      %1943 = vst [vmem:[%s1884] ss:$9 sm:$0xff] %v1802
      %1944 = vst [vmem:[%s1886] ss:$9 sm:$0xff] %v1803
      %1945 = vst [vmem:[%s1888] ss:$9 sm:$0xff] %v1804
      %1946 = vst [vmem:[%s1890] ss:$9 sm:$0xff] %v1805
      %1947 = vst [vmem:[%s1892] ss:$9 sm:$0xff] %v1806
      %v1948 = vld [vmem:[#allocation1] sm:$0xff]
      %1949 = vst [vmem:[#allocation1] ss:$9 sm:$0xff] %v1807
      %1950 = vst [vmem:[%s1880] ss:$9 sm:$0xff] %v1808
      %1951 = vst [vmem:[%s1882] ss:$9 sm:$0xff] %v1809
      %1952 = vst [vmem:[%s1884] ss:$9 sm:$0xff] %v1810
      %1953 = vst [vmem:[%s1886] ss:$9 sm:$0xff] %v1811
      %1954 = vst [vmem:[%s1888] ss:$9 sm:$0xff] %v1812
      %1955 = vst [vmem:[%s1890] ss:$9 sm:$0xff] %v1813
      %1956 = vst [vmem:[%s1892] ss:$9 sm:$0xff] %v1814
      %v1957 = vld [vmem:[#allocation1] sm:$0xff]
      %v1966 = vadd.f32 %v1894, %v1903
      %v1967 = vadd.f32 %v1966, %v1912
      %v1968 = vadd.f32 %v1967, %v1921
      %v1969 = vadd.f32 %v1968, %v1930
      %v1970 = vadd.f32 %v1969, %v1939
      %v1971 = vadd.f32 %v1970, %v1948
      %v1972 = vadd.f32 %v1971, %v1957
      %v1973 = vrot.slane %v1972, 4
      %v1974 = vadd.f32 %v1972, %v1973
      %v1975 = vrot.slane %v1974, 2
      %v1976 = vadd.f32 %v1974, %v1975
      %v1977 = vrot.slane %v1976, 1
      %v1978 = vadd.f32 %v1976, %v1977
      %1979 = vst [vmem:[%s285] sm:$0x1] %v1750
      %1980 = vst [vmem:[%s285 + $0x1] sm:$0x1] %v1978
      %1981 = vst [vmem:[#allocation1] ss:$9 sm:$0xff] %v1507
      %s1982 = scalar_lea.vmem [#allocation1], 1
      %1983 = vst [vmem:[%s1982] ss:$9 sm:$0xff] %v1539
      %s1984 = scalar_lea.vmem [#allocation1], 2
      %1985 = vst [vmem:[%s1984] ss:$9 sm:$0xff] %v1540
      %s1986 = scalar_lea.vmem [#allocation1], 3
      %1987 = vst [vmem:[%s1986] ss:$9 sm:$0xff] %v1541
      %s1988 = scalar_lea.vmem [#allocation1], 4
      %1989 = vst [vmem:[%s1988] ss:$9 sm:$0xff] %v1542
      %s1990 = scalar_lea.vmem [#allocation1], 5
      %1991 = vst [vmem:[%s1990] ss:$9 sm:$0xff] %v1543
      %s1992 = scalar_lea.vmem [#allocation1], 6
      %1993 = vst [vmem:[%s1992] ss:$9 sm:$0xff] %v1544
      %s1994 = scalar_lea.vmem [#allocation1], 7
      %1995 = vst [vmem:[%s1994] ss:$9 sm:$0xff] %v1545
      %v1996 = vld [vmem:[#allocation1] sm:$0xff]
      %1997 = vst [vmem:[#allocation1] ss:$9 sm:$0xff] %v1546
      %1998 = vst [vmem:[%s1982] ss:$9 sm:$0xff] %v1547
      %1999 = vst [vmem:[%s1984] ss:$9 sm:$0xff] %v1548
      %2000 = vst [vmem:[%s1986] ss:$9 sm:$0xff] %v1549
      %2001 = vst [vmem:[%s1988] ss:$9 sm:$0xff] %v1550
      %2002 = vst [vmem:[%s1990] ss:$9 sm:$0xff] %v1551
      %2003 = vst [vmem:[%s1992] ss:$9 sm:$0xff] %v1552
      %2004 = vst [vmem:[%s1994] ss:$9 sm:$0xff] %v1512
      %v2005 = vld [vmem:[#allocation1] sm:$0xff]
      %2006 = vst [vmem:[#allocation1] ss:$9 sm:$0xff] %v1553
      %2007 = vst [vmem:[%s1982] ss:$9 sm:$0xff] %v1554
      %2008 = vst [vmem:[%s1984] ss:$9 sm:$0xff] %v1555
      %2009 = vst [vmem:[%s1986] ss:$9 sm:$0xff] %v1556
      %2010 = vst [vmem:[%s1988] ss:$9 sm:$0xff] %v1557
      %2011 = vst [vmem:[%s1990] ss:$9 sm:$0xff] %v1558
      %2012 = vst [vmem:[%s1992] ss:$9 sm:$0xff] %v1514
      %2013 = vst [vmem:[%s1994] ss:$9 sm:$0xff] %v1559
      %v2014 = vld [vmem:[#allocation1] sm:$0xff]
      %2015 = vst [vmem:[#allocation1] ss:$9 sm:$0xff] %v1560
      %2016 = vst [vmem:[%s1982] ss:$9 sm:$0xff] %v1561
      %2017 = vst [vmem:[%s1984] ss:$9 sm:$0xff] %v1562
      %2018 = vst [vmem:[%s1986] ss:$9 sm:$0xff] %v1563
      %2019 = vst [vmem:[%s1988] ss:$9 sm:$0xff] %v1564
      %2020 = vst [vmem:[%s1990] ss:$9 sm:$0xff] %v1517
      %2021 = vst [vmem:[%s1992] ss:$9 sm:$0xff] %v1565
      %2022 = vst [vmem:[%s1994] ss:$9 sm:$0xff] %v1566
      %v2023 = vld [vmem:[#allocation1] sm:$0xff]
      %2024 = vst [vmem:[#allocation1] ss:$9 sm:$0xff] %v1567
      %2025 = vst [vmem:[%s1982] ss:$9 sm:$0xff] %v1568
      %2026 = vst [vmem:[%s1984] ss:$9 sm:$0xff] %v1569
      %2027 = vst [vmem:[%s1986] ss:$9 sm:$0xff] %v1570
      %2028 = vst [vmem:[%s1988] ss:$9 sm:$0xff] %v1519
      %2029 = vst [vmem:[%s1990] ss:$9 sm:$0xff] %v1571
      %2030 = vst [vmem:[%s1992] ss:$9 sm:$0xff] %v1572
      %2031 = vst [vmem:[%s1994] ss:$9 sm:$0xff] %v1573
      %v2032 = vld [vmem:[#allocation1] sm:$0xff]
      %2033 = vst [vmem:[#allocation1] ss:$9 sm:$0xff] %v1574
      %2034 = vst [vmem:[%s1982] ss:$9 sm:$0xff] %v1575
      %2035 = vst [vmem:[%s1984] ss:$9 sm:$0xff] %v1576
      %2036 = vst [vmem:[%s1986] ss:$9 sm:$0xff] %v1522
      %2037 = vst [vmem:[%s1988] ss:$9 sm:$0xff] %v1577
      %2038 = vst [vmem:[%s1990] ss:$9 sm:$0xff] %v1578
      %2039 = vst [vmem:[%s1992] ss:$9 sm:$0xff] %v1579
      %2040 = vst [vmem:[%s1994] ss:$9 sm:$0xff] %v1580
      %v2041 = vld [vmem:[#allocation1] sm:$0xff]
      %2042 = vst [vmem:[#allocation1] ss:$9 sm:$0xff] %v1581
      %2043 = vst [vmem:[%s1982] ss:$9 sm:$0xff] %v1582
      %2044 = vst [vmem:[%s1984] ss:$9 sm:$0xff] %v1524
      %2045 = vst [vmem:[%s1986] ss:$9 sm:$0xff] %v1583
      %2046 = vst [vmem:[%s1988] ss:$9 sm:$0xff] %v1584
      %2047 = vst [vmem:[%s1990] ss:$9 sm:$0xff] %v1585
      %2048 = vst [vmem:[%s1992] ss:$9 sm:$0xff] %v1586
      %2049 = vst [vmem:[%s1994] ss:$9 sm:$0xff] %v1587
      %v2050 = vld [vmem:[#allocation1] sm:$0xff]
      %2051 = vst [vmem:[#allocation1] ss:$9 sm:$0xff] %v1588
      %2052 = vst [vmem:[%s1982] ss:$9 sm:$0xff] %v1527
      %2053 = vst [vmem:[%s1984] ss:$9 sm:$0xff] %v1589
      %2054 = vst [vmem:[%s1986] ss:$9 sm:$0xff] %v1590
      %2055 = vst [vmem:[%s1988] ss:$9 sm:$0xff] %v1591
      %2056 = vst [vmem:[%s1990] ss:$9 sm:$0xff] %v1592
      %2057 = vst [vmem:[%s1992] ss:$9 sm:$0xff] %v1593
      %2058 = vst [vmem:[%s1994] ss:$9 sm:$0xff] %v1594
      %v2059 = vld [vmem:[#allocation1] sm:$0xff]
      %v2068 = vpack.c.bf16 %v1996, %v1996
      %v2069 = vpack.c.bf16 %v2005, %v2005
      %v2070 = vpack.c.bf16 %v2014, %v2014
      %v2071 = vpack.c.bf16 %v2023, %v2023
      %v2072 = vpack.c.bf16 %v2032, %v2032
      %v2073 = vpack.c.bf16 %v2041, %v2041
      %v2074 = vpack.c.bf16 %v2050, %v2050
      %v2075 = vpack.c.bf16 %v2059, %v2059
      %2076 = vst [vmem:[%s276] sm:$0xf] %v2068
      %2077 = vst [vmem:[%s276 + $0x4] sm:$0xf] %v2069
      %2078 = vst [vmem:[%s276 + $0x8] sm:$0xf] %v2070
      %2079 = vst [vmem:[%s276 + $0xc] sm:$0xf] %v2071
      %2080 = vst [vmem:[%s276 + $0x10] sm:$0xf] %v2072
      %2081 = vst [vmem:[%s276 + $0x14] sm:$0xf] %v2073
      %2082 = vst [vmem:[%s276 + $0x18] sm:$0xf] %v2074
      %2083 = vst [vmem:[%s276 + $0x1c] sm:$0xf] %v2075
      %v2084 = vld [vmem:[%s2] sm:$0xf]
      %v2085 = vld [vmem:[%s2 + $0x4] sm:$0xf]
      %v2086 = vld [vmem:[%s2 + $0x8] sm:$0xf]
      %v2087 = vld [vmem:[%s2 + $0xc] sm:$0xf]
      %v2088 = vld [vmem:[%s2 + $0x10] sm:$0xf]
      %v2089 = vld [vmem:[%s2 + $0x14] sm:$0xf]
      %v2090 = vld [vmem:[%s2 + $0x18] sm:$0xf]
      %v2091 = vld [vmem:[%s2 + $0x1c] sm:$0xf]
      %v2092 = vld [vmem:[%s2 + $0x20] sm:$0xf]
      %v2093 = vld [vmem:[%s2 + $0x24] sm:$0xf]
      %v2094 = vld [vmem:[%s2 + $0x28] sm:$0xf]
      %v2095 = vld [vmem:[%s2 + $0x2c] sm:$0xf]
      %v2096 = vld [vmem:[%s2 + $0x30] sm:$0xf]
      %v2097 = vld [vmem:[%s2 + $0x34] sm:$0xf]
      %v2098 = vld [vmem:[%s2 + $0x38] sm:$0xf]
      %v2099 = vld [vmem:[%s2 + $0x3c] sm:$0xf]
      %v2116 = vunpack.c.l.b16 %v2084
      %v2117 = vunpack.c.l.b16 %v2085
      %v2118 = vunpack.c.l.b16 %v2086
      %v2119 = vunpack.c.l.b16 %v2087
      %v2120 = vunpack.c.l.b16 %v2088
      %v2121 = vunpack.c.l.b16 %v2089
      %v2122 = vunpack.c.l.b16 %v2090
      %v2123 = vunpack.c.l.b16 %v2091
      %v2124 = vunpack.c.l.b16 %v2092
      %v2125 = vunpack.c.l.b16 %v2093
      %v2126 = vunpack.c.l.b16 %v2094
      %v2127 = vunpack.c.l.b16 %v2095
      %v2128 = vunpack.c.l.b16 %v2096
      %v2129 = vunpack.c.l.b16 %v2097
      %v2130 = vunpack.c.l.b16 %v2098
      %v2131 = vunpack.c.l.b16 %v2099
      %v2132 = vpack.c.b16 %v2117, %v2116
      %v2133 = vpack.c.b16 %v2119, %v2118
      %v2134 = vpack.c.b16 %v2121, %v2120
      %v2135 = vpack.c.b16 %v2123, %v2122
      %v2136 = vpack.c.b16 %v2125, %v2124
      %v2137 = vpack.c.b16 %v2127, %v2126
      %v2138 = vpack.c.b16 %v2129, %v2128
      %v2139 = vpack.c.b16 %v2131, %v2130
      %2148 = vmatpush.bf16.msra.mxu0 %v2139
      %2149 = vmatpush.bf16.msra.mxu0 %v2138
      %2150 = vmatpush.bf16.msra.mxu0 %v2137
      %2151 = vmatpush.bf16.msra.mxu0 %v2136
      %2152 = vmatpush.bf16.msra.mxu0 %v2135
      %2153 = vmatpush.bf16.msra.mxu0 %v2134
      %2154 = vmatpush.bf16.msra.mxu0 %v2133
      %2155 = vmatpush.bf16.msra.mxu0 %v2132
      %2156 = vmatmul.bf16.gmra.mxu0 %v481
      %v2157 = vpop.f32.mrf.mxu0
      %v2158 = vadd.f32 0.0, %v2157
      %v2159 = vpop.f32.mrf.mxu0
      %v2160 = vadd.f32 0.0, %v2159
      %2161 = vmatmul.bf16.gmra.mxu0 %v482
      %v2162 = vpop.f32.mrf.mxu0
      %v2163 = vadd.f32 0.0, %v2162
      %v2164 = vpop.f32.mrf.mxu0
      %v2165 = vadd.f32 0.0, %v2164
      %2166 = vmatmul.bf16.gmra.mxu0 %v483
      %v2167 = vpop.f32.mrf.mxu0
      %v2168 = vadd.f32 0.0, %v2167
      %v2169 = vpop.f32.mrf.mxu0
      %v2170 = vadd.f32 0.0, %v2169
      %2171 = vmatmul.bf16.gmra.mxu0 %v484
      %v2172 = vpop.f32.mrf.mxu0
      %v2173 = vadd.f32 0.0, %v2172
      %v2174 = vpop.f32.mrf.mxu0
      %v2175 = vadd.f32 0.0, %v2174
      %2176 = vmatmul.bf16.gmra.mxu0 %v485
      %v2177 = vpop.f32.mrf.mxu0
      %v2178 = vadd.f32 0.0, %v2177
      %v2179 = vpop.f32.mrf.mxu0
      %2180 = vdwg.mxu0
      %v2190 = vrot.slane %v2158, 1
      %v2191 = vrot.slane %v2158, 2
      %v2192 = vrot.slane %v2158, 3
      %v2193 = vrot.slane %v2158, 4
      %v2194 = vrot.slane %v2158, 5
      %v2195 = vrot.slane %v2158, 6
      %v2196 = vrot.slane %v2158, 7
      %v2197 = vrot.slane %v2160, 1
      %v2198 = vrot.slane %v2160, 2
      %v2199 = vrot.slane %v2160, 3
      %v2200 = vrot.slane %v2160, 4
      %v2201 = vrot.slane %v2160, 5
      %v2202 = vrot.slane %v2160, 6
      %v2203 = vrot.slane %v2160, 7
      %v2204 = vrot.slane %v2163, 2
      %v2205 = vrot.slane %v2163, 3
      %v2206 = vrot.slane %v2163, 4
      %v2207 = vrot.slane %v2163, 5
      %v2208 = vrot.slane %v2163, 6
      %v2209 = vrot.slane %v2163, 7
      %v2210 = vrot.slane %v2165, 1
      %v2211 = vrot.slane %v2165, 3
      %v2212 = vrot.slane %v2165, 4
      %v2213 = vrot.slane %v2165, 5
      %v2214 = vrot.slane %v2165, 6
      %v2215 = vrot.slane %v2165, 7
      %v2216 = vrot.slane %v2168, 1
      %v2217 = vrot.slane %v2168, 2
      %v2218 = vrot.slane %v2168, 4
      %v2219 = vrot.slane %v2168, 5
      %v2220 = vrot.slane %v2168, 6
      %v2221 = vrot.slane %v2168, 7
      %v2222 = vrot.slane %v2170, 1
      %v2223 = vrot.slane %v2170, 2
      %v2224 = vrot.slane %v2170, 3
      %v2225 = vrot.slane %v2170, 5
      %v2226 = vrot.slane %v2170, 6
      %v2227 = vrot.slane %v2170, 7
      %v2228 = vrot.slane %v2173, 1
      %v2229 = vrot.slane %v2173, 2
      %v2230 = vrot.slane %v2173, 3
      %v2231 = vrot.slane %v2173, 4
      %v2232 = vrot.slane %v2173, 6
      %v2233 = vrot.slane %v2173, 7
      %v2234 = vrot.slane %v2175, 1
      %v2235 = vrot.slane %v2175, 2
      %v2236 = vrot.slane %v2175, 3
      %v2237 = vrot.slane %v2175, 4
      %v2238 = vrot.slane %v2175, 5
      %v2239 = vrot.slane %v2175, 7
      %v2240 = vrot.slane %v2178, 1
      %v2241 = vrot.slane %v2178, 2
      %v2242 = vrot.slane %v2178, 3
      %v2243 = vrot.slane %v2178, 4
      %v2244 = vrot.slane %v2178, 5
      %v2245 = vrot.slane %v2178, 6
      %2302 = vst [vmem:[#allocation1] ss:$9 sm:$0xff] %v2158
      %s2303 = scalar_lea.vmem [#allocation1], 1
      %2304 = vst [vmem:[%s2303] ss:$9 sm:$0xff] %v2190
      %s2305 = scalar_lea.vmem [#allocation1], 2
      %2306 = vst [vmem:[%s2305] ss:$9 sm:$0xff] %v2191
      %s2307 = scalar_lea.vmem [#allocation1], 3
      %2308 = vst [vmem:[%s2307] ss:$9 sm:$0xff] %v2192
      %s2309 = scalar_lea.vmem [#allocation1], 4
      %2310 = vst [vmem:[%s2309] ss:$9 sm:$0xff] %v2193
      %s2311 = scalar_lea.vmem [#allocation1], 5
      %2312 = vst [vmem:[%s2311] ss:$9 sm:$0xff] %v2194
      %s2313 = scalar_lea.vmem [#allocation1], 6
      %2314 = vst [vmem:[%s2313] ss:$9 sm:$0xff] %v2195
      %s2315 = scalar_lea.vmem [#allocation1], 7
      %2316 = vst [vmem:[%s2315] ss:$9 sm:$0xff] %v2196
      %v2317 = vld [vmem:[#allocation1] sm:$0xff]
      %2318 = vst [vmem:[#allocation1] ss:$9 sm:$0xff] %v2197
      %2319 = vst [vmem:[%s2303] ss:$9 sm:$0xff] %v2198
      %2320 = vst [vmem:[%s2305] ss:$9 sm:$0xff] %v2199
      %2321 = vst [vmem:[%s2307] ss:$9 sm:$0xff] %v2200
      %2322 = vst [vmem:[%s2309] ss:$9 sm:$0xff] %v2201
      %2323 = vst [vmem:[%s2311] ss:$9 sm:$0xff] %v2202
      %2324 = vst [vmem:[%s2313] ss:$9 sm:$0xff] %v2203
      %2325 = vst [vmem:[%s2315] ss:$9 sm:$0xff] %v2163
      %v2326 = vld [vmem:[#allocation1] sm:$0xff]
      %2327 = vst [vmem:[#allocation1] ss:$9 sm:$0xff] %v2204
      %2328 = vst [vmem:[%s2303] ss:$9 sm:$0xff] %v2205
      %2329 = vst [vmem:[%s2305] ss:$9 sm:$0xff] %v2206
      %2330 = vst [vmem:[%s2307] ss:$9 sm:$0xff] %v2207
      %2331 = vst [vmem:[%s2309] ss:$9 sm:$0xff] %v2208
      %2332 = vst [vmem:[%s2311] ss:$9 sm:$0xff] %v2209
      %2333 = vst [vmem:[%s2313] ss:$9 sm:$0xff] %v2165
      %2334 = vst [vmem:[%s2315] ss:$9 sm:$0xff] %v2210
      %v2335 = vld [vmem:[#allocation1] sm:$0xff]
      %2336 = vst [vmem:[#allocation1] ss:$9 sm:$0xff] %v2211
      %2337 = vst [vmem:[%s2303] ss:$9 sm:$0xff] %v2212
      %2338 = vst [vmem:[%s2305] ss:$9 sm:$0xff] %v2213
      %2339 = vst [vmem:[%s2307] ss:$9 sm:$0xff] %v2214
      %2340 = vst [vmem:[%s2309] ss:$9 sm:$0xff] %v2215
      %2341 = vst [vmem:[%s2311] ss:$9 sm:$0xff] %v2168
      %2342 = vst [vmem:[%s2313] ss:$9 sm:$0xff] %v2216
      %2343 = vst [vmem:[%s2315] ss:$9 sm:$0xff] %v2217
      %v2344 = vld [vmem:[#allocation1] sm:$0xff]
      %2345 = vst [vmem:[#allocation1] ss:$9 sm:$0xff] %v2218
      %2346 = vst [vmem:[%s2303] ss:$9 sm:$0xff] %v2219
      %2347 = vst [vmem:[%s2305] ss:$9 sm:$0xff] %v2220
      %2348 = vst [vmem:[%s2307] ss:$9 sm:$0xff] %v2221
      %2349 = vst [vmem:[%s2309] ss:$9 sm:$0xff] %v2170
      %2350 = vst [vmem:[%s2311] ss:$9 sm:$0xff] %v2222
      %2351 = vst [vmem:[%s2313] ss:$9 sm:$0xff] %v2223
      %2352 = vst [vmem:[%s2315] ss:$9 sm:$0xff] %v2224
      %v2353 = vld [vmem:[#allocation1] sm:$0xff]
      %2354 = vst [vmem:[#allocation1] ss:$9 sm:$0xff] %v2225
      %2355 = vst [vmem:[%s2303] ss:$9 sm:$0xff] %v2226
      %2356 = vst [vmem:[%s2305] ss:$9 sm:$0xff] %v2227
      %2357 = vst [vmem:[%s2307] ss:$9 sm:$0xff] %v2173
      %2358 = vst [vmem:[%s2309] ss:$9 sm:$0xff] %v2228
      %2359 = vst [vmem:[%s2311] ss:$9 sm:$0xff] %v2229
      %2360 = vst [vmem:[%s2313] ss:$9 sm:$0xff] %v2230
      %2361 = vst [vmem:[%s2315] ss:$9 sm:$0xff] %v2231
      %v2362 = vld [vmem:[#allocation1] sm:$0xff]
      %2363 = vst [vmem:[#allocation1] ss:$9 sm:$0xff] %v2232
      %2364 = vst [vmem:[%s2303] ss:$9 sm:$0xff] %v2233
      %2365 = vst [vmem:[%s2305] ss:$9 sm:$0xff] %v2175
      %2366 = vst [vmem:[%s2307] ss:$9 sm:$0xff] %v2234
      %2367 = vst [vmem:[%s2309] ss:$9 sm:$0xff] %v2235
      %2368 = vst [vmem:[%s2311] ss:$9 sm:$0xff] %v2236
      %2369 = vst [vmem:[%s2313] ss:$9 sm:$0xff] %v2237
      %2370 = vst [vmem:[%s2315] ss:$9 sm:$0xff] %v2238
      %v2371 = vld [vmem:[#allocation1] sm:$0xff]
      %2372 = vst [vmem:[#allocation1] ss:$9 sm:$0xff] %v2239
      %2373 = vst [vmem:[%s2303] ss:$9 sm:$0xff] %v2178
      %2374 = vst [vmem:[%s2305] ss:$9 sm:$0xff] %v2240
      %2375 = vst [vmem:[%s2307] ss:$9 sm:$0xff] %v2241
      %2376 = vst [vmem:[%s2309] ss:$9 sm:$0xff] %v2242
      %2377 = vst [vmem:[%s2311] ss:$9 sm:$0xff] %v2243
      %2378 = vst [vmem:[%s2313] ss:$9 sm:$0xff] %v2244
      %2379 = vst [vmem:[%s2315] ss:$9 sm:$0xff] %v2245
      %v2380 = vld [vmem:[#allocation1] sm:$0xff]
      %v2389 = vadd.f32 %v2317, %v2326
      %v2390 = vadd.f32 %v2389, %v2335
      %v2391 = vadd.f32 %v2390, %v2344
      %v2392 = vadd.f32 %v2391, %v2353
      %v2393 = vadd.f32 %v2392, %v2362
      %v2394 = vadd.f32 %v2393, %v2371
      %v2395 = vadd.f32 %v2394, %v2380
      %v2396 = vrot.slane %v2395, 4
      %v2397 = vadd.f32 %v2395, %v2396
      %v2398 = vrot.slane %v2397, 2
      %v2399 = vadd.f32 %v2397, %v2398
      %v2400 = vrot.slane %v2399, 1
      %v2401 = vadd.f32 %v2399, %v2400
      %v2402 = vmul.f32 %v2158, %v2158
      %v2403 = vmul.f32 %v2190, %v2190
      %v2404 = vmul.f32 %v2191, %v2191
      %v2405 = vmul.f32 %v2192, %v2192
      %v2406 = vmul.f32 %v2193, %v2193
      %v2407 = vmul.f32 %v2194, %v2194
      %v2408 = vmul.f32 %v2195, %v2195
      %v2409 = vmul.f32 %v2196, %v2196
      %v2410 = vmul.f32 %v2197, %v2197
      %v2411 = vmul.f32 %v2198, %v2198
      %v2412 = vmul.f32 %v2199, %v2199
      %v2413 = vmul.f32 %v2200, %v2200
      %v2414 = vmul.f32 %v2201, %v2201
      %v2415 = vmul.f32 %v2202, %v2202
      %v2416 = vmul.f32 %v2203, %v2203
      %v2417 = vmul.f32 %v2163, %v2163
      %v2418 = vmul.f32 %v2204, %v2204
      %v2419 = vmul.f32 %v2205, %v2205
      %v2420 = vmul.f32 %v2206, %v2206
      %v2421 = vmul.f32 %v2207, %v2207
      %v2422 = vmul.f32 %v2208, %v2208
      %v2423 = vmul.f32 %v2209, %v2209
      %v2424 = vmul.f32 %v2165, %v2165
      %v2425 = vmul.f32 %v2210, %v2210
      %v2426 = vmul.f32 %v2211, %v2211
      %v2427 = vmul.f32 %v2212, %v2212
      %v2428 = vmul.f32 %v2213, %v2213
      %v2429 = vmul.f32 %v2214, %v2214
      %v2430 = vmul.f32 %v2215, %v2215
      %v2431 = vmul.f32 %v2168, %v2168
      %v2432 = vmul.f32 %v2216, %v2216
      %v2433 = vmul.f32 %v2217, %v2217
      %v2434 = vmul.f32 %v2218, %v2218
      %v2435 = vmul.f32 %v2219, %v2219
      %v2436 = vmul.f32 %v2220, %v2220
      %v2437 = vmul.f32 %v2221, %v2221
      %v2438 = vmul.f32 %v2170, %v2170
      %v2439 = vmul.f32 %v2222, %v2222
      %v2440 = vmul.f32 %v2223, %v2223
      %v2441 = vmul.f32 %v2224, %v2224
      %v2442 = vmul.f32 %v2225, %v2225
      %v2443 = vmul.f32 %v2226, %v2226
      %v2444 = vmul.f32 %v2227, %v2227
      %v2445 = vmul.f32 %v2173, %v2173
      %v2446 = vmul.f32 %v2228, %v2228
      %v2447 = vmul.f32 %v2229, %v2229
      %v2448 = vmul.f32 %v2230, %v2230
      %v2449 = vmul.f32 %v2231, %v2231
      %v2450 = vmul.f32 %v2232, %v2232
      %v2451 = vmul.f32 %v2233, %v2233
      %v2452 = vmul.f32 %v2175, %v2175
      %v2453 = vmul.f32 %v2234, %v2234
      %v2454 = vmul.f32 %v2235, %v2235
      %v2455 = vmul.f32 %v2236, %v2236
      %v2456 = vmul.f32 %v2237, %v2237
      %v2457 = vmul.f32 %v2238, %v2238
      %v2458 = vmul.f32 %v2239, %v2239
      %v2459 = vmul.f32 %v2178, %v2178
      %v2460 = vmul.f32 %v2240, %v2240
      %v2461 = vmul.f32 %v2241, %v2241
      %v2462 = vmul.f32 %v2242, %v2242
      %v2463 = vmul.f32 %v2243, %v2243
      %v2464 = vmul.f32 %v2244, %v2244
      %v2465 = vmul.f32 %v2245, %v2245
      %2530 = vst [vmem:[#allocation1] ss:$9 sm:$0xff] %v2402
      %s2531 = scalar_lea.vmem [#allocation1], 1
      %2532 = vst [vmem:[%s2531] ss:$9 sm:$0xff] %v2403
      %s2533 = scalar_lea.vmem [#allocation1], 2
      %2534 = vst [vmem:[%s2533] ss:$9 sm:$0xff] %v2404
      %s2535 = scalar_lea.vmem [#allocation1], 3
      %2536 = vst [vmem:[%s2535] ss:$9 sm:$0xff] %v2405
      %s2537 = scalar_lea.vmem [#allocation1], 4
      %2538 = vst [vmem:[%s2537] ss:$9 sm:$0xff] %v2406
      %s2539 = scalar_lea.vmem [#allocation1], 5
      %2540 = vst [vmem:[%s2539] ss:$9 sm:$0xff] %v2407
      %s2541 = scalar_lea.vmem [#allocation1], 6
      %2542 = vst [vmem:[%s2541] ss:$9 sm:$0xff] %v2408
      %s2543 = scalar_lea.vmem [#allocation1], 7
      %2544 = vst [vmem:[%s2543] ss:$9 sm:$0xff] %v2409
      %v2545 = vld [vmem:[#allocation1] sm:$0xff]
      %2546 = vst [vmem:[#allocation1] ss:$9 sm:$0xff] %v2410
      %2547 = vst [vmem:[%s2531] ss:$9 sm:$0xff] %v2411
      %2548 = vst [vmem:[%s2533] ss:$9 sm:$0xff] %v2412
      %2549 = vst [vmem:[%s2535] ss:$9 sm:$0xff] %v2413
      %2550 = vst [vmem:[%s2537] ss:$9 sm:$0xff] %v2414
      %2551 = vst [vmem:[%s2539] ss:$9 sm:$0xff] %v2415
      %2552 = vst [vmem:[%s2541] ss:$9 sm:$0xff] %v2416
      %2553 = vst [vmem:[%s2543] ss:$9 sm:$0xff] %v2417
      %v2554 = vld [vmem:[#allocation1] sm:$0xff]
      %2555 = vst [vmem:[#allocation1] ss:$9 sm:$0xff] %v2418
      %2556 = vst [vmem:[%s2531] ss:$9 sm:$0xff] %v2419
      %2557 = vst [vmem:[%s2533] ss:$9 sm:$0xff] %v2420
      %2558 = vst [vmem:[%s2535] ss:$9 sm:$0xff] %v2421
      %2559 = vst [vmem:[%s2537] ss:$9 sm:$0xff] %v2422
      %2560 = vst [vmem:[%s2539] ss:$9 sm:$0xff] %v2423
      %2561 = vst [vmem:[%s2541] ss:$9 sm:$0xff] %v2424
      %2562 = vst [vmem:[%s2543] ss:$9 sm:$0xff] %v2425
      %v2563 = vld [vmem:[#allocation1] sm:$0xff]
      %2564 = vst [vmem:[#allocation1] ss:$9 sm:$0xff] %v2426
      %2565 = vst [vmem:[%s2531] ss:$9 sm:$0xff] %v2427
      %2566 = vst [vmem:[%s2533] ss:$9 sm:$0xff] %v2428
      %2567 = vst [vmem:[%s2535] ss:$9 sm:$0xff] %v2429
      %2568 = vst [vmem:[%s2537] ss:$9 sm:$0xff] %v2430
      %2569 = vst [vmem:[%s2539] ss:$9 sm:$0xff] %v2431
      %2570 = vst [vmem:[%s2541] ss:$9 sm:$0xff] %v2432
      %2571 = vst [vmem:[%s2543] ss:$9 sm:$0xff] %v2433
      %v2572 = vld [vmem:[#allocation1] sm:$0xff]
      %2573 = vst [vmem:[#allocation1] ss:$9 sm:$0xff] %v2434
      %2574 = vst [vmem:[%s2531] ss:$9 sm:$0xff] %v2435
      %2575 = vst [vmem:[%s2533] ss:$9 sm:$0xff] %v2436
      %2576 = vst [vmem:[%s2535] ss:$9 sm:$0xff] %v2437
      %2577 = vst [vmem:[%s2537] ss:$9 sm:$0xff] %v2438
      %2578 = vst [vmem:[%s2539] ss:$9 sm:$0xff] %v2439
      %2579 = vst [vmem:[%s2541] ss:$9 sm:$0xff] %v2440
      %2580 = vst [vmem:[%s2543] ss:$9 sm:$0xff] %v2441
      %v2581 = vld [vmem:[#allocation1] sm:$0xff]
      %2582 = vst [vmem:[#allocation1] ss:$9 sm:$0xff] %v2442
      %2583 = vst [vmem:[%s2531] ss:$9 sm:$0xff] %v2443
      %2584 = vst [vmem:[%s2533] ss:$9 sm:$0xff] %v2444
      %2585 = vst [vmem:[%s2535] ss:$9 sm:$0xff] %v2445
      %2586 = vst [vmem:[%s2537] ss:$9 sm:$0xff] %v2446
      %2587 = vst [vmem:[%s2539] ss:$9 sm:$0xff] %v2447
      %2588 = vst [vmem:[%s2541] ss:$9 sm:$0xff] %v2448
      %2589 = vst [vmem:[%s2543] ss:$9 sm:$0xff] %v2449
      %v2590 = vld [vmem:[#allocation1] sm:$0xff]
      %2591 = vst [vmem:[#allocation1] ss:$9 sm:$0xff] %v2450
      %2592 = vst [vmem:[%s2531] ss:$9 sm:$0xff] %v2451
      %2593 = vst [vmem:[%s2533] ss:$9 sm:$0xff] %v2452
      %2594 = vst [vmem:[%s2535] ss:$9 sm:$0xff] %v2453
      %2595 = vst [vmem:[%s2537] ss:$9 sm:$0xff] %v2454
      %2596 = vst [vmem:[%s2539] ss:$9 sm:$0xff] %v2455
      %2597 = vst [vmem:[%s2541] ss:$9 sm:$0xff] %v2456
      %2598 = vst [vmem:[%s2543] ss:$9 sm:$0xff] %v2457
      %v2599 = vld [vmem:[#allocation1] sm:$0xff]
      %2600 = vst [vmem:[#allocation1] ss:$9 sm:$0xff] %v2458
      %2601 = vst [vmem:[%s2531] ss:$9 sm:$0xff] %v2459
      %2602 = vst [vmem:[%s2533] ss:$9 sm:$0xff] %v2460
      %2603 = vst [vmem:[%s2535] ss:$9 sm:$0xff] %v2461
      %2604 = vst [vmem:[%s2537] ss:$9 sm:$0xff] %v2462
      %2605 = vst [vmem:[%s2539] ss:$9 sm:$0xff] %v2463
      %2606 = vst [vmem:[%s2541] ss:$9 sm:$0xff] %v2464
      %2607 = vst [vmem:[%s2543] ss:$9 sm:$0xff] %v2465
      %v2608 = vld [vmem:[#allocation1] sm:$0xff]
      %v2617 = vadd.f32 %v2545, %v2554
      %v2618 = vadd.f32 %v2617, %v2563
      %v2619 = vadd.f32 %v2618, %v2572
      %v2620 = vadd.f32 %v2619, %v2581
      %v2621 = vadd.f32 %v2620, %v2590
      %v2622 = vadd.f32 %v2621, %v2599
      %v2623 = vadd.f32 %v2622, %v2608
      %v2624 = vrot.slane %v2623, 4
      %v2625 = vadd.f32 %v2623, %v2624
      %v2626 = vrot.slane %v2625, 2
      %v2627 = vadd.f32 %v2625, %v2626
      %v2628 = vrot.slane %v2627, 1
      %v2629 = vadd.f32 %v2627, %v2628
      %2630 = vst [vmem:[%s289] sm:$0x1] %v2401
      %2631 = vst [vmem:[%s289 + $0x1] sm:$0x1] %v2629
      %2632 = vst [vmem:[#allocation1] ss:$9 sm:$0xff] %v2158
      %s2633 = scalar_lea.vmem [#allocation1], 1
      %2634 = vst [vmem:[%s2633] ss:$9 sm:$0xff] %v2190
      %s2635 = scalar_lea.vmem [#allocation1], 2
      %2636 = vst [vmem:[%s2635] ss:$9 sm:$0xff] %v2191
      %s2637 = scalar_lea.vmem [#allocation1], 3
      %2638 = vst [vmem:[%s2637] ss:$9 sm:$0xff] %v2192
      %s2639 = scalar_lea.vmem [#allocation1], 4
      %2640 = vst [vmem:[%s2639] ss:$9 sm:$0xff] %v2193
      %s2641 = scalar_lea.vmem [#allocation1], 5
      %2642 = vst [vmem:[%s2641] ss:$9 sm:$0xff] %v2194
      %s2643 = scalar_lea.vmem [#allocation1], 6
      %2644 = vst [vmem:[%s2643] ss:$9 sm:$0xff] %v2195
      %s2645 = scalar_lea.vmem [#allocation1], 7
      %2646 = vst [vmem:[%s2645] ss:$9 sm:$0xff] %v2196
      %v2647 = vld [vmem:[#allocation1] sm:$0xff]
      %2648 = vst [vmem:[#allocation1] ss:$9 sm:$0xff] %v2197
      %2649 = vst [vmem:[%s2633] ss:$9 sm:$0xff] %v2198
      %2650 = vst [vmem:[%s2635] ss:$9 sm:$0xff] %v2199
      %2651 = vst [vmem:[%s2637] ss:$9 sm:$0xff] %v2200
      %2652 = vst [vmem:[%s2639] ss:$9 sm:$0xff] %v2201
      %2653 = vst [vmem:[%s2641] ss:$9 sm:$0xff] %v2202
      %2654 = vst [vmem:[%s2643] ss:$9 sm:$0xff] %v2203
      %2655 = vst [vmem:[%s2645] ss:$9 sm:$0xff] %v2163
      %v2656 = vld [vmem:[#allocation1] sm:$0xff]
      %2657 = vst [vmem:[#allocation1] ss:$9 sm:$0xff] %v2204
      %2658 = vst [vmem:[%s2633] ss:$9 sm:$0xff] %v2205
      %2659 = vst [vmem:[%s2635] ss:$9 sm:$0xff] %v2206
      %2660 = vst [vmem:[%s2637] ss:$9 sm:$0xff] %v2207
      %2661 = vst [vmem:[%s2639] ss:$9 sm:$0xff] %v2208
      %2662 = vst [vmem:[%s2641] ss:$9 sm:$0xff] %v2209
      %2663 = vst [vmem:[%s2643] ss:$9 sm:$0xff] %v2165
      %2664 = vst [vmem:[%s2645] ss:$9 sm:$0xff] %v2210
      %v2665 = vld [vmem:[#allocation1] sm:$0xff]
      %2666 = vst [vmem:[#allocation1] ss:$9 sm:$0xff] %v2211
      %2667 = vst [vmem:[%s2633] ss:$9 sm:$0xff] %v2212
      %2668 = vst [vmem:[%s2635] ss:$9 sm:$0xff] %v2213
      %2669 = vst [vmem:[%s2637] ss:$9 sm:$0xff] %v2214
      %2670 = vst [vmem:[%s2639] ss:$9 sm:$0xff] %v2215
      %2671 = vst [vmem:[%s2641] ss:$9 sm:$0xff] %v2168
      %2672 = vst [vmem:[%s2643] ss:$9 sm:$0xff] %v2216
      %2673 = vst [vmem:[%s2645] ss:$9 sm:$0xff] %v2217
      %v2674 = vld [vmem:[#allocation1] sm:$0xff]
      %2675 = vst [vmem:[#allocation1] ss:$9 sm:$0xff] %v2218
      %2676 = vst [vmem:[%s2633] ss:$9 sm:$0xff] %v2219
      %2677 = vst [vmem:[%s2635] ss:$9 sm:$0xff] %v2220
      %2678 = vst [vmem:[%s2637] ss:$9 sm:$0xff] %v2221
      %2679 = vst [vmem:[%s2639] ss:$9 sm:$0xff] %v2170
      %2680 = vst [vmem:[%s2641] ss:$9 sm:$0xff] %v2222
      %2681 = vst [vmem:[%s2643] ss:$9 sm:$0xff] %v2223
      %2682 = vst [vmem:[%s2645] ss:$9 sm:$0xff] %v2224
      %v2683 = vld [vmem:[#allocation1] sm:$0xff]
      %2684 = vst [vmem:[#allocation1] ss:$9 sm:$0xff] %v2225
      %2685 = vst [vmem:[%s2633] ss:$9 sm:$0xff] %v2226
      %2686 = vst [vmem:[%s2635] ss:$9 sm:$0xff] %v2227
      %2687 = vst [vmem:[%s2637] ss:$9 sm:$0xff] %v2173
      %2688 = vst [vmem:[%s2639] ss:$9 sm:$0xff] %v2228
      %2689 = vst [vmem:[%s2641] ss:$9 sm:$0xff] %v2229
      %2690 = vst [vmem:[%s2643] ss:$9 sm:$0xff] %v2230
      %2691 = vst [vmem:[%s2645] ss:$9 sm:$0xff] %v2231
      %v2692 = vld [vmem:[#allocation1] sm:$0xff]
      %2693 = vst [vmem:[#allocation1] ss:$9 sm:$0xff] %v2232
      %2694 = vst [vmem:[%s2633] ss:$9 sm:$0xff] %v2233
      %2695 = vst [vmem:[%s2635] ss:$9 sm:$0xff] %v2175
      %2696 = vst [vmem:[%s2637] ss:$9 sm:$0xff] %v2234
      %2697 = vst [vmem:[%s2639] ss:$9 sm:$0xff] %v2235
      %2698 = vst [vmem:[%s2641] ss:$9 sm:$0xff] %v2236
      %2699 = vst [vmem:[%s2643] ss:$9 sm:$0xff] %v2237
      %2700 = vst [vmem:[%s2645] ss:$9 sm:$0xff] %v2238
      %v2701 = vld [vmem:[#allocation1] sm:$0xff]
      %2702 = vst [vmem:[#allocation1] ss:$9 sm:$0xff] %v2239
      %2703 = vst [vmem:[%s2633] ss:$9 sm:$0xff] %v2178
      %2704 = vst [vmem:[%s2635] ss:$9 sm:$0xff] %v2240
      %2705 = vst [vmem:[%s2637] ss:$9 sm:$0xff] %v2241
      %2706 = vst [vmem:[%s2639] ss:$9 sm:$0xff] %v2242
      %2707 = vst [vmem:[%s2641] ss:$9 sm:$0xff] %v2243
      %2708 = vst [vmem:[%s2643] ss:$9 sm:$0xff] %v2244
      %2709 = vst [vmem:[%s2645] ss:$9 sm:$0xff] %v2245
      %v2710 = vld [vmem:[#allocation1] sm:$0xff]
      %v2719 = vpack.c.bf16 %v2647, %v2647
      %v2720 = vpack.c.bf16 %v2656, %v2656
      %v2721 = vpack.c.bf16 %v2665, %v2665
      %v2722 = vpack.c.bf16 %v2674, %v2674
      %v2723 = vpack.c.bf16 %v2683, %v2683
      %v2724 = vpack.c.bf16 %v2692, %v2692
      %v2725 = vpack.c.bf16 %v2701, %v2701
      %v2726 = vpack.c.bf16 %v2710, %v2710
      %2727 = vst [vmem:[%s281] sm:$0xf] %v2719
      %2728 = vst [vmem:[%s281 + $0x4] sm:$0xf] %v2720
      %2729 = vst [vmem:[%s281 + $0x8] sm:$0xf] %v2721
      %2730 = vst [vmem:[%s281 + $0xc] sm:$0xf] %v2722
      %2731 = vst [vmem:[%s281 + $0x10] sm:$0xf] %v2723
      %2732 = vst [vmem:[%s281 + $0x14] sm:$0xf] %v2724
      %2733 = vst [vmem:[%s281 + $0x18] sm:$0xf] %v2725
      %2734 = vst [vmem:[%s281 + $0x1c] sm:$0xf] %v2726
      %p2735 = scmp.lt.s32.totalorder %s18, 1
      %s2736 = scalar_select %p2735, %s18, 1
      %s2737 = smul.addr %s2736, 8
      %s2738 = smul.addr %s2737, 4
      %s2739 = scalar_lea.vmem %s3, %s2738
      %p2740 = scmp.lt.s32.totalorder %s18, 1
      %s2741 = scalar_select %p2740, %s18, 1
      %s2742 = smul.addr %s2741, 8
      %s2743 = smul.addr %s2742, 4
      %s2744 = scalar_lea.vmem %s4, %s2743
      %p2745 = scmp.lt.s32.totalorder %s18, 1
      %s2746 = scalar_select %p2745, %s18, 1
      %s2747 = smul.addr %s2746, 2
      %s2748 = scalar_lea.vmem %s5, %s2747
      %p2749 = scmp.lt.s32.totalorder %s18, 1
      %s2750 = scalar_select %p2749, %s18, 1
      %s2751 = smul.addr %s2750, 2
      %s2752 = scalar_lea.vmem %s6, %s2751
      // Predicated region
      $region33: #{basic_block_forward.3} parent=31 // pred_check
        %p2753 = pneg %p104
      $region34: #{basic_block_forward.3} parent=31 // pred_check_branch
        %2755 = sbr.rel (%p2753) target = $region36
      $region35: #{basic_block_forward.3} parent=31 // pred_region
        _
      $region36: #{basic_block_forward.3} parent=31 // pred_fallthru
        _
      // Predicated region
      $region37: #{basic_block_forward.3} parent=31 // pred_check
        %p2756 = pneg %p130
      $region38: #{basic_block_forward.3} parent=31 // pred_check_branch
        %2758 = sbr.rel (%p2756) target = $region40
      $region39: #{basic_block_forward.3} parent=31 // pred_region
        _
      $region40: #{basic_block_forward.3} parent=31 // pred_fallthru
        _
      // Predicated region
      $region41: #{basic_block_forward.3} parent=31 // pred_check
        %p2759 = pneg %p156
      $region42: #{basic_block_forward.3} parent=31 // pred_check_branch
        %2761 = sbr.rel (%p2759) target = $region44
      $region43: #{basic_block_forward.3} parent=31 // pred_region
        _
      $region44: #{basic_block_forward.3} parent=31 // pred_fallthru
        _
      // Predicated region
      $region45: #{basic_block_forward.3} parent=31 // pred_check
        %p2762 = pneg %p182
      $region46: #{basic_block_forward.3} parent=31 // pred_check_branch
        %2764 = sbr.rel (%p2762) target = $region48
      $region47: #{basic_block_forward.3} parent=31 // pred_region
        _
      $region48: #{basic_block_forward.3} parent=31 // pred_fallthru
        _
    $region32: #{basic_block_forward.3} parent=5 // pred_fallthru
      _
    %p2765 = scmp.le.s32.totalorder 2, %s13
    // Predicated region
    $region49: #{basic_block_forward.3} parent=5 // pred_check
      %p2766 = pneg %p2765
    $region50: #{basic_block_forward.3} parent=5 // pred_check_branch
      %2768 = sbr.rel (%p2766) target = $region52
    $region51: #{basic_block_forward.3} parent=5 // pred_region
      %s2769 = ssub.s32 %s13, 2
      // Predicated region
      $region53: #{basic_block_forward.3} parent=51 // pred_check
        %p2770 = pneg %p110
      $region54: #{basic_block_forward.3} parent=51 // pred_check_branch
        %2772 = sbr.rel (%p2770) target = $region56
      $region55: #{basic_block_forward.3} parent=51 // pred_region
        %p2773 = scmp.lt.s32.totalorder %s19, 1
        %s2774 = scalar_select %p2773, %s19, 1
        %s2775 = smul.addr %s2774, 8
        %s2776 = smul.addr %s2775, 4
        %s2777 = scalar_lea.vmem %s3, %s2776
      $region56: #{basic_block_forward.3} parent=51 // pred_fallthru
        _
      // Predicated region
      $region57: #{basic_block_forward.3} parent=51 // pred_check
        %p2778 = pneg %p136
      $region58: #{basic_block_forward.3} parent=51 // pred_check_branch
        %2780 = sbr.rel (%p2778) target = $region60
      $region59: #{basic_block_forward.3} parent=51 // pred_region
        %p2781 = scmp.lt.s32.totalorder %s19, 1
        %s2782 = scalar_select %p2781, %s19, 1
        %s2783 = smul.addr %s2782, 8
        %s2784 = smul.addr %s2783, 4
        %s2785 = scalar_lea.vmem %s4, %s2784
      $region60: #{basic_block_forward.3} parent=51 // pred_fallthru
        _
      // Predicated region
      $region61: #{basic_block_forward.3} parent=51 // pred_check
        %p2786 = pneg %p162
      $region62: #{basic_block_forward.3} parent=51 // pred_check_branch
        %2788 = sbr.rel (%p2786) target = $region64
      $region63: #{basic_block_forward.3} parent=51 // pred_region
        %p2789 = scmp.lt.s32.totalorder %s19, 1
        %s2790 = scalar_select %p2789, %s19, 1
        %s2791 = smul.addr %s2790, 2
        %s2792 = scalar_lea.vmem %s5, %s2791
      $region64: #{basic_block_forward.3} parent=51 // pred_fallthru
        _
      // Predicated region
      $region65: #{basic_block_forward.3} parent=51 // pred_check
        %p2793 = pneg %p188
      $region66: #{basic_block_forward.3} parent=51 // pred_check_branch
        %2795 = sbr.rel (%p2793) target = $region68
      $region67: #{basic_block_forward.3} parent=51 // pred_region
        %p2796 = scmp.lt.s32.totalorder %s19, 1
        %s2797 = scalar_select %p2796, %s19, 1
        %s2798 = smul.addr %s2797, 2
        %s2799 = scalar_lea.vmem %s6, %s2798
      $region68: #{basic_block_forward.3} parent=51 // pred_fallthru
        _
    $region52: #{basic_block_forward.3} parent=5 // pred_fallthru
      _
  $region6: #{basic_block_forward.3} parent=0 // loop_footer
    %s17 = sadd.s32 1, %s13
  $region7: #{basic_block_forward.3} parent=0 // loop_footer_branch
    %12 = sbr.rel target = $region3
  $region8: #{basic_block_forward.3} parent=0 // loop_exit
    _

</llo_original>
